<compile_context>
chip_gen: v6e
topology: v6e:2x2x1
jax: 0.10.0
libtpu: 0.0.40
codegen_flags: <defaults>
</compile_context>

<pallas_src>
import functools

import numpy as np
import jax
import jax.numpy as jnp
from jax.experimental import pallas as pl
from jax.experimental.pallas import tpu as pltpu

_BN_EPS = 1e-5
_H = 4
_W = 4
_HW = _H * _W        # the Linear(4*4*2, ...) head implies a 4x4 spatial map
_OUT_LANES = 128     # lane-dense packed output width

# flat-row shift for conv tap k = kh*3 + kw (rows are NHWC-flat: r = b*HW + h*W + w)
_TAP_SHIFTS = tuple((kh - 1) * _W + (kw - 1) for kh in range(3) for kw in range(3))
_CENTER_TAP = 4      # kh == kw == 1: never masked


# ----------------------------------------------------------------------------
# Fused forward kernel (one pallas_call for the whole network)
# ----------------------------------------------------------------------------
def _network_kernel(x_ref, mask_ref, sel_ref,
                    w1_ref, s1_ref, w2_ref, s2_ref, w3_ref, s3_ref, w4_ref, s4_ref,
                    wh_ref, sh_ref,
                    wp_ref, bp_ref, wv1_ref, bv1_ref, wv2_ref, bv2_ref,
                    out_ref):
    m = x_ref.shape[0]            # rows in this block = batch_block * H * W
    bb = sel_ref.shape[0]         # images in this block
    A = bp_ref.shape[1]           # action_dim
    nv = bv1_ref.shape[1]         # 256 (value hidden)

    def conv3x3_bn_relu(y, w_ref, s_ref):
        # y     : (m, Cin) f32 activation (rows = (b, h, w), NHWC-flat)
        # w_ref : (9*Cin, Cout) bf16 (fused layout)  or (9, Cin, Cout) bf16,
        #         BN scale pre-folded
        # s_ref : (1, Cout) f32 shift  (= (bias - mean) * scale + beta)
        # The padded 3x3 spatial shift is a sublane roll (XLU) + 0/1 row mask
        # (VPU); the MXU only sees the conv GEMM itself.
        cin = y.shape[1]
        taps = []
        for k in range(9):
            d = _TAP_SHIFTS[k]
            t = y if d == 0 else pltpu.roll(y, (-d) % m, axis=0)
            if k != _CENTER_TAP:
                t = t * mask_ref[k]                       # (m, 1) boundary mask
            taps.append(t.astype(jnp.bfloat16))
        if len(w_ref.shape) == 2:
            # Cin % 128 == 0: lane-aligned in-VMEM im2col -> one long-K matmul.
            patches = jnp.concatenate(taps, axis=1)       # (m, 9*Cin)
            acc = jnp.dot(patches, w_ref[...], preferred_element_type=jnp.float32)
        else:
            # Narrow Cin: 9 accumulating short-K matmuls (no unaligned concat).
            acc = jnp.dot(taps[0], w_ref[0], preferred_element_type=jnp.float32)
            for k in range(1, 9):
                acc = acc + jnp.dot(taps[k], w_ref[k],
                                    preferred_element_type=jnp.float32)
        return jnp.maximum(acc + s_ref[...], 0.0)

    # ---- trunk: 4x (3x3 conv + BN + ReLU), everything stays in VMEM ---------
    y = x_ref[...].astype(jnp.float32)
    y = conv3x3_bn_relu(y, w1_ref, s1_ref)
    y = conv3x3_bn_relu(y, w2_ref, s2_ref)
    y = conv3x3_bn_relu(y, w3_ref, s3_ref)
    y = conv3x3_bn_relu(y, w4_ref, s4_ref)

    # ---- merged policy/value 1x1 conv + BN + ReLU (lanes: [p0, p1, v]) ------
    hh = jnp.dot(y.astype(jnp.bfloat16), wh_ref[...],
                 preferred_element_type=jnp.float32)
    hh = jnp.maximum(hh + sh_ref[...], 0.0)               # (m, 3) f32
    hh_bf = hh.astype(jnp.bfloat16)

    # ---- FC heads: per-row weighted contributions + ONE segment-sum matmul ---
    # wp_ref[c][b*HW + s, a] == W_fc[a, c*HW + s]  (PyTorch NCHW-flatten order)
    # Lane layout of `big` is [value(256) | policy(A)] so the concat is
    # 128-aligned (free) and the result slices are lane-aligned too.
    v_contrib = hh_bf[:, 2:3] * wv1_ref[...]                             # (m, 256)
    p_contrib = hh_bf[:, 0:1] * wp_ref[0] + hh_bf[:, 1:2] * wp_ref[1]    # (m, A)
    big = jnp.concatenate([v_contrib, p_contrib], axis=1)                # (m, 256+A)
    res = jnp.dot(sel_ref[...], big, preferred_element_type=jnp.float32)  # (bb, 256+A)

    # value head: Linear(HW -> 256) + ReLU + Linear(256 -> 1)
    v1 = jnp.maximum(res[:, :nv] + bv1_ref[...], 0.0)                    # (bb, 256)
    v2 = jnp.dot(v1, wv2_ref[...], preferred_element_type=jnp.float32) + bv2_ref[...]

    # policy head: Linear(2*HW -> A) + Softmax
    logits = res[:, nv:] + bp_ref[...]                                   # (bb, A)
    lmax = jnp.max(logits, axis=-1, keepdims=True)
    e = jnp.exp(logits - lmax)
    probs = e / jnp.sum(e, axis=-1, keepdims=True)

    # pack [policy | value | zeros] into one lane-dense (bb, 128) f32 store
    pad = jnp.zeros((bb, out_ref.shape[1] - A - 1), jnp.float32)
    out_ref[...] = jnp.concatenate([probs, v2, pad], axis=1)


# ----------------------------------------------------------------------------
# Parameter preparation (BN folding, layout rewrites) — plain JAX/NumPy, once
# ----------------------------------------------------------------------------
def _fold_conv3x3(p):
    scale = p["gamma"] / jnp.sqrt(p["var"] + _BN_EPS)
    shift = (p["b"] - p["mean"]) * scale + p["beta"]
    oc, ic = p["w"].shape[0], p["w"].shape[1]
    w = jnp.transpose(p["w"], (2, 3, 1, 0)).reshape(9, ic, oc)   # [k=kh*3+kw, ci, co]
    w = (w * scale[None, None, :]).astype(jnp.bfloat16)
    if ic % 128 == 0:
        w = w.reshape(9 * ic, oc)                                # fused long-K layout
    return w, shift.reshape(1, oc).astype(jnp.float32)


def _fold_conv1x1(p):
    scale = p["gamma"] / jnp.sqrt(p["var"] + _BN_EPS)
    shift = (p["b"] - p["mean"]) * scale + p["beta"]
    oc, ic = p["w"].shape[0], p["w"].shape[1]
    w = p["w"].reshape(oc, ic).T * scale[None, :]                # (ci, co)
    return w, shift.reshape(1, oc)


def _make_tap_masks(batch_block):
    """0/1 boundary masks for the 3x3 / pad=1 conv taps on NHWC-flat rows."""
    m = batch_block * _HW
    masks = np.zeros((9, m, 1), np.float32)
    for kh in range(3):
        for kw in range(3):
            k = kh * 3 + kw
            for b in range(batch_block):
                for h in range(_H):
                    for w in range(_W):
                        if 0 <= h + kh - 1 < _H and 0 <= w + kw - 1 < _W:
                            masks[k, b * _HW + h * _W + w, 0] = 1.0
    return jnp.asarray(masks, jnp.float32)


def _make_sel(batch_block):
    """0/1 segment-sum selector: sel[b, r] = 1 iff row r belongs to image b."""
    m = batch_block * _HW
    sel = np.zeros((batch_block, m), np.float32)
    for b in range(batch_block):
        sel[b, b * _HW:(b + 1) * _HW] = 1.0
    return jnp.asarray(sel, jnp.bfloat16)        # 0/1 exact in bf16


def prepare_operands(params, batch_block):
    """Fold BN into the weights and rewrite all layouts for the fused kernel."""
    ops = {}
    for i in range(4):
        w, s = _fold_conv3x3(params["conv"][i])
        ops[f"w{i + 1}"], ops[f"s{i + 1}"] = w, s

    # merge policy (OC=2) and value (OC=1) 1x1 convs into one OC=3 GEMM
    whp, shp = _fold_conv1x1(params["policy_conv"])   # (128, 2), (1, 2)
    whv, shv = _fold_conv1x1(params["value_conv"])    # (128, 1), (1, 1)
    ops["wh"] = jnp.concatenate([whp, whv], axis=1).astype(jnp.bfloat16)   # (128, 3)
    ops["sh"] = jnp.concatenate([shp, shv], axis=1).astype(jnp.float32)    # (1, 3)

    # Head FC weights, expanded per-row (bf16; HW-periodic tile across the block
    # so the kernel never transposes / re-flattens activations).
    wfc = params["policy_fc"]["w"]                    # (A, 2*HW)
    ops["wp"] = jnp.stack(
        [jnp.tile(wfc[:, c * _HW:(c + 1) * _HW].T, (batch_block, 1)) for c in range(2)],
        axis=0).astype(jnp.bfloat16)                  # (2, bb*HW, A)
    ops["bp"] = params["policy_fc"]["b"].reshape(1, -1).astype(jnp.float32)

    ops["wv1"] = jnp.tile(params["value_fc1"]["w"].T,
                          (batch_block, 1)).astype(jnp.bfloat16)           # (bb*HW, 256)
    ops["bv1"] = params["value_fc1"]["b"].reshape(1, -1).astype(jnp.float32)
    ops["wv2"] = params["value_fc2"]["w"].T.astype(jnp.float32)            # (256, 1)
    ops["bv2"] = params["value_fc2"]["b"].reshape(1, -1).astype(jnp.float32)

    ops["mask"] = _make_tap_masks(batch_block)        # (9, bb*HW, 1) f32
    ops["sel"] = _make_sel(batch_block)               # (bb, bb*HW)   bf16
    return ops


# ----------------------------------------------------------------------------
# Forward pass (one pallas_call; ("parallel",) grid over batch blocks)
# ----------------------------------------------------------------------------
_OPERAND_ORDER = ("mask", "sel", "w1", "s1", "w2", "s2", "w3", "s3", "w4", "s4",
                  "wh", "sh", "wp", "bp", "wv1", "bv1", "wv2", "bv2")


def _pick_batch_block(batch):
    """Target m = bb*16 ~= 512 rows/step; prefer >=2 grid steps (v7x: 2 TCs)."""
    for bb in (32, 16, 8):
        if batch % bb == 0 and batch // bb >= 2:
            return bb
    for bb in (32, 16, 8):
        if batch % bb == 0:
            return bb
    return batch        # tiny / odd batches: single grid step with the full batch


def network_forward(ops, x_nchw, *, batch_block):
    B, C0 = x_nchw.shape[0], x_nchw.shape[1]
    bb = batch_block
    assert B % bb == 0, "batch must be a multiple of the batch block"
    mblk = bb * _HW
    A = ops["bp"].shape[1]
    assert A + 1 <= _OUT_LANES

    # NCHW (PyTorch convention) -> NHWC -> flat (B*H*W, C) bf16; rows = (b, h, w).
    x = jnp.transpose(x_nchw, (0, 2, 3, 1)).reshape(B * _HW, C0).astype(jnp.bfloat16)

    def full_spec(arr):
        nd = arr.ndim
        return pl.BlockSpec(arr.shape, lambda i, _nd=nd: (0,) * _nd)

    operands = [ops[k] for k in _OPERAND_ORDER]
    in_specs = [pl.BlockSpec((mblk, C0), lambda i: (i, 0))] + [full_spec(a) for a in operands]
    # single lane-dense packed output: lanes [0:A) = policy, lane A = value
    out_specs = pl.BlockSpec((bb, _OUT_LANES), lambda i: (i, 0))
    out_shape = jax.ShapeDtypeStruct((B, _OUT_LANES), jnp.float32)

    # NOTE: constant operands could be single-buffered (pl.Buffered(1)); the total
    # resident footprint here is < 4 MiB so default double-buffering is fine on
    # all of v5e / v6e / v7x.
    packed = pl.pallas_call(
        _network_kernel,
        grid=(B // bb,),
        in_specs=in_specs,
        out_specs=out_specs,
        out_shape=out_shape,
        compiler_params=pltpu.CompilerParams(dimension_semantics=("parallel",)),
    )(x, *operands)

    policy = packed[:, :A]
    value = packed[:, A:A + 1]
    return policy, value


# ----------------------------------------------------------------------------
# Pure-JAX f32 reference (matches the PyTorch module in eval mode)
# ----------------------------------------------------------------------------
def reference_forward(params, x_nchw):
    def conv_bn_relu(p, x, pad):
        y = jax.lax.conv_general_dilated(
            x, p["w"], window_strides=(1, 1), padding=[(pad, pad), (pad, pad)],
            dimension_numbers=("NCHW", "OIHW", "NCHW"))
        y = y + p["b"][None, :, None, None]
        scale = p["gamma"] / jnp.sqrt(p["var"] + _BN_EPS)
        y = (y - p["mean"][None, :, None, None]) * scale[None, :, None, None] \
            + p["beta"][None, :, None, None]
        return jnp.maximum(y, 0.0)

    y = x_nchw
    for i in range(4):
        y = conv_bn_relu(params["conv"][i], y, 1)
    hp = conv_bn_relu(params["policy_conv"], y, 0)     # (B, 2, 4, 4)
    hv = conv_bn_relu(params["value_conv"], y, 0)      # (B, 1, 4, 4)
    B = x_nchw.shape[0]
    logits = hp.reshape(B, -1) @ params["policy_fc"]["w"].T + params["policy_fc"]["b"]
    policy = jax.nn.softmax(logits, axis=-1)
    v1 = jnp.maximum(hv.reshape(B, -1) @ params["value_fc1"]["w"].T
                     + params["value_fc1"]["b"], 0.0)
    value = v1 @ params["value_fc2"]["w"].T + params["value_fc2"]["b"]
    return policy, value


# ----------------------------------------------------------------------------
# Parameter init (deterministic, synthetic)
# ----------------------------------------------------------------------------
def _init_conv_bn(key, in_c, out_c, ksize):
    ks = jax.random.split(key, 6)
    fan_in = in_c * ksize * ksize
    return {
        "w": jax.random.normal(ks[0], (out_c, in_c, ksize, ksize), jnp.float32)
             * (1.0 / jnp.sqrt(fan_in)),
        "b": jax.random.normal(ks[1], (out_c,), jnp.float32) * 0.05,
        "gamma": 1.0 + 0.1 * jax.random.normal(ks[2], (out_c,), jnp.float32),
        "beta": 0.05 * jax.random.normal(ks[3], (out_c,), jnp.float32),
        "mean": 0.05 * jax.random.normal(ks[4], (out_c,), jnp.float32),
        "var": 1.0 + 0.1 * jax.random.uniform(ks[5], (out_c,), jnp.float32),
    }


def _init_linear(key, in_f, out_f):
    k1, k2 = jax.random.split(key)
    return {
        "w": jax.random.normal(k1, (out_f, in_f), jnp.float32) * (1.0 / jnp.sqrt(in_f)),
        "b": jax.random.normal(k2, (out_f,), jnp.float32) * 0.05,
    }


def init_network_params(key, state_dim, action_dim):
    keys = jax.random.split(key, 10)
    chans = [state_dim[0], 32, 64, 128, 128]
    return {
        "conv": [_init_conv_bn(keys[i], chans[i], chans[i + 1], 3) for i in range(4)],
        "policy_conv": _init_conv_bn(keys[4], 128, 2, 1),
        "policy_fc": _init_linear(keys[5], _HW * 2, action_dim),
        "value_conv": _init_conv_bn(keys[6], 128, 1, 1),
        "value_fc1": _init_linear(keys[7], _HW * 1, 256),
        "value_fc2": _init_linear(keys[8], 256, 1),
    }


# ----------------------------------------------------------------------------
# Main
# ----------------------------------------------------------------------------
if __name__ == "__main__":
    key = jax.random.PRNGKey(0)
    k_param, k_input = jax.random.split(key)

    # The Linear(4*4*2, ...) heads imply a 4x4 spatial input.
    state_dim = (4, 4, 4)       # (C, H, W)
    action_dim = 8
    batch = 2

    params = init_network_params(k_param, state_dim, action_dim)
    x = jax.random.normal(k_input, (batch,) + state_dim, jnp.float32)

    batch_block = _pick_batch_block(batch)
    ops = prepare_operands(params, batch_block)
    fwd = jax.jit(functools.partial(network_forward, batch_block=batch_block))

    policy, value = fwd(ops, x)
    policy = jax.block_until_ready(policy)
    value = jax.block_until_ready(value)

    assert policy.shape == (batch, action_dim)
    assert value.shape == (batch, 1)
    assert bool(jnp.all(jnp.isfinite(policy))) and bool(jnp.all(jnp.isfinite(value)))
    # softmax rows must sum to 1
    assert bool(jnp.allclose(jnp.sum(policy, axis=-1), 1.0, atol=1e-5))

    # loose check against a pure-JAX f32 reference (trunk/heads run in bf16 on the MXU)
    ref_policy, ref_value = reference_forward(params, x)
    assert float(jnp.max(jnp.abs(policy - ref_policy))) < 5e-2
    assert float(jnp.max(jnp.abs(value - ref_value))) < 1e-1 + 0.05 * float(
        jnp.max(jnp.abs(ref_value)))

    print("KERNEL_OK")
</pallas_src>

<mosaic_0001>
module attributes {stable_mosaic.version = 11 : i64} {
  func.func @_network_kernel(%arg0: i32, %arg1: memref<32x4xbf16, #tpu.memory_space<vmem>>, %arg2: memref<9x32x1xf32, #tpu.memory_space<vmem>>, %arg3: memref<2x32xbf16, #tpu.memory_space<vmem>>, %arg4: memref<9x4x32xbf16, #tpu.memory_space<vmem>>, %arg5: memref<1x32xf32, #tpu.memory_space<vmem>>, %arg6: memref<9x32x64xbf16, #tpu.memory_space<vmem>>, %arg7: memref<1x64xf32, #tpu.memory_space<vmem>>, %arg8: memref<9x64x128xbf16, #tpu.memory_space<vmem>>, %arg9: memref<1x128xf32, #tpu.memory_space<vmem>>, %arg10: memref<1152x128xbf16, #tpu.memory_space<vmem>>, %arg11: memref<1x128xf32, #tpu.memory_space<vmem>>, %arg12: memref<128x3xbf16, #tpu.memory_space<vmem>>, %arg13: memref<1x3xf32, #tpu.memory_space<vmem>>, %arg14: memref<2x32x8xbf16, #tpu.memory_space<vmem>>, %arg15: memref<1x8xf32, #tpu.memory_space<vmem>>, %arg16: memref<32x256xbf16, #tpu.memory_space<vmem>>, %arg17: memref<1x256xf32, #tpu.memory_space<vmem>>, %arg18: memref<256x1xf32, #tpu.memory_space<vmem>>, %arg19: memref<1x1xf32, #tpu.memory_space<vmem>>, %arg20: memref<2x128xf32, #tpu.memory_space<vmem>>) attributes {dimension_semantics = [#tpu.dimension_semantics<parallel>], iteration_bounds = array<i64: 1>, scalar_prefetch = 0 : i64, scratch_operands = 0 : i64, tpu.core_type = #tpu.core_type<tc>, window_params = [{transform_indices = @transform_0, window_bounds = array<i64: 32, 4>}, {pipeline_mode = #tpu.pipeline_mode<synchronous>, transform_indices = @transform_1, window_bounds = array<i64: 9, 32, 1>}, {pipeline_mode = #tpu.pipeline_mode<synchronous>, transform_indices = @transform_2, window_bounds = array<i64: 2, 32>}, {pipeline_mode = #tpu.pipeline_mode<synchronous>, transform_indices = @transform_3, window_bounds = array<i64: 9, 4, 32>}, {pipeline_mode = #tpu.pipeline_mode<synchronous>, transform_indices = @transform_4, window_bounds = array<i64: 1, 32>}, {pipeline_mode = #tpu.pipeline_mode<synchronous>, transform_indices = @transform_5, window_bounds = array<i64: 9, 32, 64>}, {pipeline_mode = #tpu.pipeline_mode<synchronous>, transform_indices = @transform_6, window_bounds = array<i64: 1, 64>}, {pipeline_mode = #tpu.pipeline_mode<synchronous>, transform_indices = @transform_7, window_bounds = array<i64: 9, 64, 128>}, {pipeline_mode = #tpu.pipeline_mode<synchronous>, transform_indices = @transform_8, window_bounds = array<i64: 1, 128>}, {pipeline_mode = #tpu.pipeline_mode<synchronous>, transform_indices = @transform_9, window_bounds = array<i64: 1152, 128>}, {pipeline_mode = #tpu.pipeline_mode<synchronous>, transform_indices = @transform_10, window_bounds = array<i64: 1, 128>}, {pipeline_mode = #tpu.pipeline_mode<synchronous>, transform_indices = @transform_11, window_bounds = array<i64: 128, 3>}, {pipeline_mode = #tpu.pipeline_mode<synchronous>, transform_indices = @transform_12, window_bounds = array<i64: 1, 3>}, {pipeline_mode = #tpu.pipeline_mode<synchronous>, transform_indices = @transform_13, window_bounds = array<i64: 2, 32, 8>}, {pipeline_mode = #tpu.pipeline_mode<synchronous>, transform_indices = @transform_14, window_bounds = array<i64: 1, 8>}, {pipeline_mode = #tpu.pipeline_mode<synchronous>, transform_indices = @transform_15, window_bounds = array<i64: 32, 256>}, {pipeline_mode = #tpu.pipeline_mode<synchronous>, transform_indices = @transform_16, window_bounds = array<i64: 1, 256>}, {pipeline_mode = #tpu.pipeline_mode<synchronous>, transform_indices = @transform_17, window_bounds = array<i64: 256, 1>}, {pipeline_mode = #tpu.pipeline_mode<synchronous>, transform_indices = @transform_18, window_bounds = array<i64: 1, 1>}, {transform_indices = @transform_19, window_bounds = array<i64: 2, 128>}]} {
    %c0 = arith.constant 0 : index
    %c0_0 = arith.constant 0 : index
    %0 = vector.load %arg1[%c0, %c0_0] : memref<32x4xbf16, #tpu.memory_space<vmem>>, vector<32x4xbf16>
    %1 = arith.extf %0 : vector<32x4xbf16> to vector<32x4xf32>
    %c5_i32 = arith.constant 5 : i32
    %2 = tpu.dynamic_rotate %1 by %c5_i32 dim 0 : vector<32x4xf32>, i32 -> vector<32x4xf32>
    %c0_1 = arith.constant 0 : index
    %c0_2 = arith.constant 0 : index
    %c0_3 = arith.constant 0 : index
    %3 = vector.load %arg2[%c0_1, %c0_2, %c0_3] : memref<9x32x1xf32, #tpu.memory_space<vmem>>, vector<1x32x1xf32>
    %4 = vector.shape_cast %3 : vector<1x32x1xf32> to vector<32x1xf32>
    %5 = vector.broadcast %4 : vector<32x1xf32> to vector<32x4xf32>
    %6 = arith.mulf %2, %5 : vector<32x4xf32>
    %7 = arith.truncf %6 : vector<32x4xf32> to vector<32x4xbf16>
    %c4_i32 = arith.constant 4 : i32
    %8 = tpu.dynamic_rotate %1 by %c4_i32 dim 0 : vector<32x4xf32>, i32 -> vector<32x4xf32>
    %c1 = arith.constant 1 : index
    %c0_4 = arith.constant 0 : index
    %c0_5 = arith.constant 0 : index
    %9 = vector.load %arg2[%c1, %c0_4, %c0_5] : memref<9x32x1xf32, #tpu.memory_space<vmem>>, vector<1x32x1xf32>
    %10 = vector.shape_cast %9 : vector<1x32x1xf32> to vector<32x1xf32>
    %11 = vector.broadcast %10 : vector<32x1xf32> to vector<32x4xf32>
    %12 = arith.mulf %8, %11 : vector<32x4xf32>
    %13 = arith.truncf %12 : vector<32x4xf32> to vector<32x4xbf16>
    %c3_i32 = arith.constant 3 : i32
    %14 = tpu.dynamic_rotate %1 by %c3_i32 dim 0 : vector<32x4xf32>, i32 -> vector<32x4xf32>
    %c2 = arith.constant 2 : index
    %c0_6 = arith.constant 0 : index
    %c0_7 = arith.constant 0 : index
    %15 = vector.load %arg2[%c2, %c0_6, %c0_7] : memref<9x32x1xf32, #tpu.memory_space<vmem>>, vector<1x32x1xf32>
    %16 = vector.shape_cast %15 : vector<1x32x1xf32> to vector<32x1xf32>
    %17 = vector.broadcast %16 : vector<32x1xf32> to vector<32x4xf32>
    %18 = arith.mulf %14, %17 : vector<32x4xf32>
    %19 = arith.truncf %18 : vector<32x4xf32> to vector<32x4xbf16>
    %c1_i32 = arith.constant 1 : i32
    %20 = tpu.dynamic_rotate %1 by %c1_i32 dim 0 : vector<32x4xf32>, i32 -> vector<32x4xf32>
    %c3 = arith.constant 3 : index
    %c0_8 = arith.constant 0 : index
    %c0_9 = arith.constant 0 : index
    %21 = vector.load %arg2[%c3, %c0_8, %c0_9] : memref<9x32x1xf32, #tpu.memory_space<vmem>>, vector<1x32x1xf32>
    %22 = vector.shape_cast %21 : vector<1x32x1xf32> to vector<32x1xf32>
    %23 = vector.broadcast %22 : vector<32x1xf32> to vector<32x4xf32>
    %24 = arith.mulf %20, %23 : vector<32x4xf32>
    %25 = arith.truncf %24 : vector<32x4xf32> to vector<32x4xbf16>
    %26 = arith.truncf %1 : vector<32x4xf32> to vector<32x4xbf16>
    %c31_i32 = arith.constant 31 : i32
    %27 = tpu.dynamic_rotate %1 by %c31_i32 dim 0 : vector<32x4xf32>, i32 -> vector<32x4xf32>
    %c5 = arith.constant 5 : index
    %c0_10 = arith.constant 0 : index
    %c0_11 = arith.constant 0 : index
    %28 = vector.load %arg2[%c5, %c0_10, %c0_11] : memref<9x32x1xf32, #tpu.memory_space<vmem>>, vector<1x32x1xf32>
    %29 = vector.shape_cast %28 : vector<1x32x1xf32> to vector<32x1xf32>
    %30 = vector.broadcast %29 : vector<32x1xf32> to vector<32x4xf32>
    %31 = arith.mulf %27, %30 : vector<32x4xf32>
    %32 = arith.truncf %31 : vector<32x4xf32> to vector<32x4xbf16>
    %c29_i32 = arith.constant 29 : i32
    %33 = tpu.dynamic_rotate %1 by %c29_i32 dim 0 : vector<32x4xf32>, i32 -> vector<32x4xf32>
    %c6 = arith.constant 6 : index
    %c0_12 = arith.constant 0 : index
    %c0_13 = arith.constant 0 : index
    %34 = vector.load %arg2[%c6, %c0_12, %c0_13] : memref<9x32x1xf32, #tpu.memory_space<vmem>>, vector<1x32x1xf32>
    %35 = vector.shape_cast %34 : vector<1x32x1xf32> to vector<32x1xf32>
    %36 = vector.broadcast %35 : vector<32x1xf32> to vector<32x4xf32>
    %37 = arith.mulf %33, %36 : vector<32x4xf32>
    %38 = arith.truncf %37 : vector<32x4xf32> to vector<32x4xbf16>
    %c28_i32 = arith.constant 28 : i32
    %39 = tpu.dynamic_rotate %1 by %c28_i32 dim 0 : vector<32x4xf32>, i32 -> vector<32x4xf32>
    %c7 = arith.constant 7 : index
    %c0_14 = arith.constant 0 : index
    %c0_15 = arith.constant 0 : index
    %40 = vector.load %arg2[%c7, %c0_14, %c0_15] : memref<9x32x1xf32, #tpu.memory_space<vmem>>, vector<1x32x1xf32>
    %41 = vector.shape_cast %40 : vector<1x32x1xf32> to vector<32x1xf32>
    %42 = vector.broadcast %41 : vector<32x1xf32> to vector<32x4xf32>
    %43 = arith.mulf %39, %42 : vector<32x4xf32>
    %44 = arith.truncf %43 : vector<32x4xf32> to vector<32x4xbf16>
    %c27_i32 = arith.constant 27 : i32
    %45 = tpu.dynamic_rotate %1 by %c27_i32 dim 0 : vector<32x4xf32>, i32 -> vector<32x4xf32>
    %c8 = arith.constant 8 : index
    %c0_16 = arith.constant 0 : index
    %c0_17 = arith.constant 0 : index
    %46 = vector.load %arg2[%c8, %c0_16, %c0_17] : memref<9x32x1xf32, #tpu.memory_space<vmem>>, vector<1x32x1xf32>
    %47 = vector.shape_cast %46 : vector<1x32x1xf32> to vector<32x1xf32>
    %48 = vector.broadcast %47 : vector<32x1xf32> to vector<32x4xf32>
    %49 = arith.mulf %45, %48 : vector<32x4xf32>
    %50 = arith.truncf %49 : vector<32x4xf32> to vector<32x4xbf16>
    %c0_18 = arith.constant 0 : index
    %c0_19 = arith.constant 0 : index
    %c0_20 = arith.constant 0 : index
    %51 = vector.load %arg4[%c0_18, %c0_19, %c0_20] : memref<9x4x32xbf16, #tpu.memory_space<vmem>>, vector<1x4x32xbf16>
    %52 = vector.shape_cast %51 : vector<1x4x32xbf16> to vector<4x32xbf16>
    %cst = arith.constant dense<0.000000e+00> : vector<32x32xf32>
    %53 = tpu.matmul %7, %52, %cst {dimension_numbers = #tpu.dot_dimension_numbers<[1], [0], [0], [1], [0, 0, 1, 1], [], []>} : vector<32x4xbf16>, vector<4x32xbf16>, vector<32x32xf32> -> vector<32x32xf32>
    %c1_21 = arith.constant 1 : index
    %c0_22 = arith.constant 0 : index
    %c0_23 = arith.constant 0 : index
    %54 = vector.load %arg4[%c1_21, %c0_22, %c0_23] : memref<9x4x32xbf16, #tpu.memory_space<vmem>>, vector<1x4x32xbf16>
    %55 = vector.shape_cast %54 : vector<1x4x32xbf16> to vector<4x32xbf16>
    %cst_24 = arith.constant dense<0.000000e+00> : vector<32x32xf32>
    %56 = tpu.matmul %13, %55, %cst_24 {dimension_numbers = #tpu.dot_dimension_numbers<[1], [0], [0], [1], [0, 0, 1, 1], [], []>} : vector<32x4xbf16>, vector<4x32xbf16>, vector<32x32xf32> -> vector<32x32xf32>
    %57 = arith.addf %53, %56 : vector<32x32xf32>
    %c2_25 = arith.constant 2 : index
    %c0_26 = arith.constant 0 : index
    %c0_27 = arith.constant 0 : index
    %58 = vector.load %arg4[%c2_25, %c0_26, %c0_27] : memref<9x4x32xbf16, #tpu.memory_space<vmem>>, vector<1x4x32xbf16>
    %59 = vector.shape_cast %58 : vector<1x4x32xbf16> to vector<4x32xbf16>
    %cst_28 = arith.constant dense<0.000000e+00> : vector<32x32xf32>
    %60 = tpu.matmul %19, %59, %cst_28 {dimension_numbers = #tpu.dot_dimension_numbers<[1], [0], [0], [1], [0, 0, 1, 1], [], []>} : vector<32x4xbf16>, vector<4x32xbf16>, vector<32x32xf32> -> vector<32x32xf32>
    %61 = arith.addf %57, %60 : vector<32x32xf32>
    %c3_29 = arith.constant 3 : index
    %c0_30 = arith.constant 0 : index
    %c0_31 = arith.constant 0 : index
    %62 = vector.load %arg4[%c3_29, %c0_30, %c0_31] : memref<9x4x32xbf16, #tpu.memory_space<vmem>>, vector<1x4x32xbf16>
    %63 = vector.shape_cast %62 : vector<1x4x32xbf16> to vector<4x32xbf16>
    %cst_32 = arith.constant dense<0.000000e+00> : vector<32x32xf32>
    %64 = tpu.matmul %25, %63, %cst_32 {dimension_numbers = #tpu.dot_dimension_numbers<[1], [0], [0], [1], [0, 0, 1, 1], [], []>} : vector<32x4xbf16>, vector<4x32xbf16>, vector<32x32xf32> -> vector<32x32xf32>
    %65 = arith.addf %61, %64 : vector<32x32xf32>
    %c4 = arith.constant 4 : index
    %c0_33 = arith.constant 0 : index
    %c0_34 = arith.constant 0 : index
    %66 = vector.load %arg4[%c4, %c0_33, %c0_34] : memref<9x4x32xbf16, #tpu.memory_space<vmem>>, vector<1x4x32xbf16>
    %67 = vector.shape_cast %66 : vector<1x4x32xbf16> to vector<4x32xbf16>
    %cst_35 = arith.constant dense<0.000000e+00> : vector<32x32xf32>
    %68 = tpu.matmul %26, %67, %cst_35 {dimension_numbers = #tpu.dot_dimension_numbers<[1], [0], [0], [1], [0, 0, 1, 1], [], []>} : vector<32x4xbf16>, vector<4x32xbf16>, vector<32x32xf32> -> vector<32x32xf32>
    %69 = arith.addf %65, %68 : vector<32x32xf32>
    %c5_36 = arith.constant 5 : index
    %c0_37 = arith.constant 0 : index
    %c0_38 = arith.constant 0 : index
    %70 = vector.load %arg4[%c5_36, %c0_37, %c0_38] : memref<9x4x32xbf16, #tpu.memory_space<vmem>>, vector<1x4x32xbf16>
    %71 = vector.shape_cast %70 : vector<1x4x32xbf16> to vector<4x32xbf16>
    %cst_39 = arith.constant dense<0.000000e+00> : vector<32x32xf32>
    %72 = tpu.matmul %32, %71, %cst_39 {dimension_numbers = #tpu.dot_dimension_numbers<[1], [0], [0], [1], [0, 0, 1, 1], [], []>} : vector<32x4xbf16>, vector<4x32xbf16>, vector<32x32xf32> -> vector<32x32xf32>
    %73 = arith.addf %69, %72 : vector<32x32xf32>
    %c6_40 = arith.constant 6 : index
    %c0_41 = arith.constant 0 : index
    %c0_42 = arith.constant 0 : index
    %74 = vector.load %arg4[%c6_40, %c0_41, %c0_42] : memref<9x4x32xbf16, #tpu.memory_space<vmem>>, vector<1x4x32xbf16>
    %75 = vector.shape_cast %74 : vector<1x4x32xbf16> to vector<4x32xbf16>
    %cst_43 = arith.constant dense<0.000000e+00> : vector<32x32xf32>
    %76 = tpu.matmul %38, %75, %cst_43 {dimension_numbers = #tpu.dot_dimension_numbers<[1], [0], [0], [1], [0, 0, 1, 1], [], []>} : vector<32x4xbf16>, vector<4x32xbf16>, vector<32x32xf32> -> vector<32x32xf32>
    %77 = arith.addf %73, %76 : vector<32x32xf32>
    %c7_44 = arith.constant 7 : index
    %c0_45 = arith.constant 0 : index
    %c0_46 = arith.constant 0 : index
    %78 = vector.load %arg4[%c7_44, %c0_45, %c0_46] : memref<9x4x32xbf16, #tpu.memory_space<vmem>>, vector<1x4x32xbf16>
    %79 = vector.shape_cast %78 : vector<1x4x32xbf16> to vector<4x32xbf16>
    %cst_47 = arith.constant dense<0.000000e+00> : vector<32x32xf32>
    %80 = tpu.matmul %44, %79, %cst_47 {dimension_numbers = #tpu.dot_dimension_numbers<[1], [0], [0], [1], [0, 0, 1, 1], [], []>} : vector<32x4xbf16>, vector<4x32xbf16>, vector<32x32xf32> -> vector<32x32xf32>
    %81 = arith.addf %77, %80 : vector<32x32xf32>
    %c8_48 = arith.constant 8 : index
    %c0_49 = arith.constant 0 : index
    %c0_50 = arith.constant 0 : index
    %82 = vector.load %arg4[%c8_48, %c0_49, %c0_50] : memref<9x4x32xbf16, #tpu.memory_space<vmem>>, vector<1x4x32xbf16>
    %83 = vector.shape_cast %82 : vector<1x4x32xbf16> to vector<4x32xbf16>
    %cst_51 = arith.constant dense<0.000000e+00> : vector<32x32xf32>
    %84 = tpu.matmul %50, %83, %cst_51 {dimension_numbers = #tpu.dot_dimension_numbers<[1], [0], [0], [1], [0, 0, 1, 1], [], []>} : vector<32x4xbf16>, vector<4x32xbf16>, vector<32x32xf32> -> vector<32x32xf32>
    %85 = arith.addf %81, %84 : vector<32x32xf32>
    %c0_52 = arith.constant 0 : index
    %c0_53 = arith.constant 0 : index
    %86 = vector.load %arg5[%c0_52, %c0_53] : memref<1x32xf32, #tpu.memory_space<vmem>>, vector<1x32xf32>
    %87 = vector.broadcast %86 : vector<1x32xf32> to vector<32x32xf32>
    %88 = arith.addf %85, %87 : vector<32x32xf32>
    %cst_54 = arith.constant 0.000000e+00 : f32
    %89 = vector.broadcast %cst_54 : f32 to vector<32x32xf32>
    %90 = arith.maximumf %88, %89 : vector<32x32xf32>
    %c5_i32_55 = arith.constant 5 : i32
    %91 = tpu.dynamic_rotate %90 by %c5_i32_55 dim 0 : vector<32x32xf32>, i32 -> vector<32x32xf32>
    %c0_56 = arith.constant 0 : index
    %c0_57 = arith.constant 0 : index
    %c0_58 = arith.constant 0 : index
    %92 = vector.load %arg2[%c0_56, %c0_57, %c0_58] : memref<9x32x1xf32, #tpu.memory_space<vmem>>, vector<1x32x1xf32>
    %93 = vector.shape_cast %92 : vector<1x32x1xf32> to vector<32x1xf32>
    %94 = vector.broadcast %93 : vector<32x1xf32> to vector<32x32xf32>
    %95 = arith.mulf %91, %94 : vector<32x32xf32>
    %96 = arith.truncf %95 : vector<32x32xf32> to vector<32x32xbf16>
    %c4_i32_59 = arith.constant 4 : i32
    %97 = tpu.dynamic_rotate %90 by %c4_i32_59 dim 0 : vector<32x32xf32>, i32 -> vector<32x32xf32>
    %c1_60 = arith.constant 1 : index
    %c0_61 = arith.constant 0 : index
    %c0_62 = arith.constant 0 : index
    %98 = vector.load %arg2[%c1_60, %c0_61, %c0_62] : memref<9x32x1xf32, #tpu.memory_space<vmem>>, vector<1x32x1xf32>
    %99 = vector.shape_cast %98 : vector<1x32x1xf32> to vector<32x1xf32>
    %100 = vector.broadcast %99 : vector<32x1xf32> to vector<32x32xf32>
    %101 = arith.mulf %97, %100 : vector<32x32xf32>
    %102 = arith.truncf %101 : vector<32x32xf32> to vector<32x32xbf16>
    %c3_i32_63 = arith.constant 3 : i32
    %103 = tpu.dynamic_rotate %90 by %c3_i32_63 dim 0 : vector<32x32xf32>, i32 -> vector<32x32xf32>
    %c2_64 = arith.constant 2 : index
    %c0_65 = arith.constant 0 : index
    %c0_66 = arith.constant 0 : index
    %104 = vector.load %arg2[%c2_64, %c0_65, %c0_66] : memref<9x32x1xf32, #tpu.memory_space<vmem>>, vector<1x32x1xf32>
    %105 = vector.shape_cast %104 : vector<1x32x1xf32> to vector<32x1xf32>
    %106 = vector.broadcast %105 : vector<32x1xf32> to vector<32x32xf32>
    %107 = arith.mulf %103, %106 : vector<32x32xf32>
    %108 = arith.truncf %107 : vector<32x32xf32> to vector<32x32xbf16>
    %c1_i32_67 = arith.constant 1 : i32
    %109 = tpu.dynamic_rotate %90 by %c1_i32_67 dim 0 : vector<32x32xf32>, i32 -> vector<32x32xf32>
    %c3_68 = arith.constant 3 : index
    %c0_69 = arith.constant 0 : index
    %c0_70 = arith.constant 0 : index
    %110 = vector.load %arg2[%c3_68, %c0_69, %c0_70] : memref<9x32x1xf32, #tpu.memory_space<vmem>>, vector<1x32x1xf32>
    %111 = vector.shape_cast %110 : vector<1x32x1xf32> to vector<32x1xf32>
    %112 = vector.broadcast %111 : vector<32x1xf32> to vector<32x32xf32>
    %113 = arith.mulf %109, %112 : vector<32x32xf32>
    %114 = arith.truncf %113 : vector<32x32xf32> to vector<32x32xbf16>
    %115 = arith.truncf %90 : vector<32x32xf32> to vector<32x32xbf16>
    %c31_i32_71 = arith.constant 31 : i32
    %116 = tpu.dynamic_rotate %90 by %c31_i32_71 dim 0 : vector<32x32xf32>, i32 -> vector<32x32xf32>
    %c5_72 = arith.constant 5 : index
    %c0_73 = arith.constant 0 : index
    %c0_74 = arith.constant 0 : index
    %117 = vector.load %arg2[%c5_72, %c0_73, %c0_74] : memref<9x32x1xf32, #tpu.memory_space<vmem>>, vector<1x32x1xf32>
    %118 = vector.shape_cast %117 : vector<1x32x1xf32> to vector<32x1xf32>
    %119 = vector.broadcast %118 : vector<32x1xf32> to vector<32x32xf32>
    %120 = arith.mulf %116, %119 : vector<32x32xf32>
    %121 = arith.truncf %120 : vector<32x32xf32> to vector<32x32xbf16>
    %c29_i32_75 = arith.constant 29 : i32
    %122 = tpu.dynamic_rotate %90 by %c29_i32_75 dim 0 : vector<32x32xf32>, i32 -> vector<32x32xf32>
    %c6_76 = arith.constant 6 : index
    %c0_77 = arith.constant 0 : index
    %c0_78 = arith.constant 0 : index
    %123 = vector.load %arg2[%c6_76, %c0_77, %c0_78] : memref<9x32x1xf32, #tpu.memory_space<vmem>>, vector<1x32x1xf32>
    %124 = vector.shape_cast %123 : vector<1x32x1xf32> to vector<32x1xf32>
    %125 = vector.broadcast %124 : vector<32x1xf32> to vector<32x32xf32>
    %126 = arith.mulf %122, %125 : vector<32x32xf32>
    %127 = arith.truncf %126 : vector<32x32xf32> to vector<32x32xbf16>
    %c28_i32_79 = arith.constant 28 : i32
    %128 = tpu.dynamic_rotate %90 by %c28_i32_79 dim 0 : vector<32x32xf32>, i32 -> vector<32x32xf32>
    %c7_80 = arith.constant 7 : index
    %c0_81 = arith.constant 0 : index
    %c0_82 = arith.constant 0 : index
    %129 = vector.load %arg2[%c7_80, %c0_81, %c0_82] : memref<9x32x1xf32, #tpu.memory_space<vmem>>, vector<1x32x1xf32>
    %130 = vector.shape_cast %129 : vector<1x32x1xf32> to vector<32x1xf32>
    %131 = vector.broadcast %130 : vector<32x1xf32> to vector<32x32xf32>
    %132 = arith.mulf %128, %131 : vector<32x32xf32>
    %133 = arith.truncf %132 : vector<32x32xf32> to vector<32x32xbf16>
    %c27_i32_83 = arith.constant 27 : i32
    %134 = tpu.dynamic_rotate %90 by %c27_i32_83 dim 0 : vector<32x32xf32>, i32 -> vector<32x32xf32>
    %c8_84 = arith.constant 8 : index
    %c0_85 = arith.constant 0 : index
    %c0_86 = arith.constant 0 : index
    %135 = vector.load %arg2[%c8_84, %c0_85, %c0_86] : memref<9x32x1xf32, #tpu.memory_space<vmem>>, vector<1x32x1xf32>
    %136 = vector.shape_cast %135 : vector<1x32x1xf32> to vector<32x1xf32>
    %137 = vector.broadcast %136 : vector<32x1xf32> to vector<32x32xf32>
    %138 = arith.mulf %134, %137 : vector<32x32xf32>
    %139 = arith.truncf %138 : vector<32x32xf32> to vector<32x32xbf16>
    %c0_87 = arith.constant 0 : index
    %c0_88 = arith.constant 0 : index
    %c0_89 = arith.constant 0 : index
    %140 = vector.load %arg6[%c0_87, %c0_88, %c0_89] : memref<9x32x64xbf16, #tpu.memory_space<vmem>>, vector<1x32x64xbf16>
    %141 = vector.shape_cast %140 : vector<1x32x64xbf16> to vector<32x64xbf16>
    %cst_90 = arith.constant dense<0.000000e+00> : vector<32x64xf32>
    %142 = tpu.matmul %96, %141, %cst_90 {dimension_numbers = #tpu.dot_dimension_numbers<[1], [0], [0], [1], [0, 0, 1, 1], [], []>} : vector<32x32xbf16>, vector<32x64xbf16>, vector<32x64xf32> -> vector<32x64xf32>
    %c1_91 = arith.constant 1 : index
    %c0_92 = arith.constant 0 : index
    %c0_93 = arith.constant 0 : index
    %143 = vector.load %arg6[%c1_91, %c0_92, %c0_93] : memref<9x32x64xbf16, #tpu.memory_space<vmem>>, vector<1x32x64xbf16>
    %144 = vector.shape_cast %143 : vector<1x32x64xbf16> to vector<32x64xbf16>
    %cst_94 = arith.constant dense<0.000000e+00> : vector<32x64xf32>
    %145 = tpu.matmul %102, %144, %cst_94 {dimension_numbers = #tpu.dot_dimension_numbers<[1], [0], [0], [1], [0, 0, 1, 1], [], []>} : vector<32x32xbf16>, vector<32x64xbf16>, vector<32x64xf32> -> vector<32x64xf32>
    %146 = arith.addf %142, %145 : vector<32x64xf32>
    %c2_95 = arith.constant 2 : index
    %c0_96 = arith.constant 0 : index
    %c0_97 = arith.constant 0 : index
    %147 = vector.load %arg6[%c2_95, %c0_96, %c0_97] : memref<9x32x64xbf16, #tpu.memory_space<vmem>>, vector<1x32x64xbf16>
    %148 = vector.shape_cast %147 : vector<1x32x64xbf16> to vector<32x64xbf16>
    %cst_98 = arith.constant dense<0.000000e+00> : vector<32x64xf32>
    %149 = tpu.matmul %108, %148, %cst_98 {dimension_numbers = #tpu.dot_dimension_numbers<[1], [0], [0], [1], [0, 0, 1, 1], [], []>} : vector<32x32xbf16>, vector<32x64xbf16>, vector<32x64xf32> -> vector<32x64xf32>
    %150 = arith.addf %146, %149 : vector<32x64xf32>
    %c3_99 = arith.constant 3 : index
    %c0_100 = arith.constant 0 : index
    %c0_101 = arith.constant 0 : index
    %151 = vector.load %arg6[%c3_99, %c0_100, %c0_101] : memref<9x32x64xbf16, #tpu.memory_space<vmem>>, vector<1x32x64xbf16>
    %152 = vector.shape_cast %151 : vector<1x32x64xbf16> to vector<32x64xbf16>
    %cst_102 = arith.constant dense<0.000000e+00> : vector<32x64xf32>
    %153 = tpu.matmul %114, %152, %cst_102 {dimension_numbers = #tpu.dot_dimension_numbers<[1], [0], [0], [1], [0, 0, 1, 1], [], []>} : vector<32x32xbf16>, vector<32x64xbf16>, vector<32x64xf32> -> vector<32x64xf32>
    %154 = arith.addf %150, %153 : vector<32x64xf32>
    %c4_103 = arith.constant 4 : index
    %c0_104 = arith.constant 0 : index
    %c0_105 = arith.constant 0 : index
    %155 = vector.load %arg6[%c4_103, %c0_104, %c0_105] : memref<9x32x64xbf16, #tpu.memory_space<vmem>>, vector<1x32x64xbf16>
    %156 = vector.shape_cast %155 : vector<1x32x64xbf16> to vector<32x64xbf16>
    %cst_106 = arith.constant dense<0.000000e+00> : vector<32x64xf32>
    %157 = tpu.matmul %115, %156, %cst_106 {dimension_numbers = #tpu.dot_dimension_numbers<[1], [0], [0], [1], [0, 0, 1, 1], [], []>} : vector<32x32xbf16>, vector<32x64xbf16>, vector<32x64xf32> -> vector<32x64xf32>
    %158 = arith.addf %154, %157 : vector<32x64xf32>
    %c5_107 = arith.constant 5 : index
    %c0_108 = arith.constant 0 : index
    %c0_109 = arith.constant 0 : index
    %159 = vector.load %arg6[%c5_107, %c0_108, %c0_109] : memref<9x32x64xbf16, #tpu.memory_space<vmem>>, vector<1x32x64xbf16>
    %160 = vector.shape_cast %159 : vector<1x32x64xbf16> to vector<32x64xbf16>
    %cst_110 = arith.constant dense<0.000000e+00> : vector<32x64xf32>
    %161 = tpu.matmul %121, %160, %cst_110 {dimension_numbers = #tpu.dot_dimension_numbers<[1], [0], [0], [1], [0, 0, 1, 1], [], []>} : vector<32x32xbf16>, vector<32x64xbf16>, vector<32x64xf32> -> vector<32x64xf32>
    %162 = arith.addf %158, %161 : vector<32x64xf32>
    %c6_111 = arith.constant 6 : index
    %c0_112 = arith.constant 0 : index
    %c0_113 = arith.constant 0 : index
    %163 = vector.load %arg6[%c6_111, %c0_112, %c0_113] : memref<9x32x64xbf16, #tpu.memory_space<vmem>>, vector<1x32x64xbf16>
    %164 = vector.shape_cast %163 : vector<1x32x64xbf16> to vector<32x64xbf16>
    %cst_114 = arith.constant dense<0.000000e+00> : vector<32x64xf32>
    %165 = tpu.matmul %127, %164, %cst_114 {dimension_numbers = #tpu.dot_dimension_numbers<[1], [0], [0], [1], [0, 0, 1, 1], [], []>} : vector<32x32xbf16>, vector<32x64xbf16>, vector<32x64xf32> -> vector<32x64xf32>
    %166 = arith.addf %162, %165 : vector<32x64xf32>
    %c7_115 = arith.constant 7 : index
    %c0_116 = arith.constant 0 : index
    %c0_117 = arith.constant 0 : index
    %167 = vector.load %arg6[%c7_115, %c0_116, %c0_117] : memref<9x32x64xbf16, #tpu.memory_space<vmem>>, vector<1x32x64xbf16>
    %168 = vector.shape_cast %167 : vector<1x32x64xbf16> to vector<32x64xbf16>
    %cst_118 = arith.constant dense<0.000000e+00> : vector<32x64xf32>
    %169 = tpu.matmul %133, %168, %cst_118 {dimension_numbers = #tpu.dot_dimension_numbers<[1], [0], [0], [1], [0, 0, 1, 1], [], []>} : vector<32x32xbf16>, vector<32x64xbf16>, vector<32x64xf32> -> vector<32x64xf32>
    %170 = arith.addf %166, %169 : vector<32x64xf32>
    %c8_119 = arith.constant 8 : index
    %c0_120 = arith.constant 0 : index
    %c0_121 = arith.constant 0 : index
    %171 = vector.load %arg6[%c8_119, %c0_120, %c0_121] : memref<9x32x64xbf16, #tpu.memory_space<vmem>>, vector<1x32x64xbf16>
    %172 = vector.shape_cast %171 : vector<1x32x64xbf16> to vector<32x64xbf16>
    %cst_122 = arith.constant dense<0.000000e+00> : vector<32x64xf32>
    %173 = tpu.matmul %139, %172, %cst_122 {dimension_numbers = #tpu.dot_dimension_numbers<[1], [0], [0], [1], [0, 0, 1, 1], [], []>} : vector<32x32xbf16>, vector<32x64xbf16>, vector<32x64xf32> -> vector<32x64xf32>
    %174 = arith.addf %170, %173 : vector<32x64xf32>
    %c0_123 = arith.constant 0 : index
    %c0_124 = arith.constant 0 : index
    %175 = vector.load %arg7[%c0_123, %c0_124] : memref<1x64xf32, #tpu.memory_space<vmem>>, vector<1x64xf32>
    %176 = vector.broadcast %175 : vector<1x64xf32> to vector<32x64xf32>
    %177 = arith.addf %174, %176 : vector<32x64xf32>
    %cst_125 = arith.constant 0.000000e+00 : f32
    %178 = vector.broadcast %cst_125 : f32 to vector<32x64xf32>
    %179 = arith.maximumf %177, %178 : vector<32x64xf32>
    %c5_i32_126 = arith.constant 5 : i32
    %180 = tpu.dynamic_rotate %179 by %c5_i32_126 dim 0 : vector<32x64xf32>, i32 -> vector<32x64xf32>
    %c0_127 = arith.constant 0 : index
    %c0_128 = arith.constant 0 : index
    %c0_129 = arith.constant 0 : index
    %181 = vector.load %arg2[%c0_127, %c0_128, %c0_129] : memref<9x32x1xf32, #tpu.memory_space<vmem>>, vector<1x32x1xf32>
    %182 = vector.shape_cast %181 : vector<1x32x1xf32> to vector<32x1xf32>
    %183 = vector.broadcast %182 : vector<32x1xf32> to vector<32x64xf32>
    %184 = arith.mulf %180, %183 : vector<32x64xf32>
    %185 = arith.truncf %184 : vector<32x64xf32> to vector<32x64xbf16>
    %c4_i32_130 = arith.constant 4 : i32
    %186 = tpu.dynamic_rotate %179 by %c4_i32_130 dim 0 : vector<32x64xf32>, i32 -> vector<32x64xf32>
    %c1_131 = arith.constant 1 : index
    %c0_132 = arith.constant 0 : index
    %c0_133 = arith.constant 0 : index
    %187 = vector.load %arg2[%c1_131, %c0_132, %c0_133] : memref<9x32x1xf32, #tpu.memory_space<vmem>>, vector<1x32x1xf32>
    %188 = vector.shape_cast %187 : vector<1x32x1xf32> to vector<32x1xf32>
    %189 = vector.broadcast %188 : vector<32x1xf32> to vector<32x64xf32>
    %190 = arith.mulf %186, %189 : vector<32x64xf32>
    %191 = arith.truncf %190 : vector<32x64xf32> to vector<32x64xbf16>
    %c3_i32_134 = arith.constant 3 : i32
    %192 = tpu.dynamic_rotate %179 by %c3_i32_134 dim 0 : vector<32x64xf32>, i32 -> vector<32x64xf32>
    %c2_135 = arith.constant 2 : index
    %c0_136 = arith.constant 0 : index
    %c0_137 = arith.constant 0 : index
    %193 = vector.load %arg2[%c2_135, %c0_136, %c0_137] : memref<9x32x1xf32, #tpu.memory_space<vmem>>, vector<1x32x1xf32>
    %194 = vector.shape_cast %193 : vector<1x32x1xf32> to vector<32x1xf32>
    %195 = vector.broadcast %194 : vector<32x1xf32> to vector<32x64xf32>
    %196 = arith.mulf %192, %195 : vector<32x64xf32>
    %197 = arith.truncf %196 : vector<32x64xf32> to vector<32x64xbf16>
    %c1_i32_138 = arith.constant 1 : i32
    %198 = tpu.dynamic_rotate %179 by %c1_i32_138 dim 0 : vector<32x64xf32>, i32 -> vector<32x64xf32>
    %c3_139 = arith.constant 3 : index
    %c0_140 = arith.constant 0 : index
    %c0_141 = arith.constant 0 : index
    %199 = vector.load %arg2[%c3_139, %c0_140, %c0_141] : memref<9x32x1xf32, #tpu.memory_space<vmem>>, vector<1x32x1xf32>
    %200 = vector.shape_cast %199 : vector<1x32x1xf32> to vector<32x1xf32>
    %201 = vector.broadcast %200 : vector<32x1xf32> to vector<32x64xf32>
    %202 = arith.mulf %198, %201 : vector<32x64xf32>
    %203 = arith.truncf %202 : vector<32x64xf32> to vector<32x64xbf16>
    %204 = arith.truncf %179 : vector<32x64xf32> to vector<32x64xbf16>
    %c31_i32_142 = arith.constant 31 : i32
    %205 = tpu.dynamic_rotate %179 by %c31_i32_142 dim 0 : vector<32x64xf32>, i32 -> vector<32x64xf32>
    %c5_143 = arith.constant 5 : index
    %c0_144 = arith.constant 0 : index
    %c0_145 = arith.constant 0 : index
    %206 = vector.load %arg2[%c5_143, %c0_144, %c0_145] : memref<9x32x1xf32, #tpu.memory_space<vmem>>, vector<1x32x1xf32>
    %207 = vector.shape_cast %206 : vector<1x32x1xf32> to vector<32x1xf32>
    %208 = vector.broadcast %207 : vector<32x1xf32> to vector<32x64xf32>
    %209 = arith.mulf %205, %208 : vector<32x64xf32>
    %210 = arith.truncf %209 : vector<32x64xf32> to vector<32x64xbf16>
    %c29_i32_146 = arith.constant 29 : i32
    %211 = tpu.dynamic_rotate %179 by %c29_i32_146 dim 0 : vector<32x64xf32>, i32 -> vector<32x64xf32>
    %c6_147 = arith.constant 6 : index
    %c0_148 = arith.constant 0 : index
    %c0_149 = arith.constant 0 : index
    %212 = vector.load %arg2[%c6_147, %c0_148, %c0_149] : memref<9x32x1xf32, #tpu.memory_space<vmem>>, vector<1x32x1xf32>
    %213 = vector.shape_cast %212 : vector<1x32x1xf32> to vector<32x1xf32>
    %214 = vector.broadcast %213 : vector<32x1xf32> to vector<32x64xf32>
    %215 = arith.mulf %211, %214 : vector<32x64xf32>
    %216 = arith.truncf %215 : vector<32x64xf32> to vector<32x64xbf16>
    %c28_i32_150 = arith.constant 28 : i32
    %217 = tpu.dynamic_rotate %179 by %c28_i32_150 dim 0 : vector<32x64xf32>, i32 -> vector<32x64xf32>
    %c7_151 = arith.constant 7 : index
    %c0_152 = arith.constant 0 : index
    %c0_153 = arith.constant 0 : index
    %218 = vector.load %arg2[%c7_151, %c0_152, %c0_153] : memref<9x32x1xf32, #tpu.memory_space<vmem>>, vector<1x32x1xf32>
    %219 = vector.shape_cast %218 : vector<1x32x1xf32> to vector<32x1xf32>
    %220 = vector.broadcast %219 : vector<32x1xf32> to vector<32x64xf32>
    %221 = arith.mulf %217, %220 : vector<32x64xf32>
    %222 = arith.truncf %221 : vector<32x64xf32> to vector<32x64xbf16>
    %c27_i32_154 = arith.constant 27 : i32
    %223 = tpu.dynamic_rotate %179 by %c27_i32_154 dim 0 : vector<32x64xf32>, i32 -> vector<32x64xf32>
    %c8_155 = arith.constant 8 : index
    %c0_156 = arith.constant 0 : index
    %c0_157 = arith.constant 0 : index
    %224 = vector.load %arg2[%c8_155, %c0_156, %c0_157] : memref<9x32x1xf32, #tpu.memory_space<vmem>>, vector<1x32x1xf32>
    %225 = vector.shape_cast %224 : vector<1x32x1xf32> to vector<32x1xf32>
    %226 = vector.broadcast %225 : vector<32x1xf32> to vector<32x64xf32>
    %227 = arith.mulf %223, %226 : vector<32x64xf32>
    %228 = arith.truncf %227 : vector<32x64xf32> to vector<32x64xbf16>
    %c0_158 = arith.constant 0 : index
    %c0_159 = arith.constant 0 : index
    %c0_160 = arith.constant 0 : index
    %229 = vector.load %arg8[%c0_158, %c0_159, %c0_160] : memref<9x64x128xbf16, #tpu.memory_space<vmem>>, vector<1x64x128xbf16>
    %230 = vector.shape_cast %229 : vector<1x64x128xbf16> to vector<64x128xbf16>
    %cst_161 = arith.constant dense<0.000000e+00> : vector<32x128xf32>
    %231 = tpu.matmul %185, %230, %cst_161 {dimension_numbers = #tpu.dot_dimension_numbers<[1], [0], [0], [1], [0, 0, 1, 1], [], []>} : vector<32x64xbf16>, vector<64x128xbf16>, vector<32x128xf32> -> vector<32x128xf32>
    %c1_162 = arith.constant 1 : index
    %c0_163 = arith.constant 0 : index
    %c0_164 = arith.constant 0 : index
    %232 = vector.load %arg8[%c1_162, %c0_163, %c0_164] : memref<9x64x128xbf16, #tpu.memory_space<vmem>>, vector<1x64x128xbf16>
    %233 = vector.shape_cast %232 : vector<1x64x128xbf16> to vector<64x128xbf16>
    %cst_165 = arith.constant dense<0.000000e+00> : vector<32x128xf32>
    %234 = tpu.matmul %191, %233, %cst_165 {dimension_numbers = #tpu.dot_dimension_numbers<[1], [0], [0], [1], [0, 0, 1, 1], [], []>} : vector<32x64xbf16>, vector<64x128xbf16>, vector<32x128xf32> -> vector<32x128xf32>
    %235 = arith.addf %231, %234 : vector<32x128xf32>
    %c2_166 = arith.constant 2 : index
    %c0_167 = arith.constant 0 : index
    %c0_168 = arith.constant 0 : index
    %236 = vector.load %arg8[%c2_166, %c0_167, %c0_168] : memref<9x64x128xbf16, #tpu.memory_space<vmem>>, vector<1x64x128xbf16>
    %237 = vector.shape_cast %236 : vector<1x64x128xbf16> to vector<64x128xbf16>
    %cst_169 = arith.constant dense<0.000000e+00> : vector<32x128xf32>
    %238 = tpu.matmul %197, %237, %cst_169 {dimension_numbers = #tpu.dot_dimension_numbers<[1], [0], [0], [1], [0, 0, 1, 1], [], []>} : vector<32x64xbf16>, vector<64x128xbf16>, vector<32x128xf32> -> vector<32x128xf32>
    %239 = arith.addf %235, %238 : vector<32x128xf32>
    %c3_170 = arith.constant 3 : index
    %c0_171 = arith.constant 0 : index
    %c0_172 = arith.constant 0 : index
    %240 = vector.load %arg8[%c3_170, %c0_171, %c0_172] : memref<9x64x128xbf16, #tpu.memory_space<vmem>>, vector<1x64x128xbf16>
    %241 = vector.shape_cast %240 : vector<1x64x128xbf16> to vector<64x128xbf16>
    %cst_173 = arith.constant dense<0.000000e+00> : vector<32x128xf32>
    %242 = tpu.matmul %203, %241, %cst_173 {dimension_numbers = #tpu.dot_dimension_numbers<[1], [0], [0], [1], [0, 0, 1, 1], [], []>} : vector<32x64xbf16>, vector<64x128xbf16>, vector<32x128xf32> -> vector<32x128xf32>
    %243 = arith.addf %239, %242 : vector<32x128xf32>
    %c4_174 = arith.constant 4 : index
    %c0_175 = arith.constant 0 : index
    %c0_176 = arith.constant 0 : index
    %244 = vector.load %arg8[%c4_174, %c0_175, %c0_176] : memref<9x64x128xbf16, #tpu.memory_space<vmem>>, vector<1x64x128xbf16>
    %245 = vector.shape_cast %244 : vector<1x64x128xbf16> to vector<64x128xbf16>
    %cst_177 = arith.constant dense<0.000000e+00> : vector<32x128xf32>
    %246 = tpu.matmul %204, %245, %cst_177 {dimension_numbers = #tpu.dot_dimension_numbers<[1], [0], [0], [1], [0, 0, 1, 1], [], []>} : vector<32x64xbf16>, vector<64x128xbf16>, vector<32x128xf32> -> vector<32x128xf32>
    %247 = arith.addf %243, %246 : vector<32x128xf32>
    %c5_178 = arith.constant 5 : index
    %c0_179 = arith.constant 0 : index
    %c0_180 = arith.constant 0 : index
    %248 = vector.load %arg8[%c5_178, %c0_179, %c0_180] : memref<9x64x128xbf16, #tpu.memory_space<vmem>>, vector<1x64x128xbf16>
    %249 = vector.shape_cast %248 : vector<1x64x128xbf16> to vector<64x128xbf16>
    %cst_181 = arith.constant dense<0.000000e+00> : vector<32x128xf32>
    %250 = tpu.matmul %210, %249, %cst_181 {dimension_numbers = #tpu.dot_dimension_numbers<[1], [0], [0], [1], [0, 0, 1, 1], [], []>} : vector<32x64xbf16>, vector<64x128xbf16>, vector<32x128xf32> -> vector<32x128xf32>
    %251 = arith.addf %247, %250 : vector<32x128xf32>
    %c6_182 = arith.constant 6 : index
    %c0_183 = arith.constant 0 : index
    %c0_184 = arith.constant 0 : index
    %252 = vector.load %arg8[%c6_182, %c0_183, %c0_184] : memref<9x64x128xbf16, #tpu.memory_space<vmem>>, vector<1x64x128xbf16>
    %253 = vector.shape_cast %252 : vector<1x64x128xbf16> to vector<64x128xbf16>
    %cst_185 = arith.constant dense<0.000000e+00> : vector<32x128xf32>
    %254 = tpu.matmul %216, %253, %cst_185 {dimension_numbers = #tpu.dot_dimension_numbers<[1], [0], [0], [1], [0, 0, 1, 1], [], []>} : vector<32x64xbf16>, vector<64x128xbf16>, vector<32x128xf32> -> vector<32x128xf32>
    %255 = arith.addf %251, %254 : vector<32x128xf32>
    %c7_186 = arith.constant 7 : index
    %c0_187 = arith.constant 0 : index
    %c0_188 = arith.constant 0 : index
    %256 = vector.load %arg8[%c7_186, %c0_187, %c0_188] : memref<9x64x128xbf16, #tpu.memory_space<vmem>>, vector<1x64x128xbf16>
    %257 = vector.shape_cast %256 : vector<1x64x128xbf16> to vector<64x128xbf16>
    %cst_189 = arith.constant dense<0.000000e+00> : vector<32x128xf32>
    %258 = tpu.matmul %222, %257, %cst_189 {dimension_numbers = #tpu.dot_dimension_numbers<[1], [0], [0], [1], [0, 0, 1, 1], [], []>} : vector<32x64xbf16>, vector<64x128xbf16>, vector<32x128xf32> -> vector<32x128xf32>
    %259 = arith.addf %255, %258 : vector<32x128xf32>
    %c8_190 = arith.constant 8 : index
    %c0_191 = arith.constant 0 : index
    %c0_192 = arith.constant 0 : index
    %260 = vector.load %arg8[%c8_190, %c0_191, %c0_192] : memref<9x64x128xbf16, #tpu.memory_space<vmem>>, vector<1x64x128xbf16>
    %261 = vector.shape_cast %260 : vector<1x64x128xbf16> to vector<64x128xbf16>
    %cst_193 = arith.constant dense<0.000000e+00> : vector<32x128xf32>
    %262 = tpu.matmul %228, %261, %cst_193 {dimension_numbers = #tpu.dot_dimension_numbers<[1], [0], [0], [1], [0, 0, 1, 1], [], []>} : vector<32x64xbf16>, vector<64x128xbf16>, vector<32x128xf32> -> vector<32x128xf32>
    %263 = arith.addf %259, %262 : vector<32x128xf32>
    %c0_194 = arith.constant 0 : index
    %c0_195 = arith.constant 0 : index
    %264 = vector.load %arg9[%c0_194, %c0_195] : memref<1x128xf32, #tpu.memory_space<vmem>>, vector<1x128xf32>
    %265 = vector.broadcast %264 : vector<1x128xf32> to vector<32x128xf32>
    %266 = arith.addf %263, %265 : vector<32x128xf32>
    %cst_196 = arith.constant 0.000000e+00 : f32
    %267 = vector.broadcast %cst_196 : f32 to vector<32x128xf32>
    %268 = arith.maximumf %266, %267 : vector<32x128xf32>
    %c5_i32_197 = arith.constant 5 : i32
    %269 = tpu.dynamic_rotate %268 by %c5_i32_197 dim 0 : vector<32x128xf32>, i32 -> vector<32x128xf32>
    %c0_198 = arith.constant 0 : index
    %c0_199 = arith.constant 0 : index
    %c0_200 = arith.constant 0 : index
    %270 = vector.load %arg2[%c0_198, %c0_199, %c0_200] : memref<9x32x1xf32, #tpu.memory_space<vmem>>, vector<1x32x1xf32>
    %271 = vector.shape_cast %270 : vector<1x32x1xf32> to vector<32x1xf32>
    %272 = vector.broadcast %271 : vector<32x1xf32> to vector<32x128xf32>
    %273 = arith.mulf %269, %272 : vector<32x128xf32>
    %274 = arith.truncf %273 : vector<32x128xf32> to vector<32x128xbf16>
    %c4_i32_201 = arith.constant 4 : i32
    %275 = tpu.dynamic_rotate %268 by %c4_i32_201 dim 0 : vector<32x128xf32>, i32 -> vector<32x128xf32>
    %c1_202 = arith.constant 1 : index
    %c0_203 = arith.constant 0 : index
    %c0_204 = arith.constant 0 : index
    %276 = vector.load %arg2[%c1_202, %c0_203, %c0_204] : memref<9x32x1xf32, #tpu.memory_space<vmem>>, vector<1x32x1xf32>
    %277 = vector.shape_cast %276 : vector<1x32x1xf32> to vector<32x1xf32>
    %278 = vector.broadcast %277 : vector<32x1xf32> to vector<32x128xf32>
    %279 = arith.mulf %275, %278 : vector<32x128xf32>
    %280 = arith.truncf %279 : vector<32x128xf32> to vector<32x128xbf16>
    %c3_i32_205 = arith.constant 3 : i32
    %281 = tpu.dynamic_rotate %268 by %c3_i32_205 dim 0 : vector<32x128xf32>, i32 -> vector<32x128xf32>
    %c2_206 = arith.constant 2 : index
    %c0_207 = arith.constant 0 : index
    %c0_208 = arith.constant 0 : index
    %282 = vector.load %arg2[%c2_206, %c0_207, %c0_208] : memref<9x32x1xf32, #tpu.memory_space<vmem>>, vector<1x32x1xf32>
    %283 = vector.shape_cast %282 : vector<1x32x1xf32> to vector<32x1xf32>
    %284 = vector.broadcast %283 : vector<32x1xf32> to vector<32x128xf32>
    %285 = arith.mulf %281, %284 : vector<32x128xf32>
    %286 = arith.truncf %285 : vector<32x128xf32> to vector<32x128xbf16>
    %c1_i32_209 = arith.constant 1 : i32
    %287 = tpu.dynamic_rotate %268 by %c1_i32_209 dim 0 : vector<32x128xf32>, i32 -> vector<32x128xf32>
    %c3_210 = arith.constant 3 : index
    %c0_211 = arith.constant 0 : index
    %c0_212 = arith.constant 0 : index
    %288 = vector.load %arg2[%c3_210, %c0_211, %c0_212] : memref<9x32x1xf32, #tpu.memory_space<vmem>>, vector<1x32x1xf32>
    %289 = vector.shape_cast %288 : vector<1x32x1xf32> to vector<32x1xf32>
    %290 = vector.broadcast %289 : vector<32x1xf32> to vector<32x128xf32>
    %291 = arith.mulf %287, %290 : vector<32x128xf32>
    %292 = arith.truncf %291 : vector<32x128xf32> to vector<32x128xbf16>
    %293 = arith.truncf %268 : vector<32x128xf32> to vector<32x128xbf16>
    %c31_i32_213 = arith.constant 31 : i32
    %294 = tpu.dynamic_rotate %268 by %c31_i32_213 dim 0 : vector<32x128xf32>, i32 -> vector<32x128xf32>
    %c5_214 = arith.constant 5 : index
    %c0_215 = arith.constant 0 : index
    %c0_216 = arith.constant 0 : index
    %295 = vector.load %arg2[%c5_214, %c0_215, %c0_216] : memref<9x32x1xf32, #tpu.memory_space<vmem>>, vector<1x32x1xf32>
    %296 = vector.shape_cast %295 : vector<1x32x1xf32> to vector<32x1xf32>
    %297 = vector.broadcast %296 : vector<32x1xf32> to vector<32x128xf32>
    %298 = arith.mulf %294, %297 : vector<32x128xf32>
    %299 = arith.truncf %298 : vector<32x128xf32> to vector<32x128xbf16>
    %c29_i32_217 = arith.constant 29 : i32
    %300 = tpu.dynamic_rotate %268 by %c29_i32_217 dim 0 : vector<32x128xf32>, i32 -> vector<32x128xf32>
    %c6_218 = arith.constant 6 : index
    %c0_219 = arith.constant 0 : index
    %c0_220 = arith.constant 0 : index
    %301 = vector.load %arg2[%c6_218, %c0_219, %c0_220] : memref<9x32x1xf32, #tpu.memory_space<vmem>>, vector<1x32x1xf32>
    %302 = vector.shape_cast %301 : vector<1x32x1xf32> to vector<32x1xf32>
    %303 = vector.broadcast %302 : vector<32x1xf32> to vector<32x128xf32>
    %304 = arith.mulf %300, %303 : vector<32x128xf32>
    %305 = arith.truncf %304 : vector<32x128xf32> to vector<32x128xbf16>
    %c28_i32_221 = arith.constant 28 : i32
    %306 = tpu.dynamic_rotate %268 by %c28_i32_221 dim 0 : vector<32x128xf32>, i32 -> vector<32x128xf32>
    %c7_222 = arith.constant 7 : index
    %c0_223 = arith.constant 0 : index
    %c0_224 = arith.constant 0 : index
    %307 = vector.load %arg2[%c7_222, %c0_223, %c0_224] : memref<9x32x1xf32, #tpu.memory_space<vmem>>, vector<1x32x1xf32>
    %308 = vector.shape_cast %307 : vector<1x32x1xf32> to vector<32x1xf32>
    %309 = vector.broadcast %308 : vector<32x1xf32> to vector<32x128xf32>
    %310 = arith.mulf %306, %309 : vector<32x128xf32>
    %311 = arith.truncf %310 : vector<32x128xf32> to vector<32x128xbf16>
    %c27_i32_225 = arith.constant 27 : i32
    %312 = tpu.dynamic_rotate %268 by %c27_i32_225 dim 0 : vector<32x128xf32>, i32 -> vector<32x128xf32>
    %c8_226 = arith.constant 8 : index
    %c0_227 = arith.constant 0 : index
    %c0_228 = arith.constant 0 : index
    %313 = vector.load %arg2[%c8_226, %c0_227, %c0_228] : memref<9x32x1xf32, #tpu.memory_space<vmem>>, vector<1x32x1xf32>
    %314 = vector.shape_cast %313 : vector<1x32x1xf32> to vector<32x1xf32>
    %315 = vector.broadcast %314 : vector<32x1xf32> to vector<32x128xf32>
    %316 = arith.mulf %312, %315 : vector<32x128xf32>
    %317 = arith.truncf %316 : vector<32x128xf32> to vector<32x128xbf16>
    %318 = tpu.concatenate %274, %280, %286, %292, %293, %299, %305, %311, %317 in 1 : vector<32x128xbf16>, vector<32x128xbf16>, vector<32x128xbf16>, vector<32x128xbf16>, vector<32x128xbf16>, vector<32x128xbf16>, vector<32x128xbf16>, vector<32x128xbf16>, vector<32x128xbf16> -> vector<32x1152xbf16>
    %c0_229 = arith.constant 0 : index
    %c0_230 = arith.constant 0 : index
    %319 = vector.load %arg10[%c0_229, %c0_230] : memref<1152x128xbf16, #tpu.memory_space<vmem>>, vector<1152x128xbf16>
    %cst_231 = arith.constant dense<0.000000e+00> : vector<32x128xf32>
    %320 = tpu.matmul %318, %319, %cst_231 {dimension_numbers = #tpu.dot_dimension_numbers<[1], [0], [0], [1], [0, 0, 1, 1], [], []>} : vector<32x1152xbf16>, vector<1152x128xbf16>, vector<32x128xf32> -> vector<32x128xf32>
    %c0_232 = arith.constant 0 : index
    %c0_233 = arith.constant 0 : index
    %321 = vector.load %arg11[%c0_232, %c0_233] : memref<1x128xf32, #tpu.memory_space<vmem>>, vector<1x128xf32>
    %322 = vector.broadcast %321 : vector<1x128xf32> to vector<32x128xf32>
    %323 = arith.addf %320, %322 : vector<32x128xf32>
    %cst_234 = arith.constant 0.000000e+00 : f32
    %324 = vector.broadcast %cst_234 : f32 to vector<32x128xf32>
    %325 = arith.maximumf %323, %324 : vector<32x128xf32>
    %326 = arith.truncf %325 : vector<32x128xf32> to vector<32x128xbf16>
    %c0_235 = arith.constant 0 : index
    %c0_236 = arith.constant 0 : index
    %327 = vector.load %arg12[%c0_235, %c0_236] : memref<128x3xbf16, #tpu.memory_space<vmem>>, vector<128x3xbf16>
    %cst_237 = arith.constant dense<0.000000e+00> : vector<32x3xf32>
    %328 = tpu.matmul %326, %327, %cst_237 {dimension_numbers = #tpu.dot_dimension_numbers<[1], [0], [0], [1], [0, 0, 1, 1], [], []>} : vector<32x128xbf16>, vector<128x3xbf16>, vector<32x3xf32> -> vector<32x3xf32>
    %c0_238 = arith.constant 0 : index
    %c0_239 = arith.constant 0 : index
    %329 = vector.load %arg13[%c0_238, %c0_239] : memref<1x3xf32, #tpu.memory_space<vmem>>, vector<1x3xf32>
    %330 = vector.broadcast %329 : vector<1x3xf32> to vector<32x3xf32>
    %331 = arith.addf %328, %330 : vector<32x3xf32>
    %cst_240 = arith.constant 0.000000e+00 : f32
    %332 = vector.broadcast %cst_240 : f32 to vector<32x3xf32>
    %333 = arith.maximumf %331, %332 : vector<32x3xf32>
    %334 = arith.truncf %333 : vector<32x3xf32> to vector<32x3xbf16>
    %335 = vector.extract_strided_slice %334 {offsets = [0, 2], sizes = [32, 1], strides = [1, 1]} : vector<32x3xbf16> to vector<32x1xbf16>
    %c0_241 = arith.constant 0 : index
    %c0_242 = arith.constant 0 : index
    %336 = vector.load %arg16[%c0_241, %c0_242] : memref<32x256xbf16, #tpu.memory_space<vmem>>, vector<32x256xbf16>
    %337 = vector.broadcast %335 : vector<32x1xbf16> to vector<32x256xbf16>
    %338 = arith.mulf %337, %336 : vector<32x256xbf16>
    %339 = vector.extract_strided_slice %334 {offsets = [0, 0], sizes = [32, 1], strides = [1, 1]} : vector<32x3xbf16> to vector<32x1xbf16>
    %c0_243 = arith.constant 0 : index
    %c0_244 = arith.constant 0 : index
    %c0_245 = arith.constant 0 : index
    %340 = vector.load %arg14[%c0_243, %c0_244, %c0_245] : memref<2x32x8xbf16, #tpu.memory_space<vmem>>, vector<1x32x8xbf16>
    %341 = vector.shape_cast %340 : vector<1x32x8xbf16> to vector<32x8xbf16>
    %342 = vector.broadcast %339 : vector<32x1xbf16> to vector<32x8xbf16>
    %343 = arith.mulf %342, %341 : vector<32x8xbf16>
    %344 = vector.extract_strided_slice %334 {offsets = [0, 1], sizes = [32, 1], strides = [1, 1]} : vector<32x3xbf16> to vector<32x1xbf16>
    %c1_246 = arith.constant 1 : index
    %c0_247 = arith.constant 0 : index
    %c0_248 = arith.constant 0 : index
    %345 = vector.load %arg14[%c1_246, %c0_247, %c0_248] : memref<2x32x8xbf16, #tpu.memory_space<vmem>>, vector<1x32x8xbf16>
    %346 = vector.shape_cast %345 : vector<1x32x8xbf16> to vector<32x8xbf16>
    %347 = vector.broadcast %344 : vector<32x1xbf16> to vector<32x8xbf16>
    %348 = arith.mulf %347, %346 : vector<32x8xbf16>
    %349 = arith.addf %343, %348 : vector<32x8xbf16>
    %350 = tpu.concatenate %338, %349 in 1 : vector<32x256xbf16>, vector<32x8xbf16> -> vector<32x264xbf16>
    %c0_249 = arith.constant 0 : index
    %c0_250 = arith.constant 0 : index
    %351 = vector.load %arg3[%c0_249, %c0_250] : memref<2x32xbf16, #tpu.memory_space<vmem>>, vector<2x32xbf16>
    %cst_251 = arith.constant dense<0.000000e+00> : vector<2x264xf32>
    %352 = tpu.matmul %351, %350, %cst_251 {dimension_numbers = #tpu.dot_dimension_numbers<[1], [0], [0], [1], [0, 0, 1, 1], [], []>} : vector<2x32xbf16>, vector<32x264xbf16>, vector<2x264xf32> -> vector<2x264xf32>
    %353 = vector.extract_strided_slice %352 {offsets = [0, 0], sizes = [2, 256], strides = [1, 1]} : vector<2x264xf32> to vector<2x256xf32>
    %c0_252 = arith.constant 0 : index
    %c0_253 = arith.constant 0 : index
    %354 = vector.load %arg17[%c0_252, %c0_253] : memref<1x256xf32, #tpu.memory_space<vmem>>, vector<1x256xf32>
    %355 = vector.broadcast %354 : vector<1x256xf32> to vector<2x256xf32>
    %356 = arith.addf %353, %355 : vector<2x256xf32>
    %cst_254 = arith.constant 0.000000e+00 : f32
    %357 = vector.broadcast %cst_254 : f32 to vector<2x256xf32>
    %358 = arith.maximumf %356, %357 : vector<2x256xf32>
    %c0_255 = arith.constant 0 : index
    %c0_256 = arith.constant 0 : index
    %359 = vector.load %arg18[%c0_255, %c0_256] : memref<256x1xf32, #tpu.memory_space<vmem>>, vector<256x1xf32>
    %cst_257 = arith.constant dense<0.000000e+00> : vector<2x1xf32>
    %360 = tpu.matmul %358, %359, %cst_257 {dimension_numbers = #tpu.dot_dimension_numbers<[1], [0], [0], [1], [0, 0, 1, 1], [], []>} : vector<2x256xf32>, vector<256x1xf32>, vector<2x1xf32> -> vector<2x1xf32>
    %c0_258 = arith.constant 0 : index
    %c0_259 = arith.constant 0 : index
    %361 = vector.load %arg19[%c0_258, %c0_259] : memref<1x1xf32, #tpu.memory_space<vmem>>, vector<1x1xf32>
    %362 = vector.broadcast %361 : vector<1x1xf32> to vector<2x1xf32>
    %363 = arith.addf %360, %362 : vector<2x1xf32>
    %364 = vector.extract_strided_slice %352 {offsets = [0, 256], sizes = [2, 8], strides = [1, 1]} : vector<2x264xf32> to vector<2x8xf32>
    %c0_260 = arith.constant 0 : index
    %c0_261 = arith.constant 0 : index
    %365 = vector.load %arg15[%c0_260, %c0_261] : memref<1x8xf32, #tpu.memory_space<vmem>>, vector<1x8xf32>
    %366 = vector.broadcast %365 : vector<1x8xf32> to vector<2x8xf32>
    %367 = arith.addf %364, %366 : vector<2x8xf32>
    %cst_262 = arith.constant dense<0xFF800000> : vector<2xf32>
    %368 = vector.multi_reduction <maximumf>, %367, %cst_262 [1] : vector<2x8xf32> to vector<2xf32>
    %369 = vector.shape_cast %368 : vector<2xf32> to vector<2x1xf32>
    %370 = vector.broadcast %369 : vector<2x1xf32> to vector<2x8xf32>
    %371 = arith.subf %367, %370 : vector<2x8xf32>
    %372 = math.exp %371 : vector<2x8xf32>
    %cst_263 = arith.constant dense<0.000000e+00> : vector<2xf32>
    %373 = vector.multi_reduction <add>, %372, %cst_263 [1] : vector<2x8xf32> to vector<2xf32>
    %374 = vector.shape_cast %373 : vector<2xf32> to vector<2x1xf32>
    %375 = vector.broadcast %374 : vector<2x1xf32> to vector<2x8xf32>
    %376 = arith.divf %372, %375 : vector<2x8xf32>
    %cst_264 = arith.constant 0.000000e+00 : f32
    %377 = vector.broadcast %cst_264 : f32 to vector<2x119xf32>
    %378 = tpu.concatenate %376, %363, %377 in 1 : vector<2x8xf32>, vector<2x1xf32>, vector<2x119xf32> -> vector<2x128xf32>
    %c0_265 = arith.constant 0 : index
    %c0_266 = arith.constant 0 : index
    %379 = vector.load %arg20[%c0_265, %c0_266] : memref<2x128xf32, #tpu.memory_space<vmem>>, vector<2x128xf32>
    tpu.vector_store %arg20[%c0_265, %c0_266], %378 {strides = array<i32>} : memref<2x128xf32, #tpu.memory_space<vmem>>, vector<2x128xf32>,
    return
  }
  func.func @transform_0(%arg0: i32) -> (i32, i32) {
    %c0_i32 = arith.constant 0 : i32
    %c0_i32_0 = arith.constant 0 : i32
    return %arg0, %c0_i32 : i32, i32
  }
  func.func @transform_1(%arg0: i32) -> (i32, i32, i32) {
    %c0_i32 = arith.constant 0 : i32
    %c0_i32_0 = arith.constant 0 : i32
    %c0_i32_1 = arith.constant 0 : i32
    %c0_i32_2 = arith.constant 0 : i32
    return %c0_i32, %c0_i32_0, %c0_i32_1 : i32, i32, i32
  }
  func.func @transform_2(%arg0: i32) -> (i32, i32) {
    %c0_i32 = arith.constant 0 : i32
    %c0_i32_0 = arith.constant 0 : i32
    %c0_i32_1 = arith.constant 0 : i32
    return %c0_i32, %c0_i32_0 : i32, i32
  }
  func.func @transform_3(%arg0: i32) -> (i32, i32, i32) {
    %c0_i32 = arith.constant 0 : i32
    %c0_i32_0 = arith.constant 0 : i32
    %c0_i32_1 = arith.constant 0 : i32
    %c0_i32_2 = arith.constant 0 : i32
    return %c0_i32, %c0_i32_0, %c0_i32_1 : i32, i32, i32
  }
  func.func @transform_4(%arg0: i32) -> (i32, i32) {
    %c0_i32 = arith.constant 0 : i32
    %c0_i32_0 = arith.constant 0 : i32
    %c0_i32_1 = arith.constant 0 : i32
    return %c0_i32, %c0_i32_0 : i32, i32
  }
  func.func @transform_5(%arg0: i32) -> (i32, i32, i32) {
    %c0_i32 = arith.constant 0 : i32
    %c0_i32_0 = arith.constant 0 : i32
    %c0_i32_1 = arith.constant 0 : i32
    %c0_i32_2 = arith.constant 0 : i32
    return %c0_i32, %c0_i32_0, %c0_i32_1 : i32, i32, i32
  }
  func.func @transform_6(%arg0: i32) -> (i32, i32) {
    %c0_i32 = arith.constant 0 : i32
    %c0_i32_0 = arith.constant 0 : i32
    %c0_i32_1 = arith.constant 0 : i32
    return %c0_i32, %c0_i32_0 : i32, i32
  }
  func.func @transform_7(%arg0: i32) -> (i32, i32, i32) {
    %c0_i32 = arith.constant 0 : i32
    %c0_i32_0 = arith.constant 0 : i32
    %c0_i32_1 = arith.constant 0 : i32
    %c0_i32_2 = arith.constant 0 : i32
    return %c0_i32, %c0_i32_0, %c0_i32_1 : i32, i32, i32
  }
  func.func @transform_8(%arg0: i32) -> (i32, i32) {
    %c0_i32 = arith.constant 0 : i32
    %c0_i32_0 = arith.constant 0 : i32
    %c0_i32_1 = arith.constant 0 : i32
    return %c0_i32, %c0_i32_0 : i32, i32
  }
  func.func @transform_9(%arg0: i32) -> (i32, i32) {
    %c0_i32 = arith.constant 0 : i32
    %c0_i32_0 = arith.constant 0 : i32
    %c0_i32_1 = arith.constant 0 : i32
    return %c0_i32, %c0_i32_0 : i32, i32
  }
  func.func @transform_10(%arg0: i32) -> (i32, i32) {
    %c0_i32 = arith.constant 0 : i32
    %c0_i32_0 = arith.constant 0 : i32
    %c0_i32_1 = arith.constant 0 : i32
    return %c0_i32, %c0_i32_0 : i32, i32
  }
  func.func @transform_11(%arg0: i32) -> (i32, i32) {
    %c0_i32 = arith.constant 0 : i32
    %c0_i32_0 = arith.constant 0 : i32
    %c0_i32_1 = arith.constant 0 : i32
    return %c0_i32, %c0_i32_0 : i32, i32
  }
  func.func @transform_12(%arg0: i32) -> (i32, i32) {
    %c0_i32 = arith.constant 0 : i32
    %c0_i32_0 = arith.constant 0 : i32
    %c0_i32_1 = arith.constant 0 : i32
    return %c0_i32, %c0_i32_0 : i32, i32
  }
  func.func @transform_13(%arg0: i32) -> (i32, i32, i32) {
    %c0_i32 = arith.constant 0 : i32
    %c0_i32_0 = arith.constant 0 : i32
    %c0_i32_1 = arith.constant 0 : i32
    %c0_i32_2 = arith.constant 0 : i32
    return %c0_i32, %c0_i32_0, %c0_i32_1 : i32, i32, i32
  }
  func.func @transform_14(%arg0: i32) -> (i32, i32) {
    %c0_i32 = arith.constant 0 : i32
    %c0_i32_0 = arith.constant 0 : i32
    %c0_i32_1 = arith.constant 0 : i32
    return %c0_i32, %c0_i32_0 : i32, i32
  }
  func.func @transform_15(%arg0: i32) -> (i32, i32) {
    %c0_i32 = arith.constant 0 : i32
    %c0_i32_0 = arith.constant 0 : i32
    %c0_i32_1 = arith.constant 0 : i32
    return %c0_i32, %c0_i32_0 : i32, i32
  }
  func.func @transform_16(%arg0: i32) -> (i32, i32) {
    %c0_i32 = arith.constant 0 : i32
    %c0_i32_0 = arith.constant 0 : i32
    %c0_i32_1 = arith.constant 0 : i32
    return %c0_i32, %c0_i32_0 : i32, i32
  }
  func.func @transform_17(%arg0: i32) -> (i32, i32) {
    %c0_i32 = arith.constant 0 : i32
    %c0_i32_0 = arith.constant 0 : i32
    %c0_i32_1 = arith.constant 0 : i32
    return %c0_i32, %c0_i32_0 : i32, i32
  }
  func.func @transform_18(%arg0: i32) -> (i32, i32) {
    %c0_i32 = arith.constant 0 : i32
    %c0_i32_0 = arith.constant 0 : i32
    %c0_i32_1 = arith.constant 0 : i32
    return %c0_i32, %c0_i32_0 : i32, i32
  }
  func.func @transform_19(%arg0: i32) -> (i32, i32) {
    %c0_i32 = arith.constant 0 : i32
    %c0_i32_0 = arith.constant 0 : i32
    return %arg0, %c0_i32 : i32, i32
  }
}

</mosaic_0001>

<llo_original>
// kernel: network_forward.1
$region0: #{network_forward.1}
  #allocation0 [shape = 'u32[]', space=smem, size = 0x4, offset = 0x4, fixed_abs, tag = 'smem constant byte address 0x4 - core index']
  #allocation1 [shape = 'u32[144,128]{1,0:T(1,128)}', space=vmem, size = 0x12000, scoped, tag = 'internal scratch']
  #allocation2 [shape = 'f32[1,1]{1,0:T(1,128)S(1)}', space=vmem, size = 0x200, scoped, tag = 'scoped memory for network_forward.1']
  %s0 = inlined_call_operand.vmem [shape: bf16[32,4], index: 0, kind: input, shape index: {}]
  %s1 = inlined_call_operand.vmem [shape: f32[9,32,1], index: 1, kind: input, shape index: {}]
  %s2 = inlined_call_operand.vmem [shape: bf16[2,32], index: 2, kind: input, shape index: {}]
  %s3 = inlined_call_operand.vmem [shape: bf16[9,4,32], index: 3, kind: input, shape index: {}]
  %s4 = inlined_call_operand.hbm [shape: f32[1,32], index: 4, kind: input, shape index: {}]
  %s5 = inlined_call_operand.vmem [shape: bf16[9,32,64], index: 5, kind: input, shape index: {}]
  %s6 = inlined_call_operand.hbm [shape: f32[1,64], index: 6, kind: input, shape index: {}]
  %s7 = inlined_call_operand.hbm [shape: bf16[9,64,128], index: 7, kind: input, shape index: {}]
  %s8 = inlined_call_operand.hbm [shape: f32[1,128], index: 8, kind: input, shape index: {}]
  %s9 = inlined_call_operand.vmem [shape: bf16[1152,128], index: 9, kind: input, shape index: {}]
  %s10 = inlined_call_operand.hbm [shape: f32[1,128], index: 10, kind: input, shape index: {}]
  %s11 = inlined_call_operand.vmem [shape: bf16[128,3], index: 11, kind: input, shape index: {}]
  %s12 = inlined_call_operand.hbm [shape: f32[1,3], index: 12, kind: input, shape index: {}]
  %s13 = inlined_call_operand.vmem [shape: bf16[2,32,8], index: 13, kind: input, shape index: {}]
  %s14 = inlined_call_operand.hbm [shape: f32[1,8], index: 14, kind: input, shape index: {}]
  %s15 = inlined_call_operand.hbm [shape: bf16[32,256], index: 15, kind: input, shape index: {}]
  %s16 = inlined_call_operand.vmem [shape: f32[1,256], index: 16, kind: input, shape index: {}]
  %s17 = inlined_call_operand.vmem [shape: f32[256,1], index: 17, kind: input, shape index: {}]
  %s18 = inlined_call_operand.<no memory space> [shape: f32[1,1], index: 18, kind: input, shape index: {}]
  %s19 = inlined_call_operand.vmem [shape: f32[2,128], index: 19, kind: output, shape index: {}]
  %s20 = sld [smem:[#allocation0]]
  $region118: #{network_forward.1} parent=0
    _
  %s22 = ssub.s32 1, %s20
  %s23 = scalar_select 0, %s22, %s20
  %v24 = vstv %s18
  %25 = vst [vmem:[#allocation2] sm:$0x1] %v24
  $region1: #{network_forward.1} parent=0
    #allocation3 [shape = 'u8[512]{0}', space=vmem, size = 0x400, scoped, tag = 'input window, operand 4, single buffered']
    #allocation4 [shape = 's32[1]{0}', space=sflag, size = 0x4, scoped, tag = 'scoped memory for network_forward.1']
    #allocation5 [shape = 'u8[512]{0}', space=vmem, size = 0x400, scoped, tag = 'input window, operand 6, single buffered']
    #allocation6 [shape = 's32[1]{0}', space=sflag, size = 0x4, scoped, tag = 'scoped memory for network_forward.1']
    #allocation7 [shape = 'u8[147456]{0}', space=vmem, size = 0x24000, scoped, tag = 'input window, operand 7, single buffered']
    #allocation8 [shape = 'u8[512]{0}', space=vmem, size = 0x400, scoped, tag = 'input window, operand 8, single buffered']
    #allocation9 [shape = 's32[1]{0}', space=sflag, size = 0x4, scoped, tag = 'scoped memory for network_forward.1']
    #allocation10 [shape = 'u8[512]{0}', space=vmem, size = 0x400, scoped, tag = 'input window, operand 10, single buffered']
    #allocation11 [shape = 'u8[512]{0}', space=vmem, size = 0x400, scoped, tag = 'input window, operand 12, single buffered']
    #allocation12 [shape = 's32[1]{0}', space=sflag, size = 0x4, scoped, tag = 'scoped memory for network_forward.1']
    #allocation13 [shape = 'u8[512]{0}', space=vmem, size = 0x400, scoped, tag = 'input window, operand 14, single buffered']
    #allocation14 [shape = 'u8[16384]{0}', space=vmem, size = 0x4000, scoped, tag = 'input window, operand 15, single buffered']
    #allocation15 [shape = 's32[1]{0}', space=sflag, size = 0x4, scoped, tag = 'scoped memory for network_forward.1']
    %26 = vsyncpa [#allocation4], 0
    %27 = vsyncpa [#allocation6], 0
    %28 = vsyncpa [#allocation9], 0
    %29 = vsyncpa [#allocation12], 0
    %30 = vsyncpa [#allocation15], 0
    // Predicated region
    $region2: #{network_forward.1} parent=1 // pred_check
      _
    $region3: #{network_forward.1} parent=1 // pred_check_branch
      %32 = sbr.rel (0) target = $region5
    $region4: #{network_forward.1} parent=1 // pred_region
      _
    $region5: #{network_forward.1} parent=1 // pred_fallthru
      _
    // Predicated region
    $region6: #{network_forward.1} parent=1 // pred_check
      _
    $region7: #{network_forward.1} parent=1 // pred_check_branch
      %34 = sbr.rel (0) target = $region9
    $region8: #{network_forward.1} parent=1 // pred_region
      _
    $region9: #{network_forward.1} parent=1 // pred_fallthru
      _
    // Predicated region
    $region10: #{network_forward.1} parent=1 // pred_check
      _
    $region11: #{network_forward.1} parent=1 // pred_check_branch
      %36 = sbr.rel (0) target = $region13
    $region12: #{network_forward.1} parent=1 // pred_region
      _
    $region13: #{network_forward.1} parent=1 // pred_fallthru
      _
    // Predicated region
    $region14: #{network_forward.1} parent=1 // pred_check
      _
    $region15: #{network_forward.1} parent=1 // pred_check_branch
      %38 = sbr.rel (0) target = $region17
    $region16: #{network_forward.1} parent=1 // pred_region
      _
    $region17: #{network_forward.1} parent=1 // pred_fallthru
      _
    // Predicated region
    $region18: #{network_forward.1} parent=1 // pred_check
      _
    $region19: #{network_forward.1} parent=1 // pred_check_branch
      %40 = sbr.rel (0) target = $region21
    $region20: #{network_forward.1} parent=1 // pred_region
      %s42 = ssub.s32 16, 16
      %43 = vsyncadd [#allocation4], %s42
      %s45 = sshll.u32 [#allocation3], 4
      %s46 = int_to_ptr.vmem [resolvable:$true] %s45
      %48 = dma.hbm_to_vmem [thread:$0]  %s4, 16, %s46, [#allocation4]
    $region21: #{network_forward.1} parent=1 // pred_fallthru
      _
    // Predicated region
    $region22: #{network_forward.1} parent=1 // pred_check
      _
    $region23: #{network_forward.1} parent=1 // pred_check_branch
      %50 = sbr.rel (0) target = $region25
    $region24: #{network_forward.1} parent=1 // pred_region
      _
    $region25: #{network_forward.1} parent=1 // pred_fallthru
      _
    // Predicated region
    $region26: #{network_forward.1} parent=1 // pred_check
      _
    $region27: #{network_forward.1} parent=1 // pred_check_branch
      %52 = sbr.rel (0) target = $region29
    $region28: #{network_forward.1} parent=1 // pred_region
      %s54 = ssub.s32 16, 16
      %55 = vsyncadd [#allocation6], %s54
      %s57 = sshll.u32 [#allocation5], 4
      %s58 = int_to_ptr.vmem [resolvable:$true] %s57
      %60 = dma.hbm_to_vmem [thread:$0]  %s6, 16, %s58, [#allocation6]
    $region29: #{network_forward.1} parent=1 // pred_fallthru
      _
    // Predicated region
    $region30: #{network_forward.1} parent=1 // pred_check
      _
    $region31: #{network_forward.1} parent=1 // pred_check_branch
      %62 = sbr.rel (0) target = $region33
    $region32: #{network_forward.1} parent=1 // pred_region
      %s64 = ssub.s32 4608, 4608
      %65 = vsyncadd [#allocation6], %s64
      %s66 = sshll.u32 [#allocation7], 4
      %s67 = int_to_ptr.vmem [resolvable:$true] %s66
      %72 = dma.hbm_to_vmem [thread:$0]  %s7, 4608, %s67, [#allocation6], 64, 64, 4
    $region33: #{network_forward.1} parent=1 // pred_fallthru
      _
    // Predicated region
    $region34: #{network_forward.1} parent=1 // pred_check
      _
    $region35: #{network_forward.1} parent=1 // pred_check_branch
      %74 = sbr.rel (0) target = $region37
    $region36: #{network_forward.1} parent=1 // pred_region
      %s76 = ssub.s32 16, 16
      %77 = vsyncadd [#allocation9], %s76
      %s79 = sshll.u32 [#allocation8], 4
      %s80 = int_to_ptr.vmem [resolvable:$true] %s79
      %82 = dma.hbm_to_vmem [thread:$0]  %s8, 16, %s80, [#allocation9]
    $region37: #{network_forward.1} parent=1 // pred_fallthru
      _
    // Predicated region
    $region38: #{network_forward.1} parent=1 // pred_check
      _
    $region39: #{network_forward.1} parent=1 // pred_check_branch
      %84 = sbr.rel (0) target = $region41
    $region40: #{network_forward.1} parent=1 // pred_region
      _
    $region41: #{network_forward.1} parent=1 // pred_fallthru
      _
    // Predicated region
    $region42: #{network_forward.1} parent=1 // pred_check
      _
    $region43: #{network_forward.1} parent=1 // pred_check_branch
      %86 = sbr.rel (0) target = $region45
    $region44: #{network_forward.1} parent=1 // pred_region
      %s88 = ssub.s32 16, 16
      %89 = vsyncadd [#allocation9], %s88
      %s91 = sshll.u32 [#allocation10], 4
      %s92 = int_to_ptr.vmem [resolvable:$true] %s91
      %94 = dma.hbm_to_vmem [thread:$0]  %s10, 16, %s92, [#allocation9]
    $region45: #{network_forward.1} parent=1 // pred_fallthru
      _
    // Predicated region
    $region46: #{network_forward.1} parent=1 // pred_check
      _
    $region47: #{network_forward.1} parent=1 // pred_check_branch
      %96 = sbr.rel (0) target = $region49
    $region48: #{network_forward.1} parent=1 // pred_region
      _
    $region49: #{network_forward.1} parent=1 // pred_fallthru
      _
    // Predicated region
    $region50: #{network_forward.1} parent=1 // pred_check
      _
    $region51: #{network_forward.1} parent=1 // pred_check_branch
      %98 = sbr.rel (0) target = $region53
    $region52: #{network_forward.1} parent=1 // pred_region
      %s100 = ssub.s32 16, 16
      %101 = vsyncadd [#allocation12], %s100
      %s103 = sshll.u32 [#allocation11], 4
      %s104 = int_to_ptr.vmem [resolvable:$true] %s103
      %106 = dma.hbm_to_vmem [thread:$0]  %s12, 16, %s104, [#allocation12]
    $region53: #{network_forward.1} parent=1 // pred_fallthru
      _
    // Predicated region
    $region54: #{network_forward.1} parent=1 // pred_check
      _
    $region55: #{network_forward.1} parent=1 // pred_check_branch
      %108 = sbr.rel (0) target = $region57
    $region56: #{network_forward.1} parent=1 // pred_region
      _
    $region57: #{network_forward.1} parent=1 // pred_fallthru
      _
    // Predicated region
    $region58: #{network_forward.1} parent=1 // pred_check
      _
    $region59: #{network_forward.1} parent=1 // pred_check_branch
      %110 = sbr.rel (0) target = $region61
    $region60: #{network_forward.1} parent=1 // pred_region
      %s112 = ssub.s32 16, 16
      %113 = vsyncadd [#allocation12], %s112
      %s115 = sshll.u32 [#allocation13], 4
      %s116 = int_to_ptr.vmem [resolvable:$true] %s115
      %118 = dma.hbm_to_vmem [thread:$0]  %s14, 16, %s116, [#allocation12]
    $region61: #{network_forward.1} parent=1 // pred_fallthru
      _
    // Predicated region
    $region62: #{network_forward.1} parent=1 // pred_check
      _
    $region63: #{network_forward.1} parent=1 // pred_check_branch
      %120 = sbr.rel (0) target = $region65
    $region64: #{network_forward.1} parent=1 // pred_region
      %s122 = ssub.s32 512, 512
      %123 = vsyncadd [#allocation15], %s122
      %s124 = sshll.u32 [#allocation14], 4
      %s125 = int_to_ptr.vmem [resolvable:$true] %s124
      %130 = dma.hbm_to_vmem [thread:$0]  %s15, 512, %s125, [#allocation15], 128, 128, 8
    $region65: #{network_forward.1} parent=1 // pred_fallthru
      _
    // Predicated region
    $region66: #{network_forward.1} parent=1 // pred_check
      _
    $region67: #{network_forward.1} parent=1 // pred_check_branch
      %132 = sbr.rel (0) target = $region69
    $region68: #{network_forward.1} parent=1 // pred_region
      _
    $region69: #{network_forward.1} parent=1 // pred_fallthru
      _
    // Predicated region
    $region70: #{network_forward.1} parent=1 // pred_check
      _
    $region71: #{network_forward.1} parent=1 // pred_check_branch
      %134 = sbr.rel (0) target = $region73
    $region72: #{network_forward.1} parent=1 // pred_region
      _
    $region73: #{network_forward.1} parent=1 // pred_fallthru
      _
    // Predicated region
    $region74: #{network_forward.1} parent=1 // pred_check
      _
    $region75: #{network_forward.1} parent=1 // pred_check_branch
      %136 = sbr.rel (0) target = $region77
    $region76: #{network_forward.1} parent=1 // pred_region
      _
    $region77: #{network_forward.1} parent=1 // pred_fallthru
      _
    // Predicated region
    $region78: #{network_forward.1} parent=1 // pred_check
      _
    $region79: #{network_forward.1} parent=1 // pred_check_branch
      %138 = sbr.rel (0) target = $region81
    $region80: #{network_forward.1} parent=1 // pred_region
      %139 = dma.done [#allocation4], 16
    $region81: #{network_forward.1} parent=1 // pred_fallthru
      _
    // Predicated region
    $region82: #{network_forward.1} parent=1 // pred_check
      _
    $region83: #{network_forward.1} parent=1 // pred_check_branch
      %141 = sbr.rel (0) target = $region85
    $region84: #{network_forward.1} parent=1 // pred_region
      %142 = dma.done [#allocation6], 16
    $region85: #{network_forward.1} parent=1 // pred_fallthru
      _
    // Predicated region
    $region86: #{network_forward.1} parent=1 // pred_check
      _
    $region87: #{network_forward.1} parent=1 // pred_check_branch
      %144 = sbr.rel (0) target = $region89
    $region88: #{network_forward.1} parent=1 // pred_region
      %145 = dma.done [#allocation6], 4608
    $region89: #{network_forward.1} parent=1 // pred_fallthru
      _
    // Predicated region
    $region90: #{network_forward.1} parent=1 // pred_check
      _
    $region91: #{network_forward.1} parent=1 // pred_check_branch
      %147 = sbr.rel (0) target = $region93
    $region92: #{network_forward.1} parent=1 // pred_region
      %148 = dma.done [#allocation9], 16
    $region93: #{network_forward.1} parent=1 // pred_fallthru
      _
    // Predicated region
    $region94: #{network_forward.1} parent=1 // pred_check
      _
    $region95: #{network_forward.1} parent=1 // pred_check_branch
      %150 = sbr.rel (0) target = $region97
    $region96: #{network_forward.1} parent=1 // pred_region
      %151 = dma.done [#allocation9], 16
    $region97: #{network_forward.1} parent=1 // pred_fallthru
      _
    // Predicated region
    $region98: #{network_forward.1} parent=1 // pred_check
      _
    $region99: #{network_forward.1} parent=1 // pred_check_branch
      %153 = sbr.rel (0) target = $region101
    $region100: #{network_forward.1} parent=1 // pred_region
      %154 = dma.done [#allocation12], 16
    $region101: #{network_forward.1} parent=1 // pred_fallthru
      _
    // Predicated region
    $region102: #{network_forward.1} parent=1 // pred_check
      _
    $region103: #{network_forward.1} parent=1 // pred_check_branch
      %156 = sbr.rel (0) target = $region105
    $region104: #{network_forward.1} parent=1 // pred_region
      %157 = dma.done [#allocation12], 16
    $region105: #{network_forward.1} parent=1 // pred_fallthru
      _
    // Predicated region
    $region106: #{network_forward.1} parent=1 // pred_check
      _
    $region107: #{network_forward.1} parent=1 // pred_check_branch
      %159 = sbr.rel (0) target = $region109
    $region108: #{network_forward.1} parent=1 // pred_region
      %160 = dma.done [#allocation15], 512
    $region109: #{network_forward.1} parent=1 // pred_fallthru
      _
    %v162 = vld [vmem:[%s0] sm:$0xf]
    %v163 = vld [vmem:[%s0 + $0x4] sm:$0xf]
    %v164 = vld [vmem:[%s0 + $0x8] sm:$0xf]
    %v165 = vld [vmem:[%s0 + $0xc] sm:$0xf]
    %v166 = vunpack.c.l.bf16 %v162
    %v167 = vunpack.c.l.bf16 %v163
    %v168 = vunpack.c.l.bf16 %v164
    %v169 = vunpack.c.l.bf16 %v165
    %v170 = vrot.slane %v166, 3
    %v171 = vrot.slane %v167, 3
    %v172 = vrot.slane %v168, 3
    %v173 = vrot.slane %v169, 3
    %v174 = vlaneseq
    %v175 = vshrl.u32 %v174, 7
    %vm176 = vcmp.lt.s32.totalorder %v175, 5
    %v177 = vsel %vm176, %v172, %v173
    %v178 = vsel %vm176, %v171, %v172
    %v179 = vsel %vm176, %v170, %v171
    %v180 = vsel %vm176, %v173, %v170
    %v181 = vld [vmem:[%s1] sm:$0xff]
    %v182 = vld [vmem:[%s1 + $0x8] sm:$0xff]
    %v183 = vld [vmem:[%s1 + $0x10] sm:$0xff]
    %v184 = vld [vmem:[%s1 + $0x18] sm:$0xff]
    %186 = vset.pattern.permute.xlu0 0
    %187 = vperm.xlu0 %186, %v181
    %v188 = vpop.permute.xlu0 %187
    %191 = vset.pattern.permute.xlu0 0
    %192 = vperm.xlu0 %191, %v182
    %v193 = vpop.permute.xlu0 %192
    %196 = vset.pattern.permute.xlu0 0
    %197 = vperm.xlu0 %196, %v183
    %v198 = vpop.permute.xlu0 %197
    %201 = vset.pattern.permute.xlu0 0
    %202 = vperm.xlu0 %201, %v184
    %v203 = vpop.permute.xlu0 %202
    %v205 = vmul.f32 %v180, %v188
    %v206 = vmul.f32 %v179, %v193
    %v207 = vmul.f32 %v178, %v198
    %v208 = vmul.f32 %v177, %v203
    %v209 = vpack.c.bf16 %v206, %v205
    %v210 = vpack.c.bf16 %v208, %v207
    %v211 = vrot.slane %v166, 4
    %v212 = vrot.slane %v167, 4
    %v213 = vrot.slane %v168, 4
    %v214 = vrot.slane %v169, 4
    %vm215 = vcmp.lt.s32.totalorder %v175, 4
    %v216 = vsel %vm215, %v213, %v214
    %v217 = vsel %vm215, %v212, %v213
    %v218 = vsel %vm215, %v211, %v212
    %v219 = vsel %vm215, %v214, %v211
    %s220 = scalar_lea.vmem %s1, 32
    %v221 = vld [vmem:[%s220] sm:$0xff]
    %v222 = vld [vmem:[%s220 + $0x8] sm:$0xff]
    %v223 = vld [vmem:[%s220 + $0x10] sm:$0xff]
    %v224 = vld [vmem:[%s220 + $0x18] sm:$0xff]
    %226 = vset.pattern.permute.xlu0 0
    %227 = vperm.xlu0 %226, %v221
    %v228 = vpop.permute.xlu0 %227
    %231 = vset.pattern.permute.xlu0 0
    %232 = vperm.xlu0 %231, %v222
    %v233 = vpop.permute.xlu0 %232
    %236 = vset.pattern.permute.xlu0 0
    %237 = vperm.xlu0 %236, %v223
    %v238 = vpop.permute.xlu0 %237
    %241 = vset.pattern.permute.xlu0 0
    %242 = vperm.xlu0 %241, %v224
    %v243 = vpop.permute.xlu0 %242
    %v245 = vmul.f32 %v219, %v228
    %v246 = vmul.f32 %v218, %v233
    %v247 = vmul.f32 %v217, %v238
    %v248 = vmul.f32 %v216, %v243
    %v249 = vpack.c.bf16 %v246, %v245
    %v250 = vpack.c.bf16 %v248, %v247
    %v251 = vrot.slane %v166, 5
    %v252 = vrot.slane %v167, 5
    %v253 = vrot.slane %v168, 5
    %v254 = vrot.slane %v169, 5
    %vm255 = vcmp.lt.s32.totalorder %v175, 3
    %v256 = vsel %vm255, %v253, %v254
    %v257 = vsel %vm255, %v252, %v253
    %v258 = vsel %vm255, %v251, %v252
    %v259 = vsel %vm255, %v254, %v251
    %s260 = scalar_lea.vmem %s1, 64
    %v261 = vld [vmem:[%s260] sm:$0xff]
    %v262 = vld [vmem:[%s260 + $0x8] sm:$0xff]
    %v263 = vld [vmem:[%s260 + $0x10] sm:$0xff]
    %v264 = vld [vmem:[%s260 + $0x18] sm:$0xff]
    %266 = vset.pattern.permute.xlu0 0
    %267 = vperm.xlu0 %266, %v261
    %v268 = vpop.permute.xlu0 %267
    %271 = vset.pattern.permute.xlu0 0
    %272 = vperm.xlu0 %271, %v262
    %v273 = vpop.permute.xlu0 %272
    %276 = vset.pattern.permute.xlu0 0
    %277 = vperm.xlu0 %276, %v263
    %v278 = vpop.permute.xlu0 %277
    %281 = vset.pattern.permute.xlu0 0
    %282 = vperm.xlu0 %281, %v264
    %v283 = vpop.permute.xlu0 %282
    %v285 = vmul.f32 %v259, %v268
    %v286 = vmul.f32 %v258, %v273
    %v287 = vmul.f32 %v257, %v278
    %v288 = vmul.f32 %v256, %v283
    %v289 = vpack.c.bf16 %v286, %v285
    %v290 = vpack.c.bf16 %v288, %v287
    %v291 = vrot.slane %v166, 7
    %v292 = vrot.slane %v167, 7
    %v293 = vrot.slane %v168, 7
    %v294 = vrot.slane %v169, 7
    %vm295 = vcmp.lt.s32.totalorder %v175, 1
    %v296 = vsel %vm295, %v293, %v294
    %v297 = vsel %vm295, %v292, %v293
    %v298 = vsel %vm295, %v291, %v292
    %v299 = vsel %vm295, %v294, %v291
    %s300 = scalar_lea.vmem %s1, 96
    %v301 = vld [vmem:[%s300] sm:$0xff]
    %v302 = vld [vmem:[%s300 + $0x8] sm:$0xff]
    %v303 = vld [vmem:[%s300 + $0x10] sm:$0xff]
    %v304 = vld [vmem:[%s300 + $0x18] sm:$0xff]
    %306 = vset.pattern.permute.xlu0 0
    %307 = vperm.xlu0 %306, %v301
    %v308 = vpop.permute.xlu0 %307
    %311 = vset.pattern.permute.xlu0 0
    %312 = vperm.xlu0 %311, %v302
    %v313 = vpop.permute.xlu0 %312
    %316 = vset.pattern.permute.xlu0 0
    %317 = vperm.xlu0 %316, %v303
    %v318 = vpop.permute.xlu0 %317
    %321 = vset.pattern.permute.xlu0 0
    %322 = vperm.xlu0 %321, %v304
    %v323 = vpop.permute.xlu0 %322
    %v325 = vmul.f32 %v299, %v308
    %v326 = vmul.f32 %v298, %v313
    %v327 = vmul.f32 %v297, %v318
    %v328 = vmul.f32 %v296, %v323
    %v329 = vpack.c.bf16 %v326, %v325
    %v330 = vpack.c.bf16 %v328, %v327
    %v331 = vrot.slane %v166, 1
    %v332 = vrot.slane %v167, 1
    %v333 = vrot.slane %v168, 1
    %v334 = vrot.slane %v169, 1
    %vm335 = vcmp.lt.s32.totalorder %v175, 7
    %v336 = vsel %vm335, %v333, %v334
    %v337 = vsel %vm335, %v332, %v333
    %v338 = vsel %vm335, %v331, %v332
    %v339 = vsel %vm335, %v334, %v331
    %s340 = scalar_lea.vmem %s1, 160
    %v341 = vld [vmem:[%s340] sm:$0xff]
    %v342 = vld [vmem:[%s340 + $0x8] sm:$0xff]
    %v343 = vld [vmem:[%s340 + $0x10] sm:$0xff]
    %v344 = vld [vmem:[%s340 + $0x18] sm:$0xff]
    %346 = vset.pattern.permute.xlu0 0
    %347 = vperm.xlu0 %346, %v341
    %v348 = vpop.permute.xlu0 %347
    %351 = vset.pattern.permute.xlu0 0
    %352 = vperm.xlu0 %351, %v342
    %v353 = vpop.permute.xlu0 %352
    %356 = vset.pattern.permute.xlu0 0
    %357 = vperm.xlu0 %356, %v343
    %v358 = vpop.permute.xlu0 %357
    %361 = vset.pattern.permute.xlu0 0
    %362 = vperm.xlu0 %361, %v344
    %v363 = vpop.permute.xlu0 %362
    %v365 = vmul.f32 %v338, %v348
    %v366 = vmul.f32 %v337, %v353
    %v367 = vmul.f32 %v336, %v358
    %v368 = vmul.f32 %v339, %v363
    %v369 = vpack.c.bf16 %v366, %v365
    %v370 = vpack.c.bf16 %v368, %v367
    %s371 = scalar_lea.vmem %s1, 192
    %v372 = vld [vmem:[%s371] sm:$0xff]
    %v373 = vld [vmem:[%s371 + $0x8] sm:$0xff]
    %v374 = vld [vmem:[%s371 + $0x10] sm:$0xff]
    %v375 = vld [vmem:[%s371 + $0x18] sm:$0xff]
    %377 = vset.pattern.permute.xlu0 0
    %378 = vperm.xlu0 %377, %v372
    %v379 = vpop.permute.xlu0 %378
    %382 = vset.pattern.permute.xlu0 0
    %383 = vperm.xlu0 %382, %v373
    %v384 = vpop.permute.xlu0 %383
    %387 = vset.pattern.permute.xlu0 0
    %388 = vperm.xlu0 %387, %v374
    %v389 = vpop.permute.xlu0 %388
    %392 = vset.pattern.permute.xlu0 0
    %393 = vperm.xlu0 %392, %v375
    %v394 = vpop.permute.xlu0 %393
    %v396 = vmul.f32 %v179, %v379
    %v397 = vmul.f32 %v178, %v384
    %v398 = vmul.f32 %v177, %v389
    %v399 = vmul.f32 %v180, %v394
    %v400 = vpack.c.bf16 %v397, %v396
    %v401 = vpack.c.bf16 %v399, %v398
    %s402 = scalar_lea.vmem %s1, 224
    %v403 = vld [vmem:[%s402] sm:$0xff]
    %v404 = vld [vmem:[%s402 + $0x8] sm:$0xff]
    %v405 = vld [vmem:[%s402 + $0x10] sm:$0xff]
    %v406 = vld [vmem:[%s402 + $0x18] sm:$0xff]
    %408 = vset.pattern.permute.xlu0 0
    %409 = vperm.xlu0 %408, %v403
    %v410 = vpop.permute.xlu0 %409
    %413 = vset.pattern.permute.xlu0 0
    %414 = vperm.xlu0 %413, %v404
    %v415 = vpop.permute.xlu0 %414
    %418 = vset.pattern.permute.xlu0 0
    %419 = vperm.xlu0 %418, %v405
    %v420 = vpop.permute.xlu0 %419
    %423 = vset.pattern.permute.xlu0 0
    %424 = vperm.xlu0 %423, %v406
    %v425 = vpop.permute.xlu0 %424
    %v427 = vmul.f32 %v218, %v410
    %v428 = vmul.f32 %v217, %v415
    %v429 = vmul.f32 %v216, %v420
    %v430 = vmul.f32 %v219, %v425
    %v431 = vpack.c.bf16 %v428, %v427
    %v432 = vpack.c.bf16 %v430, %v429
    %s433 = scalar_lea.vmem %s1, 256
    %v434 = vld [vmem:[%s433] sm:$0xff]
    %v435 = vld [vmem:[%s433 + $0x8] sm:$0xff]
    %v436 = vld [vmem:[%s433 + $0x10] sm:$0xff]
    %v437 = vld [vmem:[%s433 + $0x18] sm:$0xff]
    %439 = vset.pattern.permute.xlu0 0
    %440 = vperm.xlu0 %439, %v434
    %v441 = vpop.permute.xlu0 %440
    %444 = vset.pattern.permute.xlu0 0
    %445 = vperm.xlu0 %444, %v435
    %v446 = vpop.permute.xlu0 %445
    %449 = vset.pattern.permute.xlu0 0
    %450 = vperm.xlu0 %449, %v436
    %v451 = vpop.permute.xlu0 %450
    %454 = vset.pattern.permute.xlu0 0
    %455 = vperm.xlu0 %454, %v437
    %v456 = vpop.permute.xlu0 %455
    %v458 = vmul.f32 %v258, %v441
    %v459 = vmul.f32 %v257, %v446
    %v460 = vmul.f32 %v256, %v451
    %v461 = vmul.f32 %v259, %v456
    %v462 = vpack.c.bf16 %v459, %v458
    %v463 = vpack.c.bf16 %v461, %v460
    %v464 = vld [vmem:[%s3] sm:$0x3]
    %s465 = scalar_lea.vmem %s3, 2
    %v466 = vld [vmem:[%s465] sm:$0x3]
    %vm467 = vcmask 31744
    %v469 = vsel %vm467, %v249, 0
    %v472 = vsel %vm467, %v250, 0
    %vm474 = vcmask 1041408
    %v476 = vsel %vm474, %v466, 0
    %478 = vmatprep.subr.bf16.mxu0 0
    %479 = vmatpush1.bf16.msra.mxu0 0
    %480 = vmatprep.subr.bf16.mxu0 0
    %481 = vmatpush1.bf16.msra.mxu0 0
    %482 = vmatprep.subr.bf16.mxu0 0
    %483 = vmatpush1.bf16.msra.mxu0 0
    %484 = vmatprep.subr.bf16.mxu0 0
    %485 = vmatpush1.bf16.msra.mxu0 0
    %486 = vmatprep.subr.bf16.mxu0 0
    %487 = vmatpush1.bf16.msra.mxu0 0
    %488 = vmatprep.subr.bf16.mxu0 0
    %489 = vmatpush1.bf16.msra.mxu0 0
    %490 = vmatprep.subr.bf16.mxu0 0
    %491 = vmatpush1.bf16.msra.mxu0 0
    %492 = vmatprep.subr.bf16.mxu0 0
    %493 = vmatpush1.bf16.msra.mxu0 %v476
    %494 = vmatprep.subr.bf16.mxu0 0
    %495 = vmatpush2.bf16.msra.mxu0 0
    %496 = vmatprep.subr.bf16.mxu0 0
    %497 = vmatpush2.bf16.msra.mxu0 0
    %498 = vmatprep.subr.bf16.mxu0 0
    %499 = vmatpush2.bf16.msra.mxu0 0
    %500 = vmatprep.subr.bf16.mxu0 0
    %501 = vmatpush2.bf16.msra.mxu0 0
    %502 = vmatprep.subr.bf16.mxu0 0
    %503 = vmatpush2.bf16.msra.mxu0 0
    %504 = vmatprep.subr.bf16.mxu0 0
    %505 = vmatpush2.bf16.msra.mxu0 0
    %506 = vmatprep.subr.bf16.mxu0 0
    %507 = vmatpush2.bf16.msra.mxu0 0
    %508 = vmatprep.subr.bf16.mxu0 0
    %509 = vmatpush2.bf16.msra.mxu0 0
    %510 = vmatprep.mubr.bf16.mxu0 0
    %511 = vmatmul.mubr.bf16.gmra.mxu0 %v469
    %v512 = vpop.f32.mrf.mxu0
    %v513 = vadd.f32 0.0, %v512
    %v514 = vpop.f32.mrf.mxu0
    %v515 = vpop.f32.mrf.mxu0
    %v516 = vadd.f32 0.0, %v515
    %v517 = vpop.f32.mrf.mxu0
    %518 = vmatprep.mubr.bf16.mxu0 0
    %519 = vmatmul.mubr.bf16.gmra.mxu0 %v472
    %v520 = vpop.f32.mrf.mxu0
    %v521 = vadd.f32 0.0, %v520
    %v522 = vpop.f32.mrf.mxu0
    %v523 = vpop.f32.mrf.mxu0
    %v524 = vadd.f32 0.0, %v523
    %v525 = vpop.f32.mrf.mxu0
    %526 = vdwg.mxu0
    %v528 = vsel %vm467, %v209, 0
    %v531 = vsel %vm467, %v210, 0
    %v534 = vsel %vm474, %v464, 0
    %536 = vmatprep.subr.bf16.mxu0 0
    %537 = vmatpush1.bf16.msra.mxu0 0
    %538 = vmatprep.subr.bf16.mxu0 0
    %539 = vmatpush1.bf16.msra.mxu0 0
    %540 = vmatprep.subr.bf16.mxu0 0
    %541 = vmatpush1.bf16.msra.mxu0 0
    %542 = vmatprep.subr.bf16.mxu0 0
    %543 = vmatpush1.bf16.msra.mxu0 0
    %544 = vmatprep.subr.bf16.mxu0 0
    %545 = vmatpush1.bf16.msra.mxu0 0
    %546 = vmatprep.subr.bf16.mxu0 0
    %547 = vmatpush1.bf16.msra.mxu0 0
    %548 = vmatprep.subr.bf16.mxu0 0
    %549 = vmatpush1.bf16.msra.mxu0 0
    %550 = vmatprep.subr.bf16.mxu0 0
    %551 = vmatpush1.bf16.msra.mxu0 %v534
    %552 = vmatprep.subr.bf16.mxu0 0
    %553 = vmatpush2.bf16.msra.mxu0 0
    %554 = vmatprep.subr.bf16.mxu0 0
    %555 = vmatpush2.bf16.msra.mxu0 0
    %556 = vmatprep.subr.bf16.mxu0 0
    %557 = vmatpush2.bf16.msra.mxu0 0
    %558 = vmatprep.subr.bf16.mxu0 0
    %559 = vmatpush2.bf16.msra.mxu0 0
    %560 = vmatprep.subr.bf16.mxu0 0
    %561 = vmatpush2.bf16.msra.mxu0 0
    %562 = vmatprep.subr.bf16.mxu0 0
    %563 = vmatpush2.bf16.msra.mxu0 0
    %564 = vmatprep.subr.bf16.mxu0 0
    %565 = vmatpush2.bf16.msra.mxu0 0
    %566 = vmatprep.subr.bf16.mxu0 0
    %567 = vmatpush2.bf16.msra.mxu0 0
    %568 = vmatprep.mubr.bf16.mxu0 0
    %569 = vmatmul.mubr.bf16.gmra.mxu0 %v528
    %v570 = vpop.f32.mrf.mxu0
    %v571 = vadd.f32 %v513, %v570
    %v572 = vpop.f32.mrf.mxu0
    %v573 = vpop.f32.mrf.mxu0
    %v574 = vadd.f32 %v516, %v573
    %v575 = vpop.f32.mrf.mxu0
    %576 = vmatprep.mubr.bf16.mxu0 0
    %577 = vmatmul.mubr.bf16.gmra.mxu0 %v531
    %v578 = vpop.f32.mrf.mxu0
    %v579 = vadd.f32 %v521, %v578
    %v580 = vpop.f32.mrf.mxu0
    %v581 = vpop.f32.mrf.mxu0
    %v582 = vadd.f32 %v524, %v581
    %v583 = vpop.f32.mrf.mxu0
    %584 = vdwg.mxu0
    %s585 = scalar_lea.vmem %s3, 4
    %v586 = vld [vmem:[%s585] sm:$0x3]
    %v588 = vsel %vm467, %v289, 0
    %v591 = vsel %vm467, %v290, 0
    %v594 = vsel %vm474, %v586, 0
    %596 = vmatprep.subr.bf16.mxu0 0
    %597 = vmatpush1.bf16.msra.mxu0 0
    %598 = vmatprep.subr.bf16.mxu0 0
    %599 = vmatpush1.bf16.msra.mxu0 0
    %600 = vmatprep.subr.bf16.mxu0 0
    %601 = vmatpush1.bf16.msra.mxu0 0
    %602 = vmatprep.subr.bf16.mxu0 0
    %603 = vmatpush1.bf16.msra.mxu0 0
    %604 = vmatprep.subr.bf16.mxu0 0
    %605 = vmatpush1.bf16.msra.mxu0 0
    %606 = vmatprep.subr.bf16.mxu0 0
    %607 = vmatpush1.bf16.msra.mxu0 0
    %608 = vmatprep.subr.bf16.mxu0 0
    %609 = vmatpush1.bf16.msra.mxu0 0
    %610 = vmatprep.subr.bf16.mxu0 0
    %611 = vmatpush1.bf16.msra.mxu0 %v594
    %612 = vmatprep.subr.bf16.mxu0 0
    %613 = vmatpush2.bf16.msra.mxu0 0
    %614 = vmatprep.subr.bf16.mxu0 0
    %615 = vmatpush2.bf16.msra.mxu0 0
    %616 = vmatprep.subr.bf16.mxu0 0
    %617 = vmatpush2.bf16.msra.mxu0 0
    %618 = vmatprep.subr.bf16.mxu0 0
    %619 = vmatpush2.bf16.msra.mxu0 0
    %620 = vmatprep.subr.bf16.mxu0 0
    %621 = vmatpush2.bf16.msra.mxu0 0
    %622 = vmatprep.subr.bf16.mxu0 0
    %623 = vmatpush2.bf16.msra.mxu0 0
    %624 = vmatprep.subr.bf16.mxu0 0
    %625 = vmatpush2.bf16.msra.mxu0 0
    %626 = vmatprep.subr.bf16.mxu0 0
    %627 = vmatpush2.bf16.msra.mxu0 0
    %628 = vmatprep.mubr.bf16.mxu0 0
    %629 = vmatmul.mubr.bf16.gmra.mxu0 %v588
    %v630 = vpop.f32.mrf.mxu0
    %v631 = vadd.f32 0.0, %v630
    %v632 = vpop.f32.mrf.mxu0
    %v633 = vpop.f32.mrf.mxu0
    %v634 = vadd.f32 0.0, %v633
    %v635 = vpop.f32.mrf.mxu0
    %636 = vmatprep.mubr.bf16.mxu0 0
    %637 = vmatmul.mubr.bf16.gmra.mxu0 %v591
    %v638 = vpop.f32.mrf.mxu0
    %v639 = vadd.f32 0.0, %v638
    %v640 = vpop.f32.mrf.mxu0
    %v641 = vpop.f32.mrf.mxu0
    %v642 = vadd.f32 0.0, %v641
    %v643 = vpop.f32.mrf.mxu0
    %644 = vdwg.mxu0
    %v645 = vadd.f32 %v571, %v631
    %v646 = vadd.f32 %v574, %v634
    %v647 = vadd.f32 %v579, %v639
    %v648 = vadd.f32 %v582, %v642
    %s649 = scalar_lea.vmem %s3, 6
    %v650 = vld [vmem:[%s649] sm:$0x3]
    %v652 = vsel %vm467, %v329, 0
    %v655 = vsel %vm467, %v330, 0
    %v658 = vsel %vm474, %v650, 0
    %660 = vmatprep.subr.bf16.mxu0 0
    %661 = vmatpush1.bf16.msra.mxu0 0
    %662 = vmatprep.subr.bf16.mxu0 0
    %663 = vmatpush1.bf16.msra.mxu0 0
    %664 = vmatprep.subr.bf16.mxu0 0
    %665 = vmatpush1.bf16.msra.mxu0 0
    %666 = vmatprep.subr.bf16.mxu0 0
    %667 = vmatpush1.bf16.msra.mxu0 0
    %668 = vmatprep.subr.bf16.mxu0 0
    %669 = vmatpush1.bf16.msra.mxu0 0
    %670 = vmatprep.subr.bf16.mxu0 0
    %671 = vmatpush1.bf16.msra.mxu0 0
    %672 = vmatprep.subr.bf16.mxu0 0
    %673 = vmatpush1.bf16.msra.mxu0 0
    %674 = vmatprep.subr.bf16.mxu0 0
    %675 = vmatpush1.bf16.msra.mxu0 %v658
    %676 = vmatprep.subr.bf16.mxu0 0
    %677 = vmatpush2.bf16.msra.mxu0 0
    %678 = vmatprep.subr.bf16.mxu0 0
    %679 = vmatpush2.bf16.msra.mxu0 0
    %680 = vmatprep.subr.bf16.mxu0 0
    %681 = vmatpush2.bf16.msra.mxu0 0
    %682 = vmatprep.subr.bf16.mxu0 0
    %683 = vmatpush2.bf16.msra.mxu0 0
    %684 = vmatprep.subr.bf16.mxu0 0
    %685 = vmatpush2.bf16.msra.mxu0 0
    %686 = vmatprep.subr.bf16.mxu0 0
    %687 = vmatpush2.bf16.msra.mxu0 0
    %688 = vmatprep.subr.bf16.mxu0 0
    %689 = vmatpush2.bf16.msra.mxu0 0
    %690 = vmatprep.subr.bf16.mxu0 0
    %691 = vmatpush2.bf16.msra.mxu0 0
    %692 = vmatprep.mubr.bf16.mxu0 0
    %693 = vmatmul.mubr.bf16.gmra.mxu0 %v652
    %v694 = vpop.f32.mrf.mxu0
    %v695 = vadd.f32 0.0, %v694
    %v696 = vpop.f32.mrf.mxu0
    %v697 = vpop.f32.mrf.mxu0
    %v698 = vadd.f32 0.0, %v697
    %v699 = vpop.f32.mrf.mxu0
    %700 = vmatprep.mubr.bf16.mxu0 0
    %701 = vmatmul.mubr.bf16.gmra.mxu0 %v655
    %v702 = vpop.f32.mrf.mxu0
    %v703 = vadd.f32 0.0, %v702
    %v704 = vpop.f32.mrf.mxu0
    %v705 = vpop.f32.mrf.mxu0
    %v706 = vadd.f32 0.0, %v705
    %v707 = vpop.f32.mrf.mxu0
    %708 = vdwg.mxu0
    %v709 = vadd.f32 %v645, %v695
    %v710 = vadd.f32 %v646, %v698
    %v711 = vadd.f32 %v647, %v703
    %v712 = vadd.f32 %v648, %v706
    %s713 = scalar_lea.vmem %s3, 8
    %v714 = vld [vmem:[%s713] sm:$0x3]
    %v719 = vunpack.c.l.b16 %v162
    %v720 = vunpack.c.l.b16 %v163
    %v721 = vunpack.c.l.b16 %v164
    %v722 = vunpack.c.l.b16 %v165
    %v723 = vpack.c.b16 %v720, %v719
    %v724 = vpack.c.b16 %v722, %v721
    %v726 = vsel %vm467, %v723, 0
    %v729 = vsel %vm467, %v724, 0
    %v732 = vsel %vm474, %v714, 0
    %734 = vmatprep.subr.bf16.mxu0 0
    %735 = vmatpush1.bf16.msra.mxu0 0
    %736 = vmatprep.subr.bf16.mxu0 0
    %737 = vmatpush1.bf16.msra.mxu0 0
    %738 = vmatprep.subr.bf16.mxu0 0
    %739 = vmatpush1.bf16.msra.mxu0 0
    %740 = vmatprep.subr.bf16.mxu0 0
    %741 = vmatpush1.bf16.msra.mxu0 0
    %742 = vmatprep.subr.bf16.mxu0 0
    %743 = vmatpush1.bf16.msra.mxu0 0
    %744 = vmatprep.subr.bf16.mxu0 0
    %745 = vmatpush1.bf16.msra.mxu0 0
    %746 = vmatprep.subr.bf16.mxu0 0
    %747 = vmatpush1.bf16.msra.mxu0 0
    %748 = vmatprep.subr.bf16.mxu0 0
    %749 = vmatpush1.bf16.msra.mxu0 %v732
    %750 = vmatprep.subr.bf16.mxu0 0
    %751 = vmatpush2.bf16.msra.mxu0 0
    %752 = vmatprep.subr.bf16.mxu0 0
    %753 = vmatpush2.bf16.msra.mxu0 0
    %754 = vmatprep.subr.bf16.mxu0 0
    %755 = vmatpush2.bf16.msra.mxu0 0
    %756 = vmatprep.subr.bf16.mxu0 0
    %757 = vmatpush2.bf16.msra.mxu0 0
    %758 = vmatprep.subr.bf16.mxu0 0
    %759 = vmatpush2.bf16.msra.mxu0 0
    %760 = vmatprep.subr.bf16.mxu0 0
    %761 = vmatpush2.bf16.msra.mxu0 0
    %762 = vmatprep.subr.bf16.mxu0 0
    %763 = vmatpush2.bf16.msra.mxu0 0
    %764 = vmatprep.subr.bf16.mxu0 0
    %765 = vmatpush2.bf16.msra.mxu0 0
    %766 = vmatprep.mubr.bf16.mxu0 0
    %767 = vmatmul.mubr.bf16.gmra.mxu0 %v726
    %v768 = vpop.f32.mrf.mxu0
    %v769 = vadd.f32 0.0, %v768
    %v770 = vpop.f32.mrf.mxu0
    %v771 = vpop.f32.mrf.mxu0
    %v772 = vadd.f32 0.0, %v771
    %v773 = vpop.f32.mrf.mxu0
    %774 = vmatprep.mubr.bf16.mxu0 0
    %775 = vmatmul.mubr.bf16.gmra.mxu0 %v729
    %v776 = vpop.f32.mrf.mxu0
    %v777 = vadd.f32 0.0, %v776
    %v778 = vpop.f32.mrf.mxu0
    %v779 = vpop.f32.mrf.mxu0
    %v780 = vadd.f32 0.0, %v779
    %v781 = vpop.f32.mrf.mxu0
    %782 = vdwg.mxu0
    %v783 = vadd.f32 %v709, %v769
    %v784 = vadd.f32 %v710, %v772
    %v785 = vadd.f32 %v711, %v777
    %v786 = vadd.f32 %v712, %v780
    %s787 = scalar_lea.vmem %s3, 10
    %v788 = vld [vmem:[%s787] sm:$0x3]
    %v790 = vsel %vm467, %v369, 0
    %v793 = vsel %vm467, %v370, 0
    %v796 = vsel %vm474, %v788, 0
    %798 = vmatprep.subr.bf16.mxu0 0
    %799 = vmatpush1.bf16.msra.mxu0 0
    %800 = vmatprep.subr.bf16.mxu0 0
    %801 = vmatpush1.bf16.msra.mxu0 0
    %802 = vmatprep.subr.bf16.mxu0 0
    %803 = vmatpush1.bf16.msra.mxu0 0
    %804 = vmatprep.subr.bf16.mxu0 0
    %805 = vmatpush1.bf16.msra.mxu0 0
    %806 = vmatprep.subr.bf16.mxu0 0
    %807 = vmatpush1.bf16.msra.mxu0 0
    %808 = vmatprep.subr.bf16.mxu0 0
    %809 = vmatpush1.bf16.msra.mxu0 0
    %810 = vmatprep.subr.bf16.mxu0 0
    %811 = vmatpush1.bf16.msra.mxu0 0
    %812 = vmatprep.subr.bf16.mxu0 0
    %813 = vmatpush1.bf16.msra.mxu0 %v796
    %814 = vmatprep.subr.bf16.mxu0 0
    %815 = vmatpush2.bf16.msra.mxu0 0
    %816 = vmatprep.subr.bf16.mxu0 0
    %817 = vmatpush2.bf16.msra.mxu0 0
    %818 = vmatprep.subr.bf16.mxu0 0
    %819 = vmatpush2.bf16.msra.mxu0 0
    %820 = vmatprep.subr.bf16.mxu0 0
    %821 = vmatpush2.bf16.msra.mxu0 0
    %822 = vmatprep.subr.bf16.mxu0 0
    %823 = vmatpush2.bf16.msra.mxu0 0
    %824 = vmatprep.subr.bf16.mxu0 0
    %825 = vmatpush2.bf16.msra.mxu0 0
    %826 = vmatprep.subr.bf16.mxu0 0
    %827 = vmatpush2.bf16.msra.mxu0 0
    %828 = vmatprep.subr.bf16.mxu0 0
    %829 = vmatpush2.bf16.msra.mxu0 0
    %830 = vmatprep.mubr.bf16.mxu0 0
    %831 = vmatmul.mubr.bf16.gmra.mxu0 %v790
    %v832 = vpop.f32.mrf.mxu0
    %v833 = vadd.f32 0.0, %v832
    %v834 = vpop.f32.mrf.mxu0
    %v835 = vpop.f32.mrf.mxu0
    %v836 = vadd.f32 0.0, %v835
    %v837 = vpop.f32.mrf.mxu0
    %838 = vmatprep.mubr.bf16.mxu0 0
    %839 = vmatmul.mubr.bf16.gmra.mxu0 %v793
    %v840 = vpop.f32.mrf.mxu0
    %v841 = vadd.f32 0.0, %v840
    %v842 = vpop.f32.mrf.mxu0
    %v843 = vpop.f32.mrf.mxu0
    %v844 = vadd.f32 0.0, %v843
    %v845 = vpop.f32.mrf.mxu0
    %846 = vdwg.mxu0
    %v847 = vadd.f32 %v783, %v833
    %v848 = vadd.f32 %v784, %v836
    %v849 = vadd.f32 %v785, %v841
    %v850 = vadd.f32 %v786, %v844
    %s851 = scalar_lea.vmem %s3, 12
    %v852 = vld [vmem:[%s851] sm:$0x3]
    %v854 = vsel %vm467, %v400, 0
    %v857 = vsel %vm467, %v401, 0
    %v860 = vsel %vm474, %v852, 0
    %862 = vmatprep.subr.bf16.mxu0 0
    %863 = vmatpush1.bf16.msra.mxu0 0
    %864 = vmatprep.subr.bf16.mxu0 0
    %865 = vmatpush1.bf16.msra.mxu0 0
    %866 = vmatprep.subr.bf16.mxu0 0
    %867 = vmatpush1.bf16.msra.mxu0 0
    %868 = vmatprep.subr.bf16.mxu0 0
    %869 = vmatpush1.bf16.msra.mxu0 0
    %870 = vmatprep.subr.bf16.mxu0 0
    %871 = vmatpush1.bf16.msra.mxu0 0
    %872 = vmatprep.subr.bf16.mxu0 0
    %873 = vmatpush1.bf16.msra.mxu0 0
    %874 = vmatprep.subr.bf16.mxu0 0
    %875 = vmatpush1.bf16.msra.mxu0 0
    %876 = vmatprep.subr.bf16.mxu0 0
    %877 = vmatpush1.bf16.msra.mxu0 %v860
    %878 = vmatprep.subr.bf16.mxu0 0
    %879 = vmatpush2.bf16.msra.mxu0 0
    %880 = vmatprep.subr.bf16.mxu0 0
    %881 = vmatpush2.bf16.msra.mxu0 0
    %882 = vmatprep.subr.bf16.mxu0 0
    %883 = vmatpush2.bf16.msra.mxu0 0
    %884 = vmatprep.subr.bf16.mxu0 0
    %885 = vmatpush2.bf16.msra.mxu0 0
    %886 = vmatprep.subr.bf16.mxu0 0
    %887 = vmatpush2.bf16.msra.mxu0 0
    %888 = vmatprep.subr.bf16.mxu0 0
    %889 = vmatpush2.bf16.msra.mxu0 0
    %890 = vmatprep.subr.bf16.mxu0 0
    %891 = vmatpush2.bf16.msra.mxu0 0
    %892 = vmatprep.subr.bf16.mxu0 0
    %893 = vmatpush2.bf16.msra.mxu0 0
    %894 = vmatprep.mubr.bf16.mxu0 0
    %895 = vmatmul.mubr.bf16.gmra.mxu0 %v854
    %v896 = vpop.f32.mrf.mxu0
    %v897 = vadd.f32 0.0, %v896
    %v898 = vpop.f32.mrf.mxu0
    %v899 = vpop.f32.mrf.mxu0
    %v900 = vadd.f32 0.0, %v899
    %v901 = vpop.f32.mrf.mxu0
    %902 = vmatprep.mubr.bf16.mxu0 0
    %903 = vmatmul.mubr.bf16.gmra.mxu0 %v857
    %v904 = vpop.f32.mrf.mxu0
    %v905 = vadd.f32 0.0, %v904
    %v906 = vpop.f32.mrf.mxu0
    %v907 = vpop.f32.mrf.mxu0
    %v908 = vadd.f32 0.0, %v907
    %v909 = vpop.f32.mrf.mxu0
    %910 = vdwg.mxu0
    %v911 = vadd.f32 %v847, %v897
    %v912 = vadd.f32 %v848, %v900
    %v913 = vadd.f32 %v849, %v905
    %v914 = vadd.f32 %v850, %v908
    %s915 = scalar_lea.vmem %s3, 14
    %v916 = vld [vmem:[%s915] sm:$0x3]
    %v918 = vsel %vm467, %v431, 0
    %v921 = vsel %vm467, %v432, 0
    %v924 = vsel %vm474, %v916, 0
    %926 = vmatprep.subr.bf16.mxu0 0
    %927 = vmatpush1.bf16.msra.mxu0 0
    %928 = vmatprep.subr.bf16.mxu0 0
    %929 = vmatpush1.bf16.msra.mxu0 0
    %930 = vmatprep.subr.bf16.mxu0 0
    %931 = vmatpush1.bf16.msra.mxu0 0
    %932 = vmatprep.subr.bf16.mxu0 0
    %933 = vmatpush1.bf16.msra.mxu0 0
    %934 = vmatprep.subr.bf16.mxu0 0
    %935 = vmatpush1.bf16.msra.mxu0 0
    %936 = vmatprep.subr.bf16.mxu0 0
    %937 = vmatpush1.bf16.msra.mxu0 0
    %938 = vmatprep.subr.bf16.mxu0 0
    %939 = vmatpush1.bf16.msra.mxu0 0
    %940 = vmatprep.subr.bf16.mxu0 0
    %941 = vmatpush1.bf16.msra.mxu0 %v924
    %942 = vmatprep.subr.bf16.mxu0 0
    %943 = vmatpush2.bf16.msra.mxu0 0
    %944 = vmatprep.subr.bf16.mxu0 0
    %945 = vmatpush2.bf16.msra.mxu0 0
    %946 = vmatprep.subr.bf16.mxu0 0
    %947 = vmatpush2.bf16.msra.mxu0 0
    %948 = vmatprep.subr.bf16.mxu0 0
    %949 = vmatpush2.bf16.msra.mxu0 0
    %950 = vmatprep.subr.bf16.mxu0 0
    %951 = vmatpush2.bf16.msra.mxu0 0
    %952 = vmatprep.subr.bf16.mxu0 0
    %953 = vmatpush2.bf16.msra.mxu0 0
    %954 = vmatprep.subr.bf16.mxu0 0
    %955 = vmatpush2.bf16.msra.mxu0 0
    %956 = vmatprep.subr.bf16.mxu0 0
    %957 = vmatpush2.bf16.msra.mxu0 0
    %958 = vmatprep.mubr.bf16.mxu0 0
    %959 = vmatmul.mubr.bf16.gmra.mxu0 %v918
    %v960 = vpop.f32.mrf.mxu0
    %v961 = vadd.f32 0.0, %v960
    %v962 = vpop.f32.mrf.mxu0
    %v963 = vpop.f32.mrf.mxu0
    %v964 = vadd.f32 0.0, %v963
    %v965 = vpop.f32.mrf.mxu0
    %966 = vmatprep.mubr.bf16.mxu0 0
    %967 = vmatmul.mubr.bf16.gmra.mxu0 %v921
    %v968 = vpop.f32.mrf.mxu0
    %v969 = vadd.f32 0.0, %v968
    %v970 = vpop.f32.mrf.mxu0
    %v971 = vpop.f32.mrf.mxu0
    %v972 = vadd.f32 0.0, %v971
    %v973 = vpop.f32.mrf.mxu0
    %974 = vdwg.mxu0
    %v975 = vadd.f32 %v911, %v961
    %v976 = vadd.f32 %v912, %v964
    %v977 = vadd.f32 %v913, %v969
    %v978 = vadd.f32 %v914, %v972
    %s979 = scalar_lea.vmem %s3, 16
    %v980 = vld [vmem:[%s979] sm:$0x3]
    %v982 = vsel %vm467, %v462, 0
    %v985 = vsel %vm467, %v463, 0
    %v988 = vsel %vm474, %v980, 0
    %990 = vmatprep.subr.bf16.mxu0 0
    %991 = vmatpush1.bf16.msra.mxu0 0
    %992 = vmatprep.subr.bf16.mxu0 0
    %993 = vmatpush1.bf16.msra.mxu0 0
    %994 = vmatprep.subr.bf16.mxu0 0
    %995 = vmatpush1.bf16.msra.mxu0 0
    %996 = vmatprep.subr.bf16.mxu0 0
    %997 = vmatpush1.bf16.msra.mxu0 0
    %998 = vmatprep.subr.bf16.mxu0 0
    %999 = vmatpush1.bf16.msra.mxu0 0
    %1000 = vmatprep.subr.bf16.mxu0 0
    %1001 = vmatpush1.bf16.msra.mxu0 0
    %1002 = vmatprep.subr.bf16.mxu0 0
    %1003 = vmatpush1.bf16.msra.mxu0 0
    %1004 = vmatprep.subr.bf16.mxu0 0
    %1005 = vmatpush1.bf16.msra.mxu0 %v988
    %1006 = vmatprep.subr.bf16.mxu0 0
    %1007 = vmatpush2.bf16.msra.mxu0 0
    %1008 = vmatprep.subr.bf16.mxu0 0
    %1009 = vmatpush2.bf16.msra.mxu0 0
    %1010 = vmatprep.subr.bf16.mxu0 0
    %1011 = vmatpush2.bf16.msra.mxu0 0
    %1012 = vmatprep.subr.bf16.mxu0 0
    %1013 = vmatpush2.bf16.msra.mxu0 0
    %1014 = vmatprep.subr.bf16.mxu0 0
    %1015 = vmatpush2.bf16.msra.mxu0 0
    %1016 = vmatprep.subr.bf16.mxu0 0
    %1017 = vmatpush2.bf16.msra.mxu0 0
    %1018 = vmatprep.subr.bf16.mxu0 0
    %1019 = vmatpush2.bf16.msra.mxu0 0
    %1020 = vmatprep.subr.bf16.mxu0 0
    %1021 = vmatpush2.bf16.msra.mxu0 0
    %1022 = vmatprep.mubr.bf16.mxu0 0
    %1023 = vmatmul.mubr.bf16.gmra.mxu0 %v982
    %v1024 = vpop.f32.mrf.mxu0
    %v1025 = vadd.f32 0.0, %v1024
    %v1026 = vpop.f32.mrf.mxu0
    %v1027 = vpop.f32.mrf.mxu0
    %v1028 = vadd.f32 0.0, %v1027
    %v1029 = vpop.f32.mrf.mxu0
    %1030 = vmatprep.mubr.bf16.mxu0 0
    %1031 = vmatmul.mubr.bf16.gmra.mxu0 %v985
    %v1032 = vpop.f32.mrf.mxu0
    %v1033 = vadd.f32 0.0, %v1032
    %v1034 = vpop.f32.mrf.mxu0
    %v1035 = vpop.f32.mrf.mxu0
    %v1036 = vadd.f32 0.0, %v1035
    %v1037 = vpop.f32.mrf.mxu0
    %1038 = vdwg.mxu0
    %v1039 = vadd.f32 %v975, %v1025
    %v1040 = vadd.f32 %v976, %v1028
    %v1041 = vadd.f32 %v977, %v1033
    %v1042 = vadd.f32 %v978, %v1036
    %v1043 = vld [vmem:[#allocation3] sm:$0x1]
    %v1045 = vlaneseq
    %v1046 = vshrl.u32 %v1045, 7
    %v1047 = vsub.s32 0, %v1046
    %v1048 = vrot.slane %v1043, %v1047
    %v1050 = vadd.f32 %v1039, %v1048
    %v1051 = vadd.f32 %v1040, %v1048
    %v1052 = vadd.f32 %v1041, %v1048
    %v1053 = vadd.f32 %v1042, %v1048
    %v1054 = vmax.f32 %v1050, 0.0
    %v1055 = vmax.f32 %v1051, 0.0
    %v1056 = vmax.f32 %v1052, 0.0
    %v1057 = vmax.f32 %v1053, 0.0
    %v1058 = vrot.slane %v1054, 3
    %v1059 = vrot.slane %v1055, 3
    %v1060 = vrot.slane %v1056, 3
    %v1061 = vrot.slane %v1057, 3
    %v1062 = vsel %vm176, %v1060, %v1061
    %v1063 = vsel %vm176, %v1059, %v1060
    %v1064 = vsel %vm176, %v1058, %v1059
    %v1065 = vsel %vm176, %v1061, %v1058
    %v1066 = vmul.f32 %v1065, %v188
    %v1067 = vmul.f32 %v1064, %v193
    %v1068 = vmul.f32 %v1063, %v198
    %v1069 = vmul.f32 %v1062, %v203
    %v1070 = vpack.c.bf16 %v1067, %v1066
    %v1071 = vpack.c.bf16 %v1069, %v1068
    %v1072 = vrot.slane %v1054, 4
    %v1073 = vrot.slane %v1055, 4
    %v1074 = vrot.slane %v1056, 4
    %v1075 = vrot.slane %v1057, 4
    %v1076 = vsel %vm215, %v1074, %v1075
    %v1077 = vsel %vm215, %v1073, %v1074
    %v1078 = vsel %vm215, %v1072, %v1073
    %v1079 = vsel %vm215, %v1075, %v1072
    %v1080 = vmul.f32 %v1079, %v228
    %v1081 = vmul.f32 %v1078, %v233
    %v1082 = vmul.f32 %v1077, %v238
    %v1083 = vmul.f32 %v1076, %v243
    %v1084 = vpack.c.bf16 %v1081, %v1080
    %v1085 = vpack.c.bf16 %v1083, %v1082
    %v1086 = vrot.slane %v1054, 5
    %v1087 = vrot.slane %v1055, 5
    %v1088 = vrot.slane %v1056, 5
    %v1089 = vrot.slane %v1057, 5
    %v1090 = vsel %vm255, %v1088, %v1089
    %v1091 = vsel %vm255, %v1087, %v1088
    %v1092 = vsel %vm255, %v1086, %v1087
    %v1093 = vsel %vm255, %v1089, %v1086
    %v1094 = vmul.f32 %v1093, %v268
    %v1095 = vmul.f32 %v1092, %v273
    %v1096 = vmul.f32 %v1091, %v278
    %v1097 = vmul.f32 %v1090, %v283
    %v1098 = vpack.c.bf16 %v1095, %v1094
    %v1099 = vpack.c.bf16 %v1097, %v1096
    %v1100 = vrot.slane %v1054, 7
    %v1101 = vrot.slane %v1055, 7
    %v1102 = vrot.slane %v1056, 7
    %v1103 = vrot.slane %v1057, 7
    %v1104 = vsel %vm295, %v1102, %v1103
    %v1105 = vsel %vm295, %v1101, %v1102
    %v1106 = vsel %vm295, %v1100, %v1101
    %v1107 = vsel %vm295, %v1103, %v1100
    %v1108 = vmul.f32 %v1107, %v308
    %v1109 = vmul.f32 %v1106, %v313
    %v1110 = vmul.f32 %v1105, %v318
    %v1111 = vmul.f32 %v1104, %v323
    %v1112 = vpack.c.bf16 %v1109, %v1108
    %v1113 = vpack.c.bf16 %v1111, %v1110
    %v1114 = vpack.c.bf16 %v1055, %v1054
    %v1115 = vpack.c.bf16 %v1057, %v1056
    %v1116 = vrot.slane %v1054, 1
    %v1117 = vrot.slane %v1055, 1
    %v1118 = vrot.slane %v1056, 1
    %v1119 = vrot.slane %v1057, 1
    %v1120 = vsel %vm335, %v1118, %v1119
    %v1121 = vsel %vm335, %v1117, %v1118
    %v1122 = vsel %vm335, %v1116, %v1117
    %v1123 = vsel %vm335, %v1119, %v1116
    %v1124 = vmul.f32 %v1122, %v348
    %v1125 = vmul.f32 %v1121, %v353
    %v1126 = vmul.f32 %v1120, %v358
    %v1127 = vmul.f32 %v1123, %v363
    %v1128 = vpack.c.bf16 %v1125, %v1124
    %v1129 = vpack.c.bf16 %v1127, %v1126
    %v1130 = vmul.f32 %v1064, %v379
    %v1131 = vmul.f32 %v1063, %v384
    %v1132 = vmul.f32 %v1062, %v389
    %v1133 = vmul.f32 %v1065, %v394
    %v1134 = vpack.c.bf16 %v1131, %v1130
    %v1135 = vpack.c.bf16 %v1133, %v1132
    %v1136 = vmul.f32 %v1078, %v410
    %v1137 = vmul.f32 %v1077, %v415
    %v1138 = vmul.f32 %v1076, %v420
    %v1139 = vmul.f32 %v1079, %v425
    %v1140 = vpack.c.bf16 %v1137, %v1136
    %v1141 = vpack.c.bf16 %v1139, %v1138
    %v1142 = vmul.f32 %v1092, %v441
    %v1143 = vmul.f32 %v1091, %v446
    %v1144 = vmul.f32 %v1090, %v451
    %v1145 = vmul.f32 %v1093, %v456
    %v1146 = vpack.c.bf16 %v1143, %v1142
    %v1147 = vpack.c.bf16 %v1145, %v1144
    %v1148 = vld [vmem:[%s5] sm:$0xf]
    %v1149 = vld [vmem:[%s5 + $0x4] sm:$0xf]
    %v1150 = vld [vmem:[%s5 + $0x8] sm:$0xf]
    %v1151 = vld [vmem:[%s5 + $0xc] sm:$0xf]
    %s1152 = scalar_lea.vmem %s5, 16
    %v1153 = vld [vmem:[%s1152] sm:$0xf]
    %v1154 = vld [vmem:[%s1152 + $0x4] sm:$0xf]
    %v1155 = vld [vmem:[%s1152 + $0x8] sm:$0xf]
    %v1156 = vld [vmem:[%s1152 + $0xc] sm:$0xf]
    %v1161 = vunpack.c.l.b16 %v1153
    %v1162 = vunpack.c.l.b16 %v1154
    %v1163 = vunpack.c.l.b16 %v1155
    %v1164 = vunpack.c.l.b16 %v1156
    %v1165 = vpack.c.b16 %v1162, %v1161
    %v1166 = vpack.c.b16 %v1164, %v1163
    %vm1169 = vcmask 261120
    %v1171 = vsel %vm1169, %v1084, 0
    %v1174 = vsel %vm1169, %v1085, 0
    %1176 = vmatprep.subr.bf16.mxu0 0
    %1177 = vmatpush1.bf16.msra.mxu0 0
    %1178 = vmatprep.subr.bf16.mxu0 0
    %1179 = vmatpush1.bf16.msra.mxu0 0
    %1180 = vmatprep.subr.bf16.mxu0 0
    %1181 = vmatpush1.bf16.msra.mxu0 0
    %1182 = vmatprep.subr.bf16.mxu0 0
    %1183 = vmatpush1.bf16.msra.mxu0 0
    %1184 = vmatprep.subr.bf16.mxu0 0
    %1185 = vmatpush1.bf16.msra.mxu0 0
    %1186 = vmatprep.subr.bf16.mxu0 0
    %1187 = vmatpush1.bf16.msra.mxu0 0
    %1188 = vmatprep.subr.bf16.mxu0 0
    %1189 = vmatpush1.bf16.msra.mxu0 %v1166
    %1190 = vmatprep.subr.bf16.mxu0 0
    %1191 = vmatpush1.bf16.msra.mxu0 %v1165
    %1192 = vmatprep.subr.bf16.mxu0 0
    %1193 = vmatpush2.bf16.msra.mxu0 0
    %1194 = vmatprep.subr.bf16.mxu0 0
    %1195 = vmatpush2.bf16.msra.mxu0 0
    %1196 = vmatprep.subr.bf16.mxu0 0
    %1197 = vmatpush2.bf16.msra.mxu0 0
    %1198 = vmatprep.subr.bf16.mxu0 0
    %1199 = vmatpush2.bf16.msra.mxu0 0
    %1200 = vmatprep.subr.bf16.mxu0 0
    %1201 = vmatpush2.bf16.msra.mxu0 0
    %1202 = vmatprep.subr.bf16.mxu0 0
    %1203 = vmatpush2.bf16.msra.mxu0 0
    %1204 = vmatprep.subr.bf16.mxu0 0
    %1205 = vmatpush2.bf16.msra.mxu0 0
    %1206 = vmatprep.subr.bf16.mxu0 0
    %1207 = vmatpush2.bf16.msra.mxu0 0
    %1208 = vmatprep.mubr.bf16.mxu0 0
    %1209 = vmatmul.mubr.bf16.gmra.mxu0 %v1171
    %v1210 = vpop.f32.mrf.mxu0
    %v1211 = vadd.f32 0.0, %v1210
    %v1212 = vpop.f32.mrf.mxu0
    %v1213 = vpop.f32.mrf.mxu0
    %v1214 = vadd.f32 0.0, %v1213
    %v1215 = vpop.f32.mrf.mxu0
    %1216 = vmatprep.mubr.bf16.mxu0 0
    %1217 = vmatmul.mubr.bf16.gmra.mxu0 %v1174
    %v1218 = vpop.f32.mrf.mxu0
    %v1219 = vadd.f32 0.0, %v1218
    %v1220 = vpop.f32.mrf.mxu0
    %v1221 = vpop.f32.mrf.mxu0
    %v1222 = vadd.f32 0.0, %v1221
    %v1223 = vpop.f32.mrf.mxu0
    %1224 = vdwg.mxu0
    %v1229 = vunpack.c.l.b16 %v1148
    %v1230 = vunpack.c.l.b16 %v1149
    %v1231 = vunpack.c.l.b16 %v1150
    %v1232 = vunpack.c.l.b16 %v1151
    %v1233 = vpack.c.b16 %v1230, %v1229
    %v1234 = vpack.c.b16 %v1232, %v1231
    %v1238 = vsel %vm1169, %v1070, 0
    %v1241 = vsel %vm1169, %v1071, 0
    %1243 = vmatprep.subr.bf16.mxu0 0
    %1244 = vmatpush1.bf16.msra.mxu0 0
    %1245 = vmatprep.subr.bf16.mxu0 0
    %1246 = vmatpush1.bf16.msra.mxu0 0
    %1247 = vmatprep.subr.bf16.mxu0 0
    %1248 = vmatpush1.bf16.msra.mxu0 0
    %1249 = vmatprep.subr.bf16.mxu0 0
    %1250 = vmatpush1.bf16.msra.mxu0 0
    %1251 = vmatprep.subr.bf16.mxu0 0
    %1252 = vmatpush1.bf16.msra.mxu0 0
    %1253 = vmatprep.subr.bf16.mxu0 0
    %1254 = vmatpush1.bf16.msra.mxu0 0
    %1255 = vmatprep.subr.bf16.mxu0 0
    %1256 = vmatpush1.bf16.msra.mxu0 %v1234
    %1257 = vmatprep.subr.bf16.mxu0 0
    %1258 = vmatpush1.bf16.msra.mxu0 %v1233
    %1259 = vmatprep.subr.bf16.mxu0 0
    %1260 = vmatpush2.bf16.msra.mxu0 0
    %1261 = vmatprep.subr.bf16.mxu0 0
    %1262 = vmatpush2.bf16.msra.mxu0 0
    %1263 = vmatprep.subr.bf16.mxu0 0
    %1264 = vmatpush2.bf16.msra.mxu0 0
    %1265 = vmatprep.subr.bf16.mxu0 0
    %1266 = vmatpush2.bf16.msra.mxu0 0
    %1267 = vmatprep.subr.bf16.mxu0 0
    %1268 = vmatpush2.bf16.msra.mxu0 0
    %1269 = vmatprep.subr.bf16.mxu0 0
    %1270 = vmatpush2.bf16.msra.mxu0 0
    %1271 = vmatprep.subr.bf16.mxu0 0
    %1272 = vmatpush2.bf16.msra.mxu0 0
    %1273 = vmatprep.subr.bf16.mxu0 0
    %1274 = vmatpush2.bf16.msra.mxu0 0
    %1275 = vmatprep.mubr.bf16.mxu0 0
    %1276 = vmatmul.mubr.bf16.gmra.mxu0 %v1238
    %v1277 = vpop.f32.mrf.mxu0
    %v1278 = vadd.f32 %v1211, %v1277
    %v1279 = vpop.f32.mrf.mxu0
    %v1280 = vpop.f32.mrf.mxu0
    %v1281 = vadd.f32 %v1214, %v1280
    %v1282 = vpop.f32.mrf.mxu0
    %1283 = vmatprep.mubr.bf16.mxu0 0
    %1284 = vmatmul.mubr.bf16.gmra.mxu0 %v1241
    %v1285 = vpop.f32.mrf.mxu0
    %v1286 = vadd.f32 %v1219, %v1285
    %v1287 = vpop.f32.mrf.mxu0
    %v1288 = vpop.f32.mrf.mxu0
    %v1289 = vadd.f32 %v1222, %v1288
    %v1290 = vpop.f32.mrf.mxu0
    %1291 = vdwg.mxu0
    %s1292 = scalar_lea.vmem %s5, 32
    %v1293 = vld [vmem:[%s1292] sm:$0xf]
    %v1294 = vld [vmem:[%s1292 + $0x4] sm:$0xf]
    %v1295 = vld [vmem:[%s1292 + $0x8] sm:$0xf]
    %v1296 = vld [vmem:[%s1292 + $0xc] sm:$0xf]
    %v1301 = vunpack.c.l.b16 %v1293
    %v1302 = vunpack.c.l.b16 %v1294
    %v1303 = vunpack.c.l.b16 %v1295
    %v1304 = vunpack.c.l.b16 %v1296
    %v1305 = vpack.c.b16 %v1302, %v1301
    %v1306 = vpack.c.b16 %v1304, %v1303
    %v1310 = vsel %vm1169, %v1098, 0
    %v1313 = vsel %vm1169, %v1099, 0
    %1315 = vmatprep.subr.bf16.mxu0 0
    %1316 = vmatpush1.bf16.msra.mxu0 0
    %1317 = vmatprep.subr.bf16.mxu0 0
    %1318 = vmatpush1.bf16.msra.mxu0 0
    %1319 = vmatprep.subr.bf16.mxu0 0
    %1320 = vmatpush1.bf16.msra.mxu0 0
    %1321 = vmatprep.subr.bf16.mxu0 0
    %1322 = vmatpush1.bf16.msra.mxu0 0
    %1323 = vmatprep.subr.bf16.mxu0 0
    %1324 = vmatpush1.bf16.msra.mxu0 0
    %1325 = vmatprep.subr.bf16.mxu0 0
    %1326 = vmatpush1.bf16.msra.mxu0 0
    %1327 = vmatprep.subr.bf16.mxu0 0
    %1328 = vmatpush1.bf16.msra.mxu0 %v1306
    %1329 = vmatprep.subr.bf16.mxu0 0
    %1330 = vmatpush1.bf16.msra.mxu0 %v1305
    %1331 = vmatprep.subr.bf16.mxu0 0
    %1332 = vmatpush2.bf16.msra.mxu0 0
    %1333 = vmatprep.subr.bf16.mxu0 0
    %1334 = vmatpush2.bf16.msra.mxu0 0
    %1335 = vmatprep.subr.bf16.mxu0 0
    %1336 = vmatpush2.bf16.msra.mxu0 0
    %1337 = vmatprep.subr.bf16.mxu0 0
    %1338 = vmatpush2.bf16.msra.mxu0 0
    %1339 = vmatprep.subr.bf16.mxu0 0
    %1340 = vmatpush2.bf16.msra.mxu0 0
    %1341 = vmatprep.subr.bf16.mxu0 0
    %1342 = vmatpush2.bf16.msra.mxu0 0
    %1343 = vmatprep.subr.bf16.mxu0 0
    %1344 = vmatpush2.bf16.msra.mxu0 0
    %1345 = vmatprep.subr.bf16.mxu0 0
    %1346 = vmatpush2.bf16.msra.mxu0 0
    %1347 = vmatprep.mubr.bf16.mxu0 0
    %1348 = vmatmul.mubr.bf16.gmra.mxu0 %v1310
    %v1349 = vpop.f32.mrf.mxu0
    %v1350 = vadd.f32 0.0, %v1349
    %v1351 = vpop.f32.mrf.mxu0
    %v1352 = vpop.f32.mrf.mxu0
    %v1353 = vadd.f32 0.0, %v1352
    %v1354 = vpop.f32.mrf.mxu0
    %1355 = vmatprep.mubr.bf16.mxu0 0
    %1356 = vmatmul.mubr.bf16.gmra.mxu0 %v1313
    %v1357 = vpop.f32.mrf.mxu0
    %v1358 = vadd.f32 0.0, %v1357
    %v1359 = vpop.f32.mrf.mxu0
    %v1360 = vpop.f32.mrf.mxu0
    %v1361 = vadd.f32 0.0, %v1360
    %v1362 = vpop.f32.mrf.mxu0
    %1363 = vdwg.mxu0
    %v1364 = vadd.f32 %v1278, %v1350
    %v1365 = vadd.f32 %v1281, %v1353
    %v1366 = vadd.f32 %v1286, %v1358
    %v1367 = vadd.f32 %v1289, %v1361
    %s1368 = scalar_lea.vmem %s5, 48
    %v1369 = vld [vmem:[%s1368] sm:$0xf]
    %v1370 = vld [vmem:[%s1368 + $0x4] sm:$0xf]
    %v1371 = vld [vmem:[%s1368 + $0x8] sm:$0xf]
    %v1372 = vld [vmem:[%s1368 + $0xc] sm:$0xf]
    %v1377 = vunpack.c.l.b16 %v1369
    %v1378 = vunpack.c.l.b16 %v1370
    %v1379 = vunpack.c.l.b16 %v1371
    %v1380 = vunpack.c.l.b16 %v1372
    %v1381 = vpack.c.b16 %v1378, %v1377
    %v1382 = vpack.c.b16 %v1380, %v1379
    %v1386 = vsel %vm1169, %v1112, 0
    %v1389 = vsel %vm1169, %v1113, 0
    %1391 = vmatprep.subr.bf16.mxu0 0
    %1392 = vmatpush1.bf16.msra.mxu0 0
    %1393 = vmatprep.subr.bf16.mxu0 0
    %1394 = vmatpush1.bf16.msra.mxu0 0
    %1395 = vmatprep.subr.bf16.mxu0 0
    %1396 = vmatpush1.bf16.msra.mxu0 0
    %1397 = vmatprep.subr.bf16.mxu0 0
    %1398 = vmatpush1.bf16.msra.mxu0 0
    %1399 = vmatprep.subr.bf16.mxu0 0
    %1400 = vmatpush1.bf16.msra.mxu0 0
    %1401 = vmatprep.subr.bf16.mxu0 0
    %1402 = vmatpush1.bf16.msra.mxu0 0
    %1403 = vmatprep.subr.bf16.mxu0 0
    %1404 = vmatpush1.bf16.msra.mxu0 %v1382
    %1405 = vmatprep.subr.bf16.mxu0 0
    %1406 = vmatpush1.bf16.msra.mxu0 %v1381
    %1407 = vmatprep.subr.bf16.mxu0 0
    %1408 = vmatpush2.bf16.msra.mxu0 0
    %1409 = vmatprep.subr.bf16.mxu0 0
    %1410 = vmatpush2.bf16.msra.mxu0 0
    %1411 = vmatprep.subr.bf16.mxu0 0
    %1412 = vmatpush2.bf16.msra.mxu0 0
    %1413 = vmatprep.subr.bf16.mxu0 0
    %1414 = vmatpush2.bf16.msra.mxu0 0
    %1415 = vmatprep.subr.bf16.mxu0 0
    %1416 = vmatpush2.bf16.msra.mxu0 0
    %1417 = vmatprep.subr.bf16.mxu0 0
    %1418 = vmatpush2.bf16.msra.mxu0 0
    %1419 = vmatprep.subr.bf16.mxu0 0
    %1420 = vmatpush2.bf16.msra.mxu0 0
    %1421 = vmatprep.subr.bf16.mxu0 0
    %1422 = vmatpush2.bf16.msra.mxu0 0
    %1423 = vmatprep.mubr.bf16.mxu0 0
    %1424 = vmatmul.mubr.bf16.gmra.mxu0 %v1386
    %v1425 = vpop.f32.mrf.mxu0
    %v1426 = vadd.f32 0.0, %v1425
    %v1427 = vpop.f32.mrf.mxu0
    %v1428 = vpop.f32.mrf.mxu0
    %v1429 = vadd.f32 0.0, %v1428
    %v1430 = vpop.f32.mrf.mxu0
    %1431 = vmatprep.mubr.bf16.mxu0 0
    %1432 = vmatmul.mubr.bf16.gmra.mxu0 %v1389
    %v1433 = vpop.f32.mrf.mxu0
    %v1434 = vadd.f32 0.0, %v1433
    %v1435 = vpop.f32.mrf.mxu0
    %v1436 = vpop.f32.mrf.mxu0
    %v1437 = vadd.f32 0.0, %v1436
    %v1438 = vpop.f32.mrf.mxu0
    %1439 = vdwg.mxu0
    %v1440 = vadd.f32 %v1364, %v1426
    %v1441 = vadd.f32 %v1365, %v1429
    %v1442 = vadd.f32 %v1366, %v1434
    %v1443 = vadd.f32 %v1367, %v1437
    %s1444 = scalar_lea.vmem %s5, 64
    %v1445 = vld [vmem:[%s1444] sm:$0xf]
    %v1446 = vld [vmem:[%s1444 + $0x4] sm:$0xf]
    %v1447 = vld [vmem:[%s1444 + $0x8] sm:$0xf]
    %v1448 = vld [vmem:[%s1444 + $0xc] sm:$0xf]
    %v1453 = vunpack.c.l.b16 %v1445
    %v1454 = vunpack.c.l.b16 %v1446
    %v1455 = vunpack.c.l.b16 %v1447
    %v1456 = vunpack.c.l.b16 %v1448
    %v1457 = vpack.c.b16 %v1454, %v1453
    %v1458 = vpack.c.b16 %v1456, %v1455
    %v1462 = vsel %vm1169, %v1114, 0
    %v1465 = vsel %vm1169, %v1115, 0
    %1467 = vmatprep.subr.bf16.mxu0 0
    %1468 = vmatpush1.bf16.msra.mxu0 0
    %1469 = vmatprep.subr.bf16.mxu0 0
    %1470 = vmatpush1.bf16.msra.mxu0 0
    %1471 = vmatprep.subr.bf16.mxu0 0
    %1472 = vmatpush1.bf16.msra.mxu0 0
    %1473 = vmatprep.subr.bf16.mxu0 0
    %1474 = vmatpush1.bf16.msra.mxu0 0
    %1475 = vmatprep.subr.bf16.mxu0 0
    %1476 = vmatpush1.bf16.msra.mxu0 0
    %1477 = vmatprep.subr.bf16.mxu0 0
    %1478 = vmatpush1.bf16.msra.mxu0 0
    %1479 = vmatprep.subr.bf16.mxu0 0
    %1480 = vmatpush1.bf16.msra.mxu0 %v1458
    %1481 = vmatprep.subr.bf16.mxu0 0
    %1482 = vmatpush1.bf16.msra.mxu0 %v1457
    %1483 = vmatprep.subr.bf16.mxu0 0
    %1484 = vmatpush2.bf16.msra.mxu0 0
    %1485 = vmatprep.subr.bf16.mxu0 0
    %1486 = vmatpush2.bf16.msra.mxu0 0
    %1487 = vmatprep.subr.bf16.mxu0 0
    %1488 = vmatpush2.bf16.msra.mxu0 0
    %1489 = vmatprep.subr.bf16.mxu0 0
    %1490 = vmatpush2.bf16.msra.mxu0 0
    %1491 = vmatprep.subr.bf16.mxu0 0
    %1492 = vmatpush2.bf16.msra.mxu0 0
    %1493 = vmatprep.subr.bf16.mxu0 0
    %1494 = vmatpush2.bf16.msra.mxu0 0
    %1495 = vmatprep.subr.bf16.mxu0 0
    %1496 = vmatpush2.bf16.msra.mxu0 0
    %1497 = vmatprep.subr.bf16.mxu0 0
    %1498 = vmatpush2.bf16.msra.mxu0 0
    %1499 = vmatprep.mubr.bf16.mxu0 0
    %1500 = vmatmul.mubr.bf16.gmra.mxu0 %v1462
    %v1501 = vpop.f32.mrf.mxu0
    %v1502 = vadd.f32 0.0, %v1501
    %v1503 = vpop.f32.mrf.mxu0
    %v1504 = vpop.f32.mrf.mxu0
    %v1505 = vadd.f32 0.0, %v1504
    %v1506 = vpop.f32.mrf.mxu0
    %1507 = vmatprep.mubr.bf16.mxu0 0
    %1508 = vmatmul.mubr.bf16.gmra.mxu0 %v1465
    %v1509 = vpop.f32.mrf.mxu0
    %v1510 = vadd.f32 0.0, %v1509
    %v1511 = vpop.f32.mrf.mxu0
    %v1512 = vpop.f32.mrf.mxu0
    %v1513 = vadd.f32 0.0, %v1512
    %v1514 = vpop.f32.mrf.mxu0
    %1515 = vdwg.mxu0
    %v1516 = vadd.f32 %v1440, %v1502
    %v1517 = vadd.f32 %v1441, %v1505
    %v1518 = vadd.f32 %v1442, %v1510
    %v1519 = vadd.f32 %v1443, %v1513
    %s1520 = scalar_lea.vmem %s5, 80
    %v1521 = vld [vmem:[%s1520] sm:$0xf]
    %v1522 = vld [vmem:[%s1520 + $0x4] sm:$0xf]
    %v1523 = vld [vmem:[%s1520 + $0x8] sm:$0xf]
    %v1524 = vld [vmem:[%s1520 + $0xc] sm:$0xf]
    %v1529 = vunpack.c.l.b16 %v1521
    %v1530 = vunpack.c.l.b16 %v1522
    %v1531 = vunpack.c.l.b16 %v1523
    %v1532 = vunpack.c.l.b16 %v1524
    %v1533 = vpack.c.b16 %v1530, %v1529
    %v1534 = vpack.c.b16 %v1532, %v1531
    %v1538 = vsel %vm1169, %v1128, 0
    %v1541 = vsel %vm1169, %v1129, 0
    %1543 = vmatprep.subr.bf16.mxu0 0
    %1544 = vmatpush1.bf16.msra.mxu0 0
    %1545 = vmatprep.subr.bf16.mxu0 0
    %1546 = vmatpush1.bf16.msra.mxu0 0
    %1547 = vmatprep.subr.bf16.mxu0 0
    %1548 = vmatpush1.bf16.msra.mxu0 0
    %1549 = vmatprep.subr.bf16.mxu0 0
    %1550 = vmatpush1.bf16.msra.mxu0 0
    %1551 = vmatprep.subr.bf16.mxu0 0
    %1552 = vmatpush1.bf16.msra.mxu0 0
    %1553 = vmatprep.subr.bf16.mxu0 0
    %1554 = vmatpush1.bf16.msra.mxu0 0
    %1555 = vmatprep.subr.bf16.mxu0 0
    %1556 = vmatpush1.bf16.msra.mxu0 %v1534
    %1557 = vmatprep.subr.bf16.mxu0 0
    %1558 = vmatpush1.bf16.msra.mxu0 %v1533
    %1559 = vmatprep.subr.bf16.mxu0 0
    %1560 = vmatpush2.bf16.msra.mxu0 0
    %1561 = vmatprep.subr.bf16.mxu0 0
    %1562 = vmatpush2.bf16.msra.mxu0 0
    %1563 = vmatprep.subr.bf16.mxu0 0
    %1564 = vmatpush2.bf16.msra.mxu0 0
    %1565 = vmatprep.subr.bf16.mxu0 0
    %1566 = vmatpush2.bf16.msra.mxu0 0
    %1567 = vmatprep.subr.bf16.mxu0 0
    %1568 = vmatpush2.bf16.msra.mxu0 0
    %1569 = vmatprep.subr.bf16.mxu0 0
    %1570 = vmatpush2.bf16.msra.mxu0 0
    %1571 = vmatprep.subr.bf16.mxu0 0
    %1572 = vmatpush2.bf16.msra.mxu0 0
    %1573 = vmatprep.subr.bf16.mxu0 0
    %1574 = vmatpush2.bf16.msra.mxu0 0
    %1575 = vmatprep.mubr.bf16.mxu0 0
    %1576 = vmatmul.mubr.bf16.gmra.mxu0 %v1538
    %v1577 = vpop.f32.mrf.mxu0
    %v1578 = vadd.f32 0.0, %v1577
    %v1579 = vpop.f32.mrf.mxu0
    %v1580 = vpop.f32.mrf.mxu0
    %v1581 = vadd.f32 0.0, %v1580
    %v1582 = vpop.f32.mrf.mxu0
    %1583 = vmatprep.mubr.bf16.mxu0 0
    %1584 = vmatmul.mubr.bf16.gmra.mxu0 %v1541
    %v1585 = vpop.f32.mrf.mxu0
    %v1586 = vadd.f32 0.0, %v1585
    %v1587 = vpop.f32.mrf.mxu0
    %v1588 = vpop.f32.mrf.mxu0
    %v1589 = vadd.f32 0.0, %v1588
    %v1590 = vpop.f32.mrf.mxu0
    %1591 = vdwg.mxu0
    %v1592 = vadd.f32 %v1516, %v1578
    %v1593 = vadd.f32 %v1517, %v1581
    %v1594 = vadd.f32 %v1518, %v1586
    %v1595 = vadd.f32 %v1519, %v1589
    %s1596 = scalar_lea.vmem %s5, 96
    %v1597 = vld [vmem:[%s1596] sm:$0xf]
    %v1598 = vld [vmem:[%s1596 + $0x4] sm:$0xf]
    %v1599 = vld [vmem:[%s1596 + $0x8] sm:$0xf]
    %v1600 = vld [vmem:[%s1596 + $0xc] sm:$0xf]
    %v1605 = vunpack.c.l.b16 %v1597
    %v1606 = vunpack.c.l.b16 %v1598
    %v1607 = vunpack.c.l.b16 %v1599
    %v1608 = vunpack.c.l.b16 %v1600
    %v1609 = vpack.c.b16 %v1606, %v1605
    %v1610 = vpack.c.b16 %v1608, %v1607
    %v1614 = vsel %vm1169, %v1134, 0
    %v1617 = vsel %vm1169, %v1135, 0
    %1619 = vmatprep.subr.bf16.mxu0 0
    %1620 = vmatpush1.bf16.msra.mxu0 0
    %1621 = vmatprep.subr.bf16.mxu0 0
    %1622 = vmatpush1.bf16.msra.mxu0 0
    %1623 = vmatprep.subr.bf16.mxu0 0
    %1624 = vmatpush1.bf16.msra.mxu0 0
    %1625 = vmatprep.subr.bf16.mxu0 0
    %1626 = vmatpush1.bf16.msra.mxu0 0
    %1627 = vmatprep.subr.bf16.mxu0 0
    %1628 = vmatpush1.bf16.msra.mxu0 0
    %1629 = vmatprep.subr.bf16.mxu0 0
    %1630 = vmatpush1.bf16.msra.mxu0 0
    %1631 = vmatprep.subr.bf16.mxu0 0
    %1632 = vmatpush1.bf16.msra.mxu0 %v1610
    %1633 = vmatprep.subr.bf16.mxu0 0
    %1634 = vmatpush1.bf16.msra.mxu0 %v1609
    %1635 = vmatprep.subr.bf16.mxu0 0
    %1636 = vmatpush2.bf16.msra.mxu0 0
    %1637 = vmatprep.subr.bf16.mxu0 0
    %1638 = vmatpush2.bf16.msra.mxu0 0
    %1639 = vmatprep.subr.bf16.mxu0 0
    %1640 = vmatpush2.bf16.msra.mxu0 0
    %1641 = vmatprep.subr.bf16.mxu0 0
    %1642 = vmatpush2.bf16.msra.mxu0 0
    %1643 = vmatprep.subr.bf16.mxu0 0
    %1644 = vmatpush2.bf16.msra.mxu0 0
    %1645 = vmatprep.subr.bf16.mxu0 0
    %1646 = vmatpush2.bf16.msra.mxu0 0
    %1647 = vmatprep.subr.bf16.mxu0 0
    %1648 = vmatpush2.bf16.msra.mxu0 0
    %1649 = vmatprep.subr.bf16.mxu0 0
    %1650 = vmatpush2.bf16.msra.mxu0 0
    %1651 = vmatprep.mubr.bf16.mxu0 0
    %1652 = vmatmul.mubr.bf16.gmra.mxu0 %v1614
    %v1653 = vpop.f32.mrf.mxu0
    %v1654 = vadd.f32 0.0, %v1653
    %v1655 = vpop.f32.mrf.mxu0
    %v1656 = vpop.f32.mrf.mxu0
    %v1657 = vadd.f32 0.0, %v1656
    %v1658 = vpop.f32.mrf.mxu0
    %1659 = vmatprep.mubr.bf16.mxu0 0
    %1660 = vmatmul.mubr.bf16.gmra.mxu0 %v1617
    %v1661 = vpop.f32.mrf.mxu0
    %v1662 = vadd.f32 0.0, %v1661
    %v1663 = vpop.f32.mrf.mxu0
    %v1664 = vpop.f32.mrf.mxu0
    %v1665 = vadd.f32 0.0, %v1664
    %v1666 = vpop.f32.mrf.mxu0
    %1667 = vdwg.mxu0
    %v1668 = vadd.f32 %v1592, %v1654
    %v1669 = vadd.f32 %v1593, %v1657
    %v1670 = vadd.f32 %v1594, %v1662
    %v1671 = vadd.f32 %v1595, %v1665
    %s1672 = scalar_lea.vmem %s5, 112
    %v1673 = vld [vmem:[%s1672] sm:$0xf]
    %v1674 = vld [vmem:[%s1672 + $0x4] sm:$0xf]
    %v1675 = vld [vmem:[%s1672 + $0x8] sm:$0xf]
    %v1676 = vld [vmem:[%s1672 + $0xc] sm:$0xf]
    %v1681 = vunpack.c.l.b16 %v1673
    %v1682 = vunpack.c.l.b16 %v1674
    %v1683 = vunpack.c.l.b16 %v1675
    %v1684 = vunpack.c.l.b16 %v1676
    %v1685 = vpack.c.b16 %v1682, %v1681
    %v1686 = vpack.c.b16 %v1684, %v1683
    %v1690 = vsel %vm1169, %v1140, 0
    %v1693 = vsel %vm1169, %v1141, 0
    %1695 = vmatprep.subr.bf16.mxu0 0
    %1696 = vmatpush1.bf16.msra.mxu0 0
    %1697 = vmatprep.subr.bf16.mxu0 0
    %1698 = vmatpush1.bf16.msra.mxu0 0
    %1699 = vmatprep.subr.bf16.mxu0 0
    %1700 = vmatpush1.bf16.msra.mxu0 0
    %1701 = vmatprep.subr.bf16.mxu0 0
    %1702 = vmatpush1.bf16.msra.mxu0 0
    %1703 = vmatprep.subr.bf16.mxu0 0
    %1704 = vmatpush1.bf16.msra.mxu0 0
    %1705 = vmatprep.subr.bf16.mxu0 0
    %1706 = vmatpush1.bf16.msra.mxu0 0
    %1707 = vmatprep.subr.bf16.mxu0 0
    %1708 = vmatpush1.bf16.msra.mxu0 %v1686
    %1709 = vmatprep.subr.bf16.mxu0 0
    %1710 = vmatpush1.bf16.msra.mxu0 %v1685
    %1711 = vmatprep.subr.bf16.mxu0 0
    %1712 = vmatpush2.bf16.msra.mxu0 0
    %1713 = vmatprep.subr.bf16.mxu0 0
    %1714 = vmatpush2.bf16.msra.mxu0 0
    %1715 = vmatprep.subr.bf16.mxu0 0
    %1716 = vmatpush2.bf16.msra.mxu0 0
    %1717 = vmatprep.subr.bf16.mxu0 0
    %1718 = vmatpush2.bf16.msra.mxu0 0
    %1719 = vmatprep.subr.bf16.mxu0 0
    %1720 = vmatpush2.bf16.msra.mxu0 0
    %1721 = vmatprep.subr.bf16.mxu0 0
    %1722 = vmatpush2.bf16.msra.mxu0 0
    %1723 = vmatprep.subr.bf16.mxu0 0
    %1724 = vmatpush2.bf16.msra.mxu0 0
    %1725 = vmatprep.subr.bf16.mxu0 0
    %1726 = vmatpush2.bf16.msra.mxu0 0
    %1727 = vmatprep.mubr.bf16.mxu0 0
    %1728 = vmatmul.mubr.bf16.gmra.mxu0 %v1690
    %v1729 = vpop.f32.mrf.mxu0
    %v1730 = vadd.f32 0.0, %v1729
    %v1731 = vpop.f32.mrf.mxu0
    %v1732 = vpop.f32.mrf.mxu0
    %v1733 = vadd.f32 0.0, %v1732
    %v1734 = vpop.f32.mrf.mxu0
    %1735 = vmatprep.mubr.bf16.mxu0 0
    %1736 = vmatmul.mubr.bf16.gmra.mxu0 %v1693
    %v1737 = vpop.f32.mrf.mxu0
    %v1738 = vadd.f32 0.0, %v1737
    %v1739 = vpop.f32.mrf.mxu0
    %v1740 = vpop.f32.mrf.mxu0
    %v1741 = vadd.f32 0.0, %v1740
    %v1742 = vpop.f32.mrf.mxu0
    %1743 = vdwg.mxu0
    %v1744 = vadd.f32 %v1668, %v1730
    %v1745 = vadd.f32 %v1669, %v1733
    %v1746 = vadd.f32 %v1670, %v1738
    %v1747 = vadd.f32 %v1671, %v1741
    %s1748 = scalar_lea.vmem %s5, 128
    %v1749 = vld [vmem:[%s1748] sm:$0xf]
    %v1750 = vld [vmem:[%s1748 + $0x4] sm:$0xf]
    %v1751 = vld [vmem:[%s1748 + $0x8] sm:$0xf]
    %v1752 = vld [vmem:[%s1748 + $0xc] sm:$0xf]
    %v1757 = vunpack.c.l.b16 %v1749
    %v1758 = vunpack.c.l.b16 %v1750
    %v1759 = vunpack.c.l.b16 %v1751
    %v1760 = vunpack.c.l.b16 %v1752
    %v1761 = vpack.c.b16 %v1758, %v1757
    %v1762 = vpack.c.b16 %v1760, %v1759
    %v1766 = vsel %vm1169, %v1146, 0
    %v1769 = vsel %vm1169, %v1147, 0
    %1771 = vmatprep.subr.bf16.mxu0 0
    %1772 = vmatpush1.bf16.msra.mxu0 0
    %1773 = vmatprep.subr.bf16.mxu0 0
    %1774 = vmatpush1.bf16.msra.mxu0 0
    %1775 = vmatprep.subr.bf16.mxu0 0
    %1776 = vmatpush1.bf16.msra.mxu0 0
    %1777 = vmatprep.subr.bf16.mxu0 0
    %1778 = vmatpush1.bf16.msra.mxu0 0
    %1779 = vmatprep.subr.bf16.mxu0 0
    %1780 = vmatpush1.bf16.msra.mxu0 0
    %1781 = vmatprep.subr.bf16.mxu0 0
    %1782 = vmatpush1.bf16.msra.mxu0 0
    %1783 = vmatprep.subr.bf16.mxu0 0
    %1784 = vmatpush1.bf16.msra.mxu0 %v1762
    %1785 = vmatprep.subr.bf16.mxu0 0
    %1786 = vmatpush1.bf16.msra.mxu0 %v1761
    %1787 = vmatprep.subr.bf16.mxu0 0
    %1788 = vmatpush2.bf16.msra.mxu0 0
    %1789 = vmatprep.subr.bf16.mxu0 0
    %1790 = vmatpush2.bf16.msra.mxu0 0
    %1791 = vmatprep.subr.bf16.mxu0 0
    %1792 = vmatpush2.bf16.msra.mxu0 0
    %1793 = vmatprep.subr.bf16.mxu0 0
    %1794 = vmatpush2.bf16.msra.mxu0 0
    %1795 = vmatprep.subr.bf16.mxu0 0
    %1796 = vmatpush2.bf16.msra.mxu0 0
    %1797 = vmatprep.subr.bf16.mxu0 0
    %1798 = vmatpush2.bf16.msra.mxu0 0
    %1799 = vmatprep.subr.bf16.mxu0 0
    %1800 = vmatpush2.bf16.msra.mxu0 0
    %1801 = vmatprep.subr.bf16.mxu0 0
    %1802 = vmatpush2.bf16.msra.mxu0 0
    %1803 = vmatprep.mubr.bf16.mxu0 0
    %1804 = vmatmul.mubr.bf16.gmra.mxu0 %v1766
    %v1805 = vpop.f32.mrf.mxu0
    %v1806 = vadd.f32 0.0, %v1805
    %v1807 = vpop.f32.mrf.mxu0
    %v1808 = vpop.f32.mrf.mxu0
    %v1809 = vadd.f32 0.0, %v1808
    %v1810 = vpop.f32.mrf.mxu0
    %1811 = vmatprep.mubr.bf16.mxu0 0
    %1812 = vmatmul.mubr.bf16.gmra.mxu0 %v1769
    %v1813 = vpop.f32.mrf.mxu0
    %v1814 = vadd.f32 0.0, %v1813
    %v1815 = vpop.f32.mrf.mxu0
    %v1816 = vpop.f32.mrf.mxu0
    %v1817 = vadd.f32 0.0, %v1816
    %v1818 = vpop.f32.mrf.mxu0
    %1819 = vdwg.mxu0
    %v1820 = vadd.f32 %v1744, %v1806
    %v1821 = vadd.f32 %v1745, %v1809
    %v1822 = vadd.f32 %v1746, %v1814
    %v1823 = vadd.f32 %v1747, %v1817
    %v1824 = vld [vmem:[#allocation5] sm:$0x1]
    %v1826 = vlaneseq
    %v1827 = vshrl.u32 %v1826, 7
    %v1828 = vsub.s32 0, %v1827
    %v1829 = vrot.slane %v1824, %v1828
    %v1831 = vadd.f32 %v1820, %v1829
    %v1832 = vadd.f32 %v1821, %v1829
    %v1833 = vadd.f32 %v1822, %v1829
    %v1834 = vadd.f32 %v1823, %v1829
    %v1835 = vmax.f32 %v1831, 0.0
    %v1836 = vmax.f32 %v1832, 0.0
    %v1837 = vmax.f32 %v1833, 0.0
    %v1838 = vmax.f32 %v1834, 0.0
    %v1839 = vrot.slane %v1835, 3
    %v1840 = vrot.slane %v1836, 3
    %v1841 = vrot.slane %v1837, 3
    %v1842 = vrot.slane %v1838, 3
    %v1843 = vsel %vm176, %v1841, %v1842
    %v1844 = vsel %vm176, %v1840, %v1841
    %v1845 = vsel %vm176, %v1839, %v1840
    %v1846 = vsel %vm176, %v1842, %v1839
    %v1847 = vmul.f32 %v1846, %v188
    %v1848 = vmul.f32 %v1845, %v193
    %v1849 = vmul.f32 %v1844, %v198
    %v1850 = vmul.f32 %v1843, %v203
    %v1851 = vpack.c.bf16 %v1848, %v1847
    %v1852 = vpack.c.bf16 %v1850, %v1849
    %v1853 = vrot.slane %v1835, 4
    %v1854 = vrot.slane %v1836, 4
    %v1855 = vrot.slane %v1837, 4
    %v1856 = vrot.slane %v1838, 4
    %v1857 = vsel %vm215, %v1855, %v1856
    %v1858 = vsel %vm215, %v1854, %v1855
    %v1859 = vsel %vm215, %v1853, %v1854
    %v1860 = vsel %vm215, %v1856, %v1853
    %v1861 = vmul.f32 %v1860, %v228
    %v1862 = vmul.f32 %v1859, %v233
    %v1863 = vmul.f32 %v1858, %v238
    %v1864 = vmul.f32 %v1857, %v243
    %v1865 = vpack.c.bf16 %v1862, %v1861
    %v1866 = vpack.c.bf16 %v1864, %v1863
    %v1867 = vrot.slane %v1835, 5
    %v1868 = vrot.slane %v1836, 5
    %v1869 = vrot.slane %v1837, 5
    %v1870 = vrot.slane %v1838, 5
    %v1871 = vsel %vm255, %v1869, %v1870
    %v1872 = vsel %vm255, %v1868, %v1869
    %v1873 = vsel %vm255, %v1867, %v1868
    %v1874 = vsel %vm255, %v1870, %v1867
    %v1875 = vmul.f32 %v1874, %v268
    %v1876 = vmul.f32 %v1873, %v273
    %v1877 = vmul.f32 %v1872, %v278
    %v1878 = vmul.f32 %v1871, %v283
    %v1879 = vpack.c.bf16 %v1876, %v1875
    %v1880 = vpack.c.bf16 %v1878, %v1877
    %v1881 = vrot.slane %v1835, 7
    %v1882 = vrot.slane %v1836, 7
    %v1883 = vrot.slane %v1837, 7
    %v1884 = vrot.slane %v1838, 7
    %v1885 = vsel %vm295, %v1883, %v1884
    %v1886 = vsel %vm295, %v1882, %v1883
    %v1887 = vsel %vm295, %v1881, %v1882
    %v1888 = vsel %vm295, %v1884, %v1881
    %v1889 = vmul.f32 %v1888, %v308
    %v1890 = vmul.f32 %v1887, %v313
    %v1891 = vmul.f32 %v1886, %v318
    %v1892 = vmul.f32 %v1885, %v323
    %v1893 = vpack.c.bf16 %v1890, %v1889
    %v1894 = vpack.c.bf16 %v1892, %v1891
    %v1895 = vpack.c.bf16 %v1836, %v1835
    %v1896 = vpack.c.bf16 %v1838, %v1837
    %v1897 = vrot.slane %v1835, 1
    %v1898 = vrot.slane %v1836, 1
    %v1899 = vrot.slane %v1837, 1
    %v1900 = vrot.slane %v1838, 1
    %v1901 = vsel %vm335, %v1899, %v1900
    %v1902 = vsel %vm335, %v1898, %v1899
    %v1903 = vsel %vm335, %v1897, %v1898
    %v1904 = vsel %vm335, %v1900, %v1897
    %v1905 = vmul.f32 %v1903, %v348
    %v1906 = vmul.f32 %v1902, %v353
    %v1907 = vmul.f32 %v1901, %v358
    %v1908 = vmul.f32 %v1904, %v363
    %v1909 = vpack.c.bf16 %v1906, %v1905
    %v1910 = vpack.c.bf16 %v1908, %v1907
    %v1911 = vmul.f32 %v1845, %v379
    %v1912 = vmul.f32 %v1844, %v384
    %v1913 = vmul.f32 %v1843, %v389
    %v1914 = vmul.f32 %v1846, %v394
    %v1915 = vpack.c.bf16 %v1912, %v1911
    %v1916 = vpack.c.bf16 %v1914, %v1913
    %v1917 = vmul.f32 %v1859, %v410
    %v1918 = vmul.f32 %v1858, %v415
    %v1919 = vmul.f32 %v1857, %v420
    %v1920 = vmul.f32 %v1860, %v425
    %v1921 = vpack.c.bf16 %v1918, %v1917
    %v1922 = vpack.c.bf16 %v1920, %v1919
    %v1923 = vmul.f32 %v1873, %v441
    %v1924 = vmul.f32 %v1872, %v446
    %v1925 = vmul.f32 %v1871, %v451
    %v1926 = vmul.f32 %v1874, %v456
    %v1927 = vpack.c.bf16 %v1924, %v1923
    %v1928 = vpack.c.bf16 %v1926, %v1925
    %v1929 = vld [vmem:[#allocation7] sm:$0xf]
    %v1930 = vld [vmem:[#allocation7 + $0x4] sm:$0xf]
    %v1931 = vld [vmem:[#allocation7 + $0x8] sm:$0xf]
    %v1932 = vld [vmem:[#allocation7 + $0xc] sm:$0xf]
    %v1933 = vld [vmem:[#allocation7 + $0x10] sm:$0xf]
    %v1934 = vld [vmem:[#allocation7 + $0x14] sm:$0xf]
    %v1935 = vld [vmem:[#allocation7 + $0x18] sm:$0xf]
    %v1936 = vld [vmem:[#allocation7 + $0x1c] sm:$0xf]
    %s1937 = scalar_lea.vmem [#allocation7], 32
    %v1938 = vld [vmem:[%s1937] sm:$0xf]
    %v1939 = vld [vmem:[%s1937 + $0x4] sm:$0xf]
    %v1940 = vld [vmem:[%s1937 + $0x8] sm:$0xf]
    %v1941 = vld [vmem:[%s1937 + $0xc] sm:$0xf]
    %v1942 = vld [vmem:[%s1937 + $0x10] sm:$0xf]
    %v1943 = vld [vmem:[%s1937 + $0x14] sm:$0xf]
    %v1944 = vld [vmem:[%s1937 + $0x18] sm:$0xf]
    %v1945 = vld [vmem:[%s1937 + $0x1c] sm:$0xf]
    %v1954 = vunpack.c.l.b16 %v1938
    %v1955 = vunpack.c.l.b16 %v1939
    %v1956 = vunpack.c.l.b16 %v1940
    %v1957 = vunpack.c.l.b16 %v1941
    %v1958 = vunpack.c.l.b16 %v1942
    %v1959 = vunpack.c.l.b16 %v1943
    %v1960 = vunpack.c.l.b16 %v1944
    %v1961 = vunpack.c.l.b16 %v1945
    %v1962 = vpack.c.b16 %v1955, %v1954
    %v1963 = vpack.c.b16 %v1957, %v1956
    %v1964 = vpack.c.b16 %v1959, %v1958
    %v1965 = vpack.c.b16 %v1961, %v1960
    %vm1970 = vcmask 523264
    %v1972 = vsel %vm1970, %v1865, 0
    %v1975 = vsel %vm1970, %v1866, 0
    %1977 = vmatprep.subr.bf16.mxu0 0
    %1978 = vmatpush1.bf16.msra.mxu0 0
    %1979 = vmatprep.subr.bf16.mxu0 0
    %1980 = vmatpush1.bf16.msra.mxu0 0
    %1981 = vmatprep.subr.bf16.mxu0 0
    %1982 = vmatpush1.bf16.msra.mxu0 0
    %1983 = vmatprep.subr.bf16.mxu0 0
    %1984 = vmatpush1.bf16.msra.mxu0 0
    %1985 = vmatprep.subr.bf16.mxu0 0
    %1986 = vmatpush1.bf16.msra.mxu0 %v1965
    %1987 = vmatprep.subr.bf16.mxu0 0
    %1988 = vmatpush1.bf16.msra.mxu0 %v1964
    %1989 = vmatprep.subr.bf16.mxu0 0
    %1990 = vmatpush1.bf16.msra.mxu0 %v1963
    %1991 = vmatprep.subr.bf16.mxu0 0
    %1992 = vmatpush1.bf16.msra.mxu0 %v1962
    %1993 = vmatprep.subr.bf16.mxu0 0
    %1994 = vmatpush2.bf16.msra.mxu0 0
    %1995 = vmatprep.subr.bf16.mxu0 0
    %1996 = vmatpush2.bf16.msra.mxu0 0
    %1997 = vmatprep.subr.bf16.mxu0 0
    %1998 = vmatpush2.bf16.msra.mxu0 0
    %1999 = vmatprep.subr.bf16.mxu0 0
    %2000 = vmatpush2.bf16.msra.mxu0 0
    %2001 = vmatprep.subr.bf16.mxu0 0
    %2002 = vmatpush2.bf16.msra.mxu0 0
    %2003 = vmatprep.subr.bf16.mxu0 0
    %2004 = vmatpush2.bf16.msra.mxu0 0
    %2005 = vmatprep.subr.bf16.mxu0 0
    %2006 = vmatpush2.bf16.msra.mxu0 0
    %2007 = vmatprep.subr.bf16.mxu0 0
    %2008 = vmatpush2.bf16.msra.mxu0 0
    %2009 = vmatprep.mubr.bf16.mxu0 0
    %2010 = vmatmul.mubr.bf16.gmra.mxu0 %v1972
    %v2011 = vpop.f32.mrf.mxu0
    %v2012 = vadd.f32 0.0, %v2011
    %v2013 = vpop.f32.mrf.mxu0
    %v2014 = vpop.f32.mrf.mxu0
    %v2015 = vadd.f32 0.0, %v2014
    %v2016 = vpop.f32.mrf.mxu0
    %2017 = vmatprep.mubr.bf16.mxu0 0
    %2018 = vmatmul.mubr.bf16.gmra.mxu0 %v1975
    %v2019 = vpop.f32.mrf.mxu0
    %v2020 = vadd.f32 0.0, %v2019
    %v2021 = vpop.f32.mrf.mxu0
    %v2022 = vpop.f32.mrf.mxu0
    %v2023 = vadd.f32 0.0, %v2022
    %v2024 = vpop.f32.mrf.mxu0
    %2025 = vdwg.mxu0
    %v2034 = vunpack.c.l.b16 %v1929
    %v2035 = vunpack.c.l.b16 %v1930
    %v2036 = vunpack.c.l.b16 %v1931
    %v2037 = vunpack.c.l.b16 %v1932
    %v2038 = vunpack.c.l.b16 %v1933
    %v2039 = vunpack.c.l.b16 %v1934
    %v2040 = vunpack.c.l.b16 %v1935
    %v2041 = vunpack.c.l.b16 %v1936
    %v2042 = vpack.c.b16 %v2035, %v2034
    %v2043 = vpack.c.b16 %v2037, %v2036
    %v2044 = vpack.c.b16 %v2039, %v2038
    %v2045 = vpack.c.b16 %v2041, %v2040
    %v2051 = vsel %vm1970, %v1851, 0
    %v2054 = vsel %vm1970, %v1852, 0
    %2056 = vmatprep.subr.bf16.mxu0 0
    %2057 = vmatpush1.bf16.msra.mxu0 0
    %2058 = vmatprep.subr.bf16.mxu0 0
    %2059 = vmatpush1.bf16.msra.mxu0 0
    %2060 = vmatprep.subr.bf16.mxu0 0
    %2061 = vmatpush1.bf16.msra.mxu0 0
    %2062 = vmatprep.subr.bf16.mxu0 0
    %2063 = vmatpush1.bf16.msra.mxu0 0
    %2064 = vmatprep.subr.bf16.mxu0 0
    %2065 = vmatpush1.bf16.msra.mxu0 %v2045
    %2066 = vmatprep.subr.bf16.mxu0 0
    %2067 = vmatpush1.bf16.msra.mxu0 %v2044
    %2068 = vmatprep.subr.bf16.mxu0 0
    %2069 = vmatpush1.bf16.msra.mxu0 %v2043
    %2070 = vmatprep.subr.bf16.mxu0 0
    %2071 = vmatpush1.bf16.msra.mxu0 %v2042
    %2072 = vmatprep.subr.bf16.mxu0 0
    %2073 = vmatpush2.bf16.msra.mxu0 0
    %2074 = vmatprep.subr.bf16.mxu0 0
    %2075 = vmatpush2.bf16.msra.mxu0 0
    %2076 = vmatprep.subr.bf16.mxu0 0
    %2077 = vmatpush2.bf16.msra.mxu0 0
    %2078 = vmatprep.subr.bf16.mxu0 0
    %2079 = vmatpush2.bf16.msra.mxu0 0
    %2080 = vmatprep.subr.bf16.mxu0 0
    %2081 = vmatpush2.bf16.msra.mxu0 0
    %2082 = vmatprep.subr.bf16.mxu0 0
    %2083 = vmatpush2.bf16.msra.mxu0 0
    %2084 = vmatprep.subr.bf16.mxu0 0
    %2085 = vmatpush2.bf16.msra.mxu0 0
    %2086 = vmatprep.subr.bf16.mxu0 0
    %2087 = vmatpush2.bf16.msra.mxu0 0
    %2088 = vmatprep.mubr.bf16.mxu0 0
    %2089 = vmatmul.mubr.bf16.gmra.mxu0 %v2051
    %v2090 = vpop.f32.mrf.mxu0
    %v2091 = vadd.f32 %v2012, %v2090
    %v2092 = vpop.f32.mrf.mxu0
    %v2093 = vpop.f32.mrf.mxu0
    %v2094 = vadd.f32 %v2015, %v2093
    %v2095 = vpop.f32.mrf.mxu0
    %2096 = vmatprep.mubr.bf16.mxu0 0
    %2097 = vmatmul.mubr.bf16.gmra.mxu0 %v2054
    %v2098 = vpop.f32.mrf.mxu0
    %v2099 = vadd.f32 %v2020, %v2098
    %v2100 = vpop.f32.mrf.mxu0
    %v2101 = vpop.f32.mrf.mxu0
    %v2102 = vadd.f32 %v2023, %v2101
    %v2103 = vpop.f32.mrf.mxu0
    %2104 = vdwg.mxu0
    %s2105 = scalar_lea.vmem [#allocation7], 64
    %v2106 = vld [vmem:[%s2105] sm:$0xf]
    %v2107 = vld [vmem:[%s2105 + $0x4] sm:$0xf]
    %v2108 = vld [vmem:[%s2105 + $0x8] sm:$0xf]
    %v2109 = vld [vmem:[%s2105 + $0xc] sm:$0xf]
    %v2110 = vld [vmem:[%s2105 + $0x10] sm:$0xf]
    %v2111 = vld [vmem:[%s2105 + $0x14] sm:$0xf]
    %v2112 = vld [vmem:[%s2105 + $0x18] sm:$0xf]
    %v2113 = vld [vmem:[%s2105 + $0x1c] sm:$0xf]
    %v2122 = vunpack.c.l.b16 %v2106
    %v2123 = vunpack.c.l.b16 %v2107
    %v2124 = vunpack.c.l.b16 %v2108
    %v2125 = vunpack.c.l.b16 %v2109
    %v2126 = vunpack.c.l.b16 %v2110
    %v2127 = vunpack.c.l.b16 %v2111
    %v2128 = vunpack.c.l.b16 %v2112
    %v2129 = vunpack.c.l.b16 %v2113
    %v2130 = vpack.c.b16 %v2123, %v2122
    %v2131 = vpack.c.b16 %v2125, %v2124
    %v2132 = vpack.c.b16 %v2127, %v2126
    %v2133 = vpack.c.b16 %v2129, %v2128
    %v2139 = vsel %vm1970, %v1879, 0
    %v2142 = vsel %vm1970, %v1880, 0
    %2144 = vmatprep.subr.bf16.mxu0 0
    %2145 = vmatpush1.bf16.msra.mxu0 0
    %2146 = vmatprep.subr.bf16.mxu0 0
    %2147 = vmatpush1.bf16.msra.mxu0 0
    %2148 = vmatprep.subr.bf16.mxu0 0
    %2149 = vmatpush1.bf16.msra.mxu0 0
    %2150 = vmatprep.subr.bf16.mxu0 0
    %2151 = vmatpush1.bf16.msra.mxu0 0
    %2152 = vmatprep.subr.bf16.mxu0 0
    %2153 = vmatpush1.bf16.msra.mxu0 %v2133
    %2154 = vmatprep.subr.bf16.mxu0 0
    %2155 = vmatpush1.bf16.msra.mxu0 %v2132
    %2156 = vmatprep.subr.bf16.mxu0 0
    %2157 = vmatpush1.bf16.msra.mxu0 %v2131
    %2158 = vmatprep.subr.bf16.mxu0 0
    %2159 = vmatpush1.bf16.msra.mxu0 %v2130
    %2160 = vmatprep.subr.bf16.mxu0 0
    %2161 = vmatpush2.bf16.msra.mxu0 0
    %2162 = vmatprep.subr.bf16.mxu0 0
    %2163 = vmatpush2.bf16.msra.mxu0 0
    %2164 = vmatprep.subr.bf16.mxu0 0
    %2165 = vmatpush2.bf16.msra.mxu0 0
    %2166 = vmatprep.subr.bf16.mxu0 0
    %2167 = vmatpush2.bf16.msra.mxu0 0
    %2168 = vmatprep.subr.bf16.mxu0 0
    %2169 = vmatpush2.bf16.msra.mxu0 0
    %2170 = vmatprep.subr.bf16.mxu0 0
    %2171 = vmatpush2.bf16.msra.mxu0 0
    %2172 = vmatprep.subr.bf16.mxu0 0
    %2173 = vmatpush2.bf16.msra.mxu0 0
    %2174 = vmatprep.subr.bf16.mxu0 0
    %2175 = vmatpush2.bf16.msra.mxu0 0
    %2176 = vmatprep.mubr.bf16.mxu0 0
    %2177 = vmatmul.mubr.bf16.gmra.mxu0 %v2139
    %v2178 = vpop.f32.mrf.mxu0
    %v2179 = vadd.f32 0.0, %v2178
    %v2180 = vpop.f32.mrf.mxu0
    %v2181 = vpop.f32.mrf.mxu0
    %v2182 = vadd.f32 0.0, %v2181
    %v2183 = vpop.f32.mrf.mxu0
    %2184 = vmatprep.mubr.bf16.mxu0 0
    %2185 = vmatmul.mubr.bf16.gmra.mxu0 %v2142
    %v2186 = vpop.f32.mrf.mxu0
    %v2187 = vadd.f32 0.0, %v2186
    %v2188 = vpop.f32.mrf.mxu0
    %v2189 = vpop.f32.mrf.mxu0
    %v2190 = vadd.f32 0.0, %v2189
    %v2191 = vpop.f32.mrf.mxu0
    %2192 = vdwg.mxu0
    %v2193 = vadd.f32 %v2091, %v2179
    %v2194 = vadd.f32 %v2094, %v2182
    %v2195 = vadd.f32 %v2099, %v2187
    %v2196 = vadd.f32 %v2102, %v2190
    %s2197 = scalar_lea.vmem [#allocation7], 96
    %v2198 = vld [vmem:[%s2197] sm:$0xf]
    %v2199 = vld [vmem:[%s2197 + $0x4] sm:$0xf]
    %v2200 = vld [vmem:[%s2197 + $0x8] sm:$0xf]
    %v2201 = vld [vmem:[%s2197 + $0xc] sm:$0xf]
    %v2202 = vld [vmem:[%s2197 + $0x10] sm:$0xf]
    %v2203 = vld [vmem:[%s2197 + $0x14] sm:$0xf]
    %v2204 = vld [vmem:[%s2197 + $0x18] sm:$0xf]
    %v2205 = vld [vmem:[%s2197 + $0x1c] sm:$0xf]
    %v2214 = vunpack.c.l.b16 %v2198
    %v2215 = vunpack.c.l.b16 %v2199
    %v2216 = vunpack.c.l.b16 %v2200
    %v2217 = vunpack.c.l.b16 %v2201
    %v2218 = vunpack.c.l.b16 %v2202
    %v2219 = vunpack.c.l.b16 %v2203
    %v2220 = vunpack.c.l.b16 %v2204
    %v2221 = vunpack.c.l.b16 %v2205
    %v2222 = vpack.c.b16 %v2215, %v2214
    %v2223 = vpack.c.b16 %v2217, %v2216
    %v2224 = vpack.c.b16 %v2219, %v2218
    %v2225 = vpack.c.b16 %v2221, %v2220
    %v2231 = vsel %vm1970, %v1893, 0
    %v2234 = vsel %vm1970, %v1894, 0
    %2236 = vmatprep.subr.bf16.mxu0 0
    %2237 = vmatpush1.bf16.msra.mxu0 0
    %2238 = vmatprep.subr.bf16.mxu0 0
    %2239 = vmatpush1.bf16.msra.mxu0 0
    %2240 = vmatprep.subr.bf16.mxu0 0
    %2241 = vmatpush1.bf16.msra.mxu0 0
    %2242 = vmatprep.subr.bf16.mxu0 0
    %2243 = vmatpush1.bf16.msra.mxu0 0
    %2244 = vmatprep.subr.bf16.mxu0 0
    %2245 = vmatpush1.bf16.msra.mxu0 %v2225
    %2246 = vmatprep.subr.bf16.mxu0 0
    %2247 = vmatpush1.bf16.msra.mxu0 %v2224
    %2248 = vmatprep.subr.bf16.mxu0 0
    %2249 = vmatpush1.bf16.msra.mxu0 %v2223
    %2250 = vmatprep.subr.bf16.mxu0 0
    %2251 = vmatpush1.bf16.msra.mxu0 %v2222
    %2252 = vmatprep.subr.bf16.mxu0 0
    %2253 = vmatpush2.bf16.msra.mxu0 0
    %2254 = vmatprep.subr.bf16.mxu0 0
    %2255 = vmatpush2.bf16.msra.mxu0 0
    %2256 = vmatprep.subr.bf16.mxu0 0
    %2257 = vmatpush2.bf16.msra.mxu0 0
    %2258 = vmatprep.subr.bf16.mxu0 0
    %2259 = vmatpush2.bf16.msra.mxu0 0
    %2260 = vmatprep.subr.bf16.mxu0 0
    %2261 = vmatpush2.bf16.msra.mxu0 0
    %2262 = vmatprep.subr.bf16.mxu0 0
    %2263 = vmatpush2.bf16.msra.mxu0 0
    %2264 = vmatprep.subr.bf16.mxu0 0
    %2265 = vmatpush2.bf16.msra.mxu0 0
    %2266 = vmatprep.subr.bf16.mxu0 0
    %2267 = vmatpush2.bf16.msra.mxu0 0
    %2268 = vmatprep.mubr.bf16.mxu0 0
    %2269 = vmatmul.mubr.bf16.gmra.mxu0 %v2231
    %v2270 = vpop.f32.mrf.mxu0
    %v2271 = vadd.f32 0.0, %v2270
    %v2272 = vpop.f32.mrf.mxu0
    %v2273 = vpop.f32.mrf.mxu0
    %v2274 = vadd.f32 0.0, %v2273
    %v2275 = vpop.f32.mrf.mxu0
    %2276 = vmatprep.mubr.bf16.mxu0 0
    %2277 = vmatmul.mubr.bf16.gmra.mxu0 %v2234
    %v2278 = vpop.f32.mrf.mxu0
    %v2279 = vadd.f32 0.0, %v2278
    %v2280 = vpop.f32.mrf.mxu0
    %v2281 = vpop.f32.mrf.mxu0
    %v2282 = vadd.f32 0.0, %v2281
    %v2283 = vpop.f32.mrf.mxu0
    %2284 = vdwg.mxu0
    %v2285 = vadd.f32 %v2193, %v2271
    %v2286 = vadd.f32 %v2194, %v2274
    %v2287 = vadd.f32 %v2195, %v2279
    %v2288 = vadd.f32 %v2196, %v2282
    %s2289 = scalar_lea.vmem [#allocation7], 128
    %v2290 = vld [vmem:[%s2289] sm:$0xf]
    %v2291 = vld [vmem:[%s2289 + $0x4] sm:$0xf]
    %v2292 = vld [vmem:[%s2289 + $0x8] sm:$0xf]
    %v2293 = vld [vmem:[%s2289 + $0xc] sm:$0xf]
    %v2294 = vld [vmem:[%s2289 + $0x10] sm:$0xf]
    %v2295 = vld [vmem:[%s2289 + $0x14] sm:$0xf]
    %v2296 = vld [vmem:[%s2289 + $0x18] sm:$0xf]
    %v2297 = vld [vmem:[%s2289 + $0x1c] sm:$0xf]
    %v2306 = vunpack.c.l.b16 %v2290
    %v2307 = vunpack.c.l.b16 %v2291
    %v2308 = vunpack.c.l.b16 %v2292
    %v2309 = vunpack.c.l.b16 %v2293
    %v2310 = vunpack.c.l.b16 %v2294
    %v2311 = vunpack.c.l.b16 %v2295
    %v2312 = vunpack.c.l.b16 %v2296
    %v2313 = vunpack.c.l.b16 %v2297
    %v2314 = vpack.c.b16 %v2307, %v2306
    %v2315 = vpack.c.b16 %v2309, %v2308
    %v2316 = vpack.c.b16 %v2311, %v2310
    %v2317 = vpack.c.b16 %v2313, %v2312
    %v2323 = vsel %vm1970, %v1895, 0
    %v2326 = vsel %vm1970, %v1896, 0
    %2328 = vmatprep.subr.bf16.mxu0 0
    %2329 = vmatpush1.bf16.msra.mxu0 0
    %2330 = vmatprep.subr.bf16.mxu0 0
    %2331 = vmatpush1.bf16.msra.mxu0 0
    %2332 = vmatprep.subr.bf16.mxu0 0
    %2333 = vmatpush1.bf16.msra.mxu0 0
    %2334 = vmatprep.subr.bf16.mxu0 0
    %2335 = vmatpush1.bf16.msra.mxu0 0
    %2336 = vmatprep.subr.bf16.mxu0 0
    %2337 = vmatpush1.bf16.msra.mxu0 %v2317
    %2338 = vmatprep.subr.bf16.mxu0 0
    %2339 = vmatpush1.bf16.msra.mxu0 %v2316
    %2340 = vmatprep.subr.bf16.mxu0 0
    %2341 = vmatpush1.bf16.msra.mxu0 %v2315
    %2342 = vmatprep.subr.bf16.mxu0 0
    %2343 = vmatpush1.bf16.msra.mxu0 %v2314
    %2344 = vmatprep.subr.bf16.mxu0 0
    %2345 = vmatpush2.bf16.msra.mxu0 0
    %2346 = vmatprep.subr.bf16.mxu0 0
    %2347 = vmatpush2.bf16.msra.mxu0 0
    %2348 = vmatprep.subr.bf16.mxu0 0
    %2349 = vmatpush2.bf16.msra.mxu0 0
    %2350 = vmatprep.subr.bf16.mxu0 0
    %2351 = vmatpush2.bf16.msra.mxu0 0
    %2352 = vmatprep.subr.bf16.mxu0 0
    %2353 = vmatpush2.bf16.msra.mxu0 0
    %2354 = vmatprep.subr.bf16.mxu0 0
    %2355 = vmatpush2.bf16.msra.mxu0 0
    %2356 = vmatprep.subr.bf16.mxu0 0
    %2357 = vmatpush2.bf16.msra.mxu0 0
    %2358 = vmatprep.subr.bf16.mxu0 0
    %2359 = vmatpush2.bf16.msra.mxu0 0
    %2360 = vmatprep.mubr.bf16.mxu0 0
    %2361 = vmatmul.mubr.bf16.gmra.mxu0 %v2323
    %v2362 = vpop.f32.mrf.mxu0
    %v2363 = vadd.f32 0.0, %v2362
    %v2364 = vpop.f32.mrf.mxu0
    %v2365 = vpop.f32.mrf.mxu0
    %v2366 = vadd.f32 0.0, %v2365
    %v2367 = vpop.f32.mrf.mxu0
    %2368 = vmatprep.mubr.bf16.mxu0 0
    %2369 = vmatmul.mubr.bf16.gmra.mxu0 %v2326
    %v2370 = vpop.f32.mrf.mxu0
    %v2371 = vadd.f32 0.0, %v2370
    %v2372 = vpop.f32.mrf.mxu0
    %v2373 = vpop.f32.mrf.mxu0
    %v2374 = vadd.f32 0.0, %v2373
    %v2375 = vpop.f32.mrf.mxu0
    %2376 = vdwg.mxu0
    %v2377 = vadd.f32 %v2285, %v2363
    %v2378 = vadd.f32 %v2286, %v2366
    %v2379 = vadd.f32 %v2287, %v2371
    %v2380 = vadd.f32 %v2288, %v2374
    %s2381 = scalar_lea.vmem [#allocation7], 160
    %v2382 = vld [vmem:[%s2381] sm:$0xf]
    %v2383 = vld [vmem:[%s2381 + $0x4] sm:$0xf]
    %v2384 = vld [vmem:[%s2381 + $0x8] sm:$0xf]
    %v2385 = vld [vmem:[%s2381 + $0xc] sm:$0xf]
    %v2386 = vld [vmem:[%s2381 + $0x10] sm:$0xf]
    %v2387 = vld [vmem:[%s2381 + $0x14] sm:$0xf]
    %v2388 = vld [vmem:[%s2381 + $0x18] sm:$0xf]
    %v2389 = vld [vmem:[%s2381 + $0x1c] sm:$0xf]
    %v2398 = vunpack.c.l.b16 %v2382
    %v2399 = vunpack.c.l.b16 %v2383
    %v2400 = vunpack.c.l.b16 %v2384
    %v2401 = vunpack.c.l.b16 %v2385
    %v2402 = vunpack.c.l.b16 %v2386
    %v2403 = vunpack.c.l.b16 %v2387
    %v2404 = vunpack.c.l.b16 %v2388
    %v2405 = vunpack.c.l.b16 %v2389
    %v2406 = vpack.c.b16 %v2399, %v2398
    %v2407 = vpack.c.b16 %v2401, %v2400
    %v2408 = vpack.c.b16 %v2403, %v2402
    %v2409 = vpack.c.b16 %v2405, %v2404
    %v2415 = vsel %vm1970, %v1909, 0
    %v2418 = vsel %vm1970, %v1910, 0
    %2420 = vmatprep.subr.bf16.mxu0 0
    %2421 = vmatpush1.bf16.msra.mxu0 0
    %2422 = vmatprep.subr.bf16.mxu0 0
    %2423 = vmatpush1.bf16.msra.mxu0 0
    %2424 = vmatprep.subr.bf16.mxu0 0
    %2425 = vmatpush1.bf16.msra.mxu0 0
    %2426 = vmatprep.subr.bf16.mxu0 0
    %2427 = vmatpush1.bf16.msra.mxu0 0
    %2428 = vmatprep.subr.bf16.mxu0 0
    %2429 = vmatpush1.bf16.msra.mxu0 %v2409
    %2430 = vmatprep.subr.bf16.mxu0 0
    %2431 = vmatpush1.bf16.msra.mxu0 %v2408
    %2432 = vmatprep.subr.bf16.mxu0 0
    %2433 = vmatpush1.bf16.msra.mxu0 %v2407
    %2434 = vmatprep.subr.bf16.mxu0 0
    %2435 = vmatpush1.bf16.msra.mxu0 %v2406
    %2436 = vmatprep.subr.bf16.mxu0 0
    %2437 = vmatpush2.bf16.msra.mxu0 0
    %2438 = vmatprep.subr.bf16.mxu0 0
    %2439 = vmatpush2.bf16.msra.mxu0 0
    %2440 = vmatprep.subr.bf16.mxu0 0
    %2441 = vmatpush2.bf16.msra.mxu0 0
    %2442 = vmatprep.subr.bf16.mxu0 0
    %2443 = vmatpush2.bf16.msra.mxu0 0
    %2444 = vmatprep.subr.bf16.mxu0 0
    %2445 = vmatpush2.bf16.msra.mxu0 0
    %2446 = vmatprep.subr.bf16.mxu0 0
    %2447 = vmatpush2.bf16.msra.mxu0 0
    %2448 = vmatprep.subr.bf16.mxu0 0
    %2449 = vmatpush2.bf16.msra.mxu0 0
    %2450 = vmatprep.subr.bf16.mxu0 0
    %2451 = vmatpush2.bf16.msra.mxu0 0
    %2452 = vmatprep.mubr.bf16.mxu0 0
    %2453 = vmatmul.mubr.bf16.gmra.mxu0 %v2415
    %v2454 = vpop.f32.mrf.mxu0
    %v2455 = vadd.f32 0.0, %v2454
    %v2456 = vpop.f32.mrf.mxu0
    %v2457 = vpop.f32.mrf.mxu0
    %v2458 = vadd.f32 0.0, %v2457
    %v2459 = vpop.f32.mrf.mxu0
    %2460 = vmatprep.mubr.bf16.mxu0 0
    %2461 = vmatmul.mubr.bf16.gmra.mxu0 %v2418
    %v2462 = vpop.f32.mrf.mxu0
    %v2463 = vadd.f32 0.0, %v2462
    %v2464 = vpop.f32.mrf.mxu0
    %v2465 = vpop.f32.mrf.mxu0
    %v2466 = vadd.f32 0.0, %v2465
    %v2467 = vpop.f32.mrf.mxu0
    %2468 = vdwg.mxu0
    %v2469 = vadd.f32 %v2377, %v2455
    %v2470 = vadd.f32 %v2378, %v2458
    %v2471 = vadd.f32 %v2379, %v2463
    %v2472 = vadd.f32 %v2380, %v2466
    %s2473 = scalar_lea.vmem [#allocation7], 192
    %v2474 = vld [vmem:[%s2473] sm:$0xf]
    %v2475 = vld [vmem:[%s2473 + $0x4] sm:$0xf]
    %v2476 = vld [vmem:[%s2473 + $0x8] sm:$0xf]
    %v2477 = vld [vmem:[%s2473 + $0xc] sm:$0xf]
    %v2478 = vld [vmem:[%s2473 + $0x10] sm:$0xf]
    %v2479 = vld [vmem:[%s2473 + $0x14] sm:$0xf]
    %v2480 = vld [vmem:[%s2473 + $0x18] sm:$0xf]
    %v2481 = vld [vmem:[%s2473 + $0x1c] sm:$0xf]
    %v2490 = vunpack.c.l.b16 %v2474
    %v2491 = vunpack.c.l.b16 %v2475
    %v2492 = vunpack.c.l.b16 %v2476
    %v2493 = vunpack.c.l.b16 %v2477
    %v2494 = vunpack.c.l.b16 %v2478
    %v2495 = vunpack.c.l.b16 %v2479
    %v2496 = vunpack.c.l.b16 %v2480
    %v2497 = vunpack.c.l.b16 %v2481
    %v2498 = vpack.c.b16 %v2491, %v2490
    %v2499 = vpack.c.b16 %v2493, %v2492
    %v2500 = vpack.c.b16 %v2495, %v2494
    %v2501 = vpack.c.b16 %v2497, %v2496
    %v2507 = vsel %vm1970, %v1915, 0
    %v2510 = vsel %vm1970, %v1916, 0
    %2512 = vmatprep.subr.bf16.mxu0 0
    %2513 = vmatpush1.bf16.msra.mxu0 0
    %2514 = vmatprep.subr.bf16.mxu0 0
    %2515 = vmatpush1.bf16.msra.mxu0 0
    %2516 = vmatprep.subr.bf16.mxu0 0
    %2517 = vmatpush1.bf16.msra.mxu0 0
    %2518 = vmatprep.subr.bf16.mxu0 0
    %2519 = vmatpush1.bf16.msra.mxu0 0
    %2520 = vmatprep.subr.bf16.mxu0 0
    %2521 = vmatpush1.bf16.msra.mxu0 %v2501
    %2522 = vmatprep.subr.bf16.mxu0 0
    %2523 = vmatpush1.bf16.msra.mxu0 %v2500
    %2524 = vmatprep.subr.bf16.mxu0 0
    %2525 = vmatpush1.bf16.msra.mxu0 %v2499
    %2526 = vmatprep.subr.bf16.mxu0 0
    %2527 = vmatpush1.bf16.msra.mxu0 %v2498
    %2528 = vmatprep.subr.bf16.mxu0 0
    %2529 = vmatpush2.bf16.msra.mxu0 0
    %2530 = vmatprep.subr.bf16.mxu0 0
    %2531 = vmatpush2.bf16.msra.mxu0 0
    %2532 = vmatprep.subr.bf16.mxu0 0
    %2533 = vmatpush2.bf16.msra.mxu0 0
    %2534 = vmatprep.subr.bf16.mxu0 0
    %2535 = vmatpush2.bf16.msra.mxu0 0
    %2536 = vmatprep.subr.bf16.mxu0 0
    %2537 = vmatpush2.bf16.msra.mxu0 0
    %2538 = vmatprep.subr.bf16.mxu0 0
    %2539 = vmatpush2.bf16.msra.mxu0 0
    %2540 = vmatprep.subr.bf16.mxu0 0
    %2541 = vmatpush2.bf16.msra.mxu0 0
    %2542 = vmatprep.subr.bf16.mxu0 0
    %2543 = vmatpush2.bf16.msra.mxu0 0
    %2544 = vmatprep.mubr.bf16.mxu0 0
    %2545 = vmatmul.mubr.bf16.gmra.mxu0 %v2507
    %v2546 = vpop.f32.mrf.mxu0
    %v2547 = vadd.f32 0.0, %v2546
    %v2548 = vpop.f32.mrf.mxu0
    %v2549 = vpop.f32.mrf.mxu0
    %v2550 = vadd.f32 0.0, %v2549
    %v2551 = vpop.f32.mrf.mxu0
    %2552 = vmatprep.mubr.bf16.mxu0 0
    %2553 = vmatmul.mubr.bf16.gmra.mxu0 %v2510
    %v2554 = vpop.f32.mrf.mxu0
    %v2555 = vadd.f32 0.0, %v2554
    %v2556 = vpop.f32.mrf.mxu0
    %v2557 = vpop.f32.mrf.mxu0
    %v2558 = vadd.f32 0.0, %v2557
    %v2559 = vpop.f32.mrf.mxu0
    %2560 = vdwg.mxu0
    %v2561 = vadd.f32 %v2469, %v2547
    %v2562 = vadd.f32 %v2470, %v2550
    %v2563 = vadd.f32 %v2471, %v2555
    %v2564 = vadd.f32 %v2472, %v2558
    %s2565 = scalar_lea.vmem [#allocation7], 224
    %v2566 = vld [vmem:[%s2565] sm:$0xf]
    %v2567 = vld [vmem:[%s2565 + $0x4] sm:$0xf]
    %v2568 = vld [vmem:[%s2565 + $0x8] sm:$0xf]
    %v2569 = vld [vmem:[%s2565 + $0xc] sm:$0xf]
    %v2570 = vld [vmem:[%s2565 + $0x10] sm:$0xf]
    %v2571 = vld [vmem:[%s2565 + $0x14] sm:$0xf]
    %v2572 = vld [vmem:[%s2565 + $0x18] sm:$0xf]
    %v2573 = vld [vmem:[%s2565 + $0x1c] sm:$0xf]
    %v2582 = vunpack.c.l.b16 %v2566
    %v2583 = vunpack.c.l.b16 %v2567
    %v2584 = vunpack.c.l.b16 %v2568
    %v2585 = vunpack.c.l.b16 %v2569
    %v2586 = vunpack.c.l.b16 %v2570
    %v2587 = vunpack.c.l.b16 %v2571
    %v2588 = vunpack.c.l.b16 %v2572
    %v2589 = vunpack.c.l.b16 %v2573
    %v2590 = vpack.c.b16 %v2583, %v2582
    %v2591 = vpack.c.b16 %v2585, %v2584
    %v2592 = vpack.c.b16 %v2587, %v2586
    %v2593 = vpack.c.b16 %v2589, %v2588
    %v2599 = vsel %vm1970, %v1921, 0
    %v2602 = vsel %vm1970, %v1922, 0
    %2604 = vmatprep.subr.bf16.mxu0 0
    %2605 = vmatpush1.bf16.msra.mxu0 0
    %2606 = vmatprep.subr.bf16.mxu0 0
    %2607 = vmatpush1.bf16.msra.mxu0 0
    %2608 = vmatprep.subr.bf16.mxu0 0
    %2609 = vmatpush1.bf16.msra.mxu0 0
    %2610 = vmatprep.subr.bf16.mxu0 0
    %2611 = vmatpush1.bf16.msra.mxu0 0
    %2612 = vmatprep.subr.bf16.mxu0 0
    %2613 = vmatpush1.bf16.msra.mxu0 %v2593
    %2614 = vmatprep.subr.bf16.mxu0 0
    %2615 = vmatpush1.bf16.msra.mxu0 %v2592
    %2616 = vmatprep.subr.bf16.mxu0 0
    %2617 = vmatpush1.bf16.msra.mxu0 %v2591
    %2618 = vmatprep.subr.bf16.mxu0 0
    %2619 = vmatpush1.bf16.msra.mxu0 %v2590
    %2620 = vmatprep.subr.bf16.mxu0 0
    %2621 = vmatpush2.bf16.msra.mxu0 0
    %2622 = vmatprep.subr.bf16.mxu0 0
    %2623 = vmatpush2.bf16.msra.mxu0 0
    %2624 = vmatprep.subr.bf16.mxu0 0
    %2625 = vmatpush2.bf16.msra.mxu0 0
    %2626 = vmatprep.subr.bf16.mxu0 0
    %2627 = vmatpush2.bf16.msra.mxu0 0
    %2628 = vmatprep.subr.bf16.mxu0 0
    %2629 = vmatpush2.bf16.msra.mxu0 0
    %2630 = vmatprep.subr.bf16.mxu0 0
    %2631 = vmatpush2.bf16.msra.mxu0 0
    %2632 = vmatprep.subr.bf16.mxu0 0
    %2633 = vmatpush2.bf16.msra.mxu0 0
    %2634 = vmatprep.subr.bf16.mxu0 0
    %2635 = vmatpush2.bf16.msra.mxu0 0
    %2636 = vmatprep.mubr.bf16.mxu0 0
    %2637 = vmatmul.mubr.bf16.gmra.mxu0 %v2599
    %v2638 = vpop.f32.mrf.mxu0
    %v2639 = vadd.f32 0.0, %v2638
    %v2640 = vpop.f32.mrf.mxu0
    %v2641 = vpop.f32.mrf.mxu0
    %v2642 = vadd.f32 0.0, %v2641
    %v2643 = vpop.f32.mrf.mxu0
    %2644 = vmatprep.mubr.bf16.mxu0 0
    %2645 = vmatmul.mubr.bf16.gmra.mxu0 %v2602
    %v2646 = vpop.f32.mrf.mxu0
    %v2647 = vadd.f32 0.0, %v2646
    %v2648 = vpop.f32.mrf.mxu0
    %v2649 = vpop.f32.mrf.mxu0
    %v2650 = vadd.f32 0.0, %v2649
    %v2651 = vpop.f32.mrf.mxu0
    %2652 = vdwg.mxu0
    %v2653 = vadd.f32 %v2561, %v2639
    %v2654 = vadd.f32 %v2562, %v2642
    %v2655 = vadd.f32 %v2563, %v2647
    %v2656 = vadd.f32 %v2564, %v2650
    %s2657 = scalar_lea.vmem [#allocation7], 256
    %v2658 = vld [vmem:[%s2657] sm:$0xf]
    %v2659 = vld [vmem:[%s2657 + $0x4] sm:$0xf]
    %v2660 = vld [vmem:[%s2657 + $0x8] sm:$0xf]
    %v2661 = vld [vmem:[%s2657 + $0xc] sm:$0xf]
    %v2662 = vld [vmem:[%s2657 + $0x10] sm:$0xf]
    %v2663 = vld [vmem:[%s2657 + $0x14] sm:$0xf]
    %v2664 = vld [vmem:[%s2657 + $0x18] sm:$0xf]
    %v2665 = vld [vmem:[%s2657 + $0x1c] sm:$0xf]
    %v2674 = vunpack.c.l.b16 %v2658
    %v2675 = vunpack.c.l.b16 %v2659
    %v2676 = vunpack.c.l.b16 %v2660
    %v2677 = vunpack.c.l.b16 %v2661
    %v2678 = vunpack.c.l.b16 %v2662
    %v2679 = vunpack.c.l.b16 %v2663
    %v2680 = vunpack.c.l.b16 %v2664
    %v2681 = vunpack.c.l.b16 %v2665
    %v2682 = vpack.c.b16 %v2675, %v2674
    %v2683 = vpack.c.b16 %v2677, %v2676
    %v2684 = vpack.c.b16 %v2679, %v2678
    %v2685 = vpack.c.b16 %v2681, %v2680
    %v2691 = vsel %vm1970, %v1927, 0
    %v2694 = vsel %vm1970, %v1928, 0
    %2696 = vmatprep.subr.bf16.mxu0 0
    %2697 = vmatpush1.bf16.msra.mxu0 0
    %2698 = vmatprep.subr.bf16.mxu0 0
    %2699 = vmatpush1.bf16.msra.mxu0 0
    %2700 = vmatprep.subr.bf16.mxu0 0
    %2701 = vmatpush1.bf16.msra.mxu0 0
    %2702 = vmatprep.subr.bf16.mxu0 0
    %2703 = vmatpush1.bf16.msra.mxu0 0
    %2704 = vmatprep.subr.bf16.mxu0 0
    %2705 = vmatpush1.bf16.msra.mxu0 %v2685
    %2706 = vmatprep.subr.bf16.mxu0 0
    %2707 = vmatpush1.bf16.msra.mxu0 %v2684
    %2708 = vmatprep.subr.bf16.mxu0 0
    %2709 = vmatpush1.bf16.msra.mxu0 %v2683
    %2710 = vmatprep.subr.bf16.mxu0 0
    %2711 = vmatpush1.bf16.msra.mxu0 %v2682
    %2712 = vmatprep.subr.bf16.mxu0 0
    %2713 = vmatpush2.bf16.msra.mxu0 0
    %2714 = vmatprep.subr.bf16.mxu0 0
    %2715 = vmatpush2.bf16.msra.mxu0 0
    %2716 = vmatprep.subr.bf16.mxu0 0
    %2717 = vmatpush2.bf16.msra.mxu0 0
    %2718 = vmatprep.subr.bf16.mxu0 0
    %2719 = vmatpush2.bf16.msra.mxu0 0
    %2720 = vmatprep.subr.bf16.mxu0 0
    %2721 = vmatpush2.bf16.msra.mxu0 0
    %2722 = vmatprep.subr.bf16.mxu0 0
    %2723 = vmatpush2.bf16.msra.mxu0 0
    %2724 = vmatprep.subr.bf16.mxu0 0
    %2725 = vmatpush2.bf16.msra.mxu0 0
    %2726 = vmatprep.subr.bf16.mxu0 0
    %2727 = vmatpush2.bf16.msra.mxu0 0
    %2728 = vmatprep.mubr.bf16.mxu0 0
    %2729 = vmatmul.mubr.bf16.gmra.mxu0 %v2691
    %v2730 = vpop.f32.mrf.mxu0
    %v2731 = vadd.f32 0.0, %v2730
    %v2732 = vpop.f32.mrf.mxu0
    %v2733 = vpop.f32.mrf.mxu0
    %v2734 = vadd.f32 0.0, %v2733
    %v2735 = vpop.f32.mrf.mxu0
    %2736 = vmatprep.mubr.bf16.mxu0 0
    %2737 = vmatmul.mubr.bf16.gmra.mxu0 %v2694
    %v2738 = vpop.f32.mrf.mxu0
    %v2739 = vadd.f32 0.0, %v2738
    %v2740 = vpop.f32.mrf.mxu0
    %v2741 = vpop.f32.mrf.mxu0
    %v2742 = vadd.f32 0.0, %v2741
    %v2743 = vpop.f32.mrf.mxu0
    %2744 = vdwg.mxu0
    %v2745 = vadd.f32 %v2653, %v2731
    %v2746 = vadd.f32 %v2654, %v2734
    %v2747 = vadd.f32 %v2655, %v2739
    %v2748 = vadd.f32 %v2656, %v2742
    %v2749 = vld [vmem:[#allocation8] sm:$0x1]
    %v2751 = vlaneseq
    %v2752 = vshrl.u32 %v2751, 7
    %v2753 = vsub.s32 0, %v2752
    %v2754 = vrot.slane %v2749, %v2753
    %v2756 = vadd.f32 %v2745, %v2754
    %v2757 = vadd.f32 %v2746, %v2754
    %v2758 = vadd.f32 %v2747, %v2754
    %v2759 = vadd.f32 %v2748, %v2754
    %v2760 = vmax.f32 %v2756, 0.0
    %v2761 = vmax.f32 %v2757, 0.0
    %v2762 = vmax.f32 %v2758, 0.0
    %v2763 = vmax.f32 %v2759, 0.0
    %v2764 = vrot.slane %v2760, 3
    %v2765 = vrot.slane %v2761, 3
    %v2766 = vrot.slane %v2762, 3
    %v2767 = vrot.slane %v2763, 3
    %v2768 = vsel %vm176, %v2766, %v2767
    %v2769 = vsel %vm176, %v2765, %v2766
    %v2770 = vsel %vm176, %v2764, %v2765
    %v2771 = vsel %vm176, %v2767, %v2764
    %v2772 = vmul.f32 %v2771, %v188
    %v2773 = vmul.f32 %v2770, %v193
    %v2774 = vmul.f32 %v2769, %v198
    %v2775 = vmul.f32 %v2768, %v203
    %v2776 = vpack.c.bf16 %v2773, %v2772
    %v2777 = vpack.c.bf16 %v2775, %v2774
    %v2778 = vrot.slane %v2760, 4
    %v2779 = vrot.slane %v2761, 4
    %v2780 = vrot.slane %v2762, 4
    %v2781 = vrot.slane %v2763, 4
    %v2782 = vsel %vm215, %v2780, %v2781
    %v2783 = vsel %vm215, %v2779, %v2780
    %v2784 = vsel %vm215, %v2778, %v2779
    %v2785 = vsel %vm215, %v2781, %v2778
    %v2786 = vmul.f32 %v2785, %v228
    %v2787 = vmul.f32 %v2784, %v233
    %v2788 = vmul.f32 %v2783, %v238
    %v2789 = vmul.f32 %v2782, %v243
    %v2790 = vpack.c.bf16 %v2787, %v2786
    %v2791 = vpack.c.bf16 %v2789, %v2788
    %v2792 = vrot.slane %v2760, 5
    %v2793 = vrot.slane %v2761, 5
    %v2794 = vrot.slane %v2762, 5
    %v2795 = vrot.slane %v2763, 5
    %v2796 = vsel %vm255, %v2794, %v2795
    %v2797 = vsel %vm255, %v2793, %v2794
    %v2798 = vsel %vm255, %v2792, %v2793
    %v2799 = vsel %vm255, %v2795, %v2792
    %v2800 = vmul.f32 %v2799, %v268
    %v2801 = vmul.f32 %v2798, %v273
    %v2802 = vmul.f32 %v2797, %v278
    %v2803 = vmul.f32 %v2796, %v283
    %v2804 = vpack.c.bf16 %v2801, %v2800
    %v2805 = vpack.c.bf16 %v2803, %v2802
    %v2806 = vrot.slane %v2760, 7
    %v2807 = vrot.slane %v2761, 7
    %v2808 = vrot.slane %v2762, 7
    %v2809 = vrot.slane %v2763, 7
    %v2810 = vsel %vm295, %v2808, %v2809
    %v2811 = vsel %vm295, %v2807, %v2808
    %v2812 = vsel %vm295, %v2806, %v2807
    %v2813 = vsel %vm295, %v2809, %v2806
    %v2814 = vmul.f32 %v2813, %v308
    %v2815 = vmul.f32 %v2812, %v313
    %v2816 = vmul.f32 %v2811, %v318
    %v2817 = vmul.f32 %v2810, %v323
    %v2818 = vpack.c.bf16 %v2815, %v2814
    %v2819 = vpack.c.bf16 %v2817, %v2816
    %v2820 = vpack.c.bf16 %v2761, %v2760
    %v2821 = vpack.c.bf16 %v2763, %v2762
    %v2822 = vrot.slane %v2760, 1
    %v2823 = vrot.slane %v2761, 1
    %v2824 = vrot.slane %v2762, 1
    %v2825 = vrot.slane %v2763, 1
    %v2826 = vsel %vm335, %v2824, %v2825
    %v2827 = vsel %vm335, %v2823, %v2824
    %v2828 = vsel %vm335, %v2822, %v2823
    %v2829 = vsel %vm335, %v2825, %v2822
    %v2830 = vmul.f32 %v2828, %v348
    %v2831 = vmul.f32 %v2827, %v353
    %v2832 = vmul.f32 %v2826, %v358
    %v2833 = vmul.f32 %v2829, %v363
    %v2834 = vpack.c.bf16 %v2831, %v2830
    %v2835 = vpack.c.bf16 %v2833, %v2832
    %v2836 = vmul.f32 %v2770, %v379
    %v2837 = vmul.f32 %v2769, %v384
    %v2838 = vmul.f32 %v2768, %v389
    %v2839 = vmul.f32 %v2771, %v394
    %v2840 = vpack.c.bf16 %v2837, %v2836
    %v2841 = vpack.c.bf16 %v2839, %v2838
    %v2842 = vmul.f32 %v2784, %v410
    %v2843 = vmul.f32 %v2783, %v415
    %v2844 = vmul.f32 %v2782, %v420
    %v2845 = vmul.f32 %v2785, %v425
    %v2846 = vpack.c.bf16 %v2843, %v2842
    %v2847 = vpack.c.bf16 %v2845, %v2844
    %v2848 = vmul.f32 %v2798, %v441
    %v2849 = vmul.f32 %v2797, %v446
    %v2850 = vmul.f32 %v2796, %v451
    %v2851 = vmul.f32 %v2799, %v456
    %v2852 = vpack.c.bf16 %v2849, %v2848
    %v2853 = vpack.c.bf16 %v2851, %v2850
    %v2854 = vld [vmem:[%s9] sm:$0xf]
    %v2855 = vld [vmem:[%s9 + $0x4] sm:$0xf]
    %v2856 = vld [vmem:[%s9 + $0x8] sm:$0xf]
    %v2857 = vld [vmem:[%s9 + $0xc] sm:$0xf]
    %v2858 = vld [vmem:[%s9 + $0x10] sm:$0xf]
    %v2859 = vld [vmem:[%s9 + $0x14] sm:$0xf]
    %v2860 = vld [vmem:[%s9 + $0x18] sm:$0xf]
    %v2861 = vld [vmem:[%s9 + $0x1c] sm:$0xf]
    %v2862 = vld [vmem:[%s9 + $0x20] sm:$0xf]
    %v2863 = vld [vmem:[%s9 + $0x24] sm:$0xf]
    %v2864 = vld [vmem:[%s9 + $0x28] sm:$0xf]
    %v2865 = vld [vmem:[%s9 + $0x2c] sm:$0xf]
    %v2866 = vld [vmem:[%s9 + $0x30] sm:$0xf]
    %v2867 = vld [vmem:[%s9 + $0x34] sm:$0xf]
    %v2868 = vld [vmem:[%s9 + $0x38] sm:$0xf]
    %v2869 = vld [vmem:[%s9 + $0x3c] sm:$0xf]
    %v2870 = vld [vmem:[%s9 + $0x40] sm:$0xf]
    %v2871 = vld [vmem:[%s9 + $0x44] sm:$0xf]
    %v2872 = vld [vmem:[%s9 + $0x48] sm:$0xf]
    %v2873 = vld [vmem:[%s9 + $0x4c] sm:$0xf]
    %v2874 = vld [vmem:[%s9 + $0x50] sm:$0xf]
    %v2875 = vld [vmem:[%s9 + $0x54] sm:$0xf]
    %v2876 = vld [vmem:[%s9 + $0x58] sm:$0xf]
    %v2877 = vld [vmem:[%s9 + $0x5c] sm:$0xf]
    %v2878 = vld [vmem:[%s9 + $0x60] sm:$0xf]
    %v2879 = vld [vmem:[%s9 + $0x64] sm:$0xf]
    %v2880 = vld [vmem:[%s9 + $0x68] sm:$0xf]
    %v2881 = vld [vmem:[%s9 + $0x6c] sm:$0xf]
    %v2882 = vld [vmem:[%s9 + $0x70] sm:$0xf]
    %v2883 = vld [vmem:[%s9 + $0x74] sm:$0xf]
    %v2884 = vld [vmem:[%s9 + $0x78] sm:$0xf]
    %v2885 = vld [vmem:[%s9 + $0x7c] sm:$0xf]
    %v2886 = vld [vmem:[%s9 + $0x80] sm:$0xf]
    %v2887 = vld [vmem:[%s9 + $0x84] sm:$0xf]
    %v2888 = vld [vmem:[%s9 + $0x88] sm:$0xf]
    %v2889 = vld [vmem:[%s9 + $0x8c] sm:$0xf]
    %v2890 = vld [vmem:[%s9 + $0x90] sm:$0xf]
    %v2891 = vld [vmem:[%s9 + $0x94] sm:$0xf]
    %v2892 = vld [vmem:[%s9 + $0x98] sm:$0xf]
    %v2893 = vld [vmem:[%s9 + $0x9c] sm:$0xf]
    %v2894 = vld [vmem:[%s9 + $0xa0] sm:$0xf]
    %v2895 = vld [vmem:[%s9 + $0xa4] sm:$0xf]
    %v2896 = vld [vmem:[%s9 + $0xa8] sm:$0xf]
    %v2897 = vld [vmem:[%s9 + $0xac] sm:$0xf]
    %v2898 = vld [vmem:[%s9 + $0xb0] sm:$0xf]
    %v2899 = vld [vmem:[%s9 + $0xb4] sm:$0xf]
    %v2900 = vld [vmem:[%s9 + $0xb8] sm:$0xf]
    %v2901 = vld [vmem:[%s9 + $0xbc] sm:$0xf]
    %v2902 = vld [vmem:[%s9 + $0xc0] sm:$0xf]
    %v2903 = vld [vmem:[%s9 + $0xc4] sm:$0xf]
    %v2904 = vld [vmem:[%s9 + $0xc8] sm:$0xf]
    %v2905 = vld [vmem:[%s9 + $0xcc] sm:$0xf]
    %v2906 = vld [vmem:[%s9 + $0xd0] sm:$0xf]
    %v2907 = vld [vmem:[%s9 + $0xd4] sm:$0xf]
    %v2908 = vld [vmem:[%s9 + $0xd8] sm:$0xf]
    %v2909 = vld [vmem:[%s9 + $0xdc] sm:$0xf]
    %v2910 = vld [vmem:[%s9 + $0xe0] sm:$0xf]
    %v2911 = vld [vmem:[%s9 + $0xe4] sm:$0xf]
    %v2912 = vld [vmem:[%s9 + $0xe8] sm:$0xf]
    %v2913 = vld [vmem:[%s9 + $0xec] sm:$0xf]
    %v2914 = vld [vmem:[%s9 + $0xf0] sm:$0xf]
    %v2915 = vld [vmem:[%s9 + $0xf4] sm:$0xf]
    %v2916 = vld [vmem:[%s9 + $0xf8] sm:$0xf]
    %v2917 = vld [vmem:[%s9 + $0xfc] sm:$0xf]
    %v2918 = vld [vmem:[%s9 + $0x100] sm:$0xf]
    %v2919 = vld [vmem:[%s9 + $0x104] sm:$0xf]
    %v2920 = vld [vmem:[%s9 + $0x108] sm:$0xf]
    %v2921 = vld [vmem:[%s9 + $0x10c] sm:$0xf]
    %v2922 = vld [vmem:[%s9 + $0x110] sm:$0xf]
    %v2923 = vld [vmem:[%s9 + $0x114] sm:$0xf]
    %v2924 = vld [vmem:[%s9 + $0x118] sm:$0xf]
    %v2925 = vld [vmem:[%s9 + $0x11c] sm:$0xf]
    %v2926 = vld [vmem:[%s9 + $0x120] sm:$0xf]
    %v2927 = vld [vmem:[%s9 + $0x124] sm:$0xf]
    %v2928 = vld [vmem:[%s9 + $0x128] sm:$0xf]
    %v2929 = vld [vmem:[%s9 + $0x12c] sm:$0xf]
    %v2930 = vld [vmem:[%s9 + $0x130] sm:$0xf]
    %v2931 = vld [vmem:[%s9 + $0x134] sm:$0xf]
    %v2932 = vld [vmem:[%s9 + $0x138] sm:$0xf]
    %v2933 = vld [vmem:[%s9 + $0x13c] sm:$0xf]
    %v2934 = vld [vmem:[%s9 + $0x140] sm:$0xf]
    %v2935 = vld [vmem:[%s9 + $0x144] sm:$0xf]
    %v2936 = vld [vmem:[%s9 + $0x148] sm:$0xf]
    %v2937 = vld [vmem:[%s9 + $0x14c] sm:$0xf]
    %v2938 = vld [vmem:[%s9 + $0x150] sm:$0xf]
    %v2939 = vld [vmem:[%s9 + $0x154] sm:$0xf]
    %v2940 = vld [vmem:[%s9 + $0x158] sm:$0xf]
    %v2941 = vld [vmem:[%s9 + $0x15c] sm:$0xf]
    %v2942 = vld [vmem:[%s9 + $0x160] sm:$0xf]
    %v2943 = vld [vmem:[%s9 + $0x164] sm:$0xf]
    %v2944 = vld [vmem:[%s9 + $0x168] sm:$0xf]
    %v2945 = vld [vmem:[%s9 + $0x16c] sm:$0xf]
    %v2946 = vld [vmem:[%s9 + $0x170] sm:$0xf]
    %v2947 = vld [vmem:[%s9 + $0x174] sm:$0xf]
    %v2948 = vld [vmem:[%s9 + $0x178] sm:$0xf]
    %v2949 = vld [vmem:[%s9 + $0x17c] sm:$0xf]
    %v2950 = vld [vmem:[%s9 + $0x180] sm:$0xf]
    %v2951 = vld [vmem:[%s9 + $0x184] sm:$0xf]
    %v2952 = vld [vmem:[%s9 + $0x188] sm:$0xf]
    %v2953 = vld [vmem:[%s9 + $0x18c] sm:$0xf]
    %v2954 = vld [vmem:[%s9 + $0x190] sm:$0xf]
    %v2955 = vld [vmem:[%s9 + $0x194] sm:$0xf]
    %v2956 = vld [vmem:[%s9 + $0x198] sm:$0xf]
    %v2957 = vld [vmem:[%s9 + $0x19c] sm:$0xf]
    %v2958 = vld [vmem:[%s9 + $0x1a0] sm:$0xf]
    %v2959 = vld [vmem:[%s9 + $0x1a4] sm:$0xf]
    %v2960 = vld [vmem:[%s9 + $0x1a8] sm:$0xf]
    %v2961 = vld [vmem:[%s9 + $0x1ac] sm:$0xf]
    %v2962 = vld [vmem:[%s9 + $0x1b0] sm:$0xf]
    %v2963 = vld [vmem:[%s9 + $0x1b4] sm:$0xf]
    %v2964 = vld [vmem:[%s9 + $0x1b8] sm:$0xf]
    %v2965 = vld [vmem:[%s9 + $0x1bc] sm:$0xf]
    %v2966 = vld [vmem:[%s9 + $0x1c0] sm:$0xf]
    %v2967 = vld [vmem:[%s9 + $0x1c4] sm:$0xf]
    %v2968 = vld [vmem:[%s9 + $0x1c8] sm:$0xf]
    %v2969 = vld [vmem:[%s9 + $0x1cc] sm:$0xf]
    %v2970 = vld [vmem:[%s9 + $0x1d0] sm:$0xf]
    %v2971 = vld [vmem:[%s9 + $0x1d4] sm:$0xf]
    %v2972 = vld [vmem:[%s9 + $0x1d8] sm:$0xf]
    %v2973 = vld [vmem:[%s9 + $0x1dc] sm:$0xf]
    %v2974 = vld [vmem:[%s9 + $0x1e0] sm:$0xf]
    %v2975 = vld [vmem:[%s9 + $0x1e4] sm:$0xf]
    %v2976 = vld [vmem:[%s9 + $0x1e8] sm:$0xf]
    %v2977 = vld [vmem:[%s9 + $0x1ec] sm:$0xf]
    %v2978 = vld [vmem:[%s9 + $0x1f0] sm:$0xf]
    %v2979 = vld [vmem:[%s9 + $0x1f4] sm:$0xf]
    %v2980 = vld [vmem:[%s9 + $0x1f8] sm:$0xf]
    %v2981 = vld [vmem:[%s9 + $0x1fc] sm:$0xf]
    %v2982 = vld [vmem:[%s9 + $0x200] sm:$0xf]
    %v2983 = vld [vmem:[%s9 + $0x204] sm:$0xf]
    %v2984 = vld [vmem:[%s9 + $0x208] sm:$0xf]
    %v2985 = vld [vmem:[%s9 + $0x20c] sm:$0xf]
    %v2986 = vld [vmem:[%s9 + $0x210] sm:$0xf]
    %v2987 = vld [vmem:[%s9 + $0x214] sm:$0xf]
    %v2988 = vld [vmem:[%s9 + $0x218] sm:$0xf]
    %v2989 = vld [vmem:[%s9 + $0x21c] sm:$0xf]
    %v2990 = vld [vmem:[%s9 + $0x220] sm:$0xf]
    %v2991 = vld [vmem:[%s9 + $0x224] sm:$0xf]
    %v2992 = vld [vmem:[%s9 + $0x228] sm:$0xf]
    %v2993 = vld [vmem:[%s9 + $0x22c] sm:$0xf]
    %v2994 = vld [vmem:[%s9 + $0x230] sm:$0xf]
    %v2995 = vld [vmem:[%s9 + $0x234] sm:$0xf]
    %v2996 = vld [vmem:[%s9 + $0x238] sm:$0xf]
    %v2997 = vld [vmem:[%s9 + $0x23c] sm:$0xf]
    %v2998 = vld [vmem:[#allocation10] sm:$0x1]
    %v3000 = vlaneseq
    %v3001 = vshrl.u32 %v3000, 7
    %v3002 = vsub.s32 0, %v3001
    %v3003 = vrot.slane %v2998, %v3002
    %v3149 = vunpack.c.l.b16 %v2854
    %v3150 = vunpack.c.l.b16 %v2855
    %v3151 = vunpack.c.l.b16 %v2856
    %v3152 = vunpack.c.l.b16 %v2857
    %v3153 = vunpack.c.l.b16 %v2858
    %v3154 = vunpack.c.l.b16 %v2859
    %v3155 = vunpack.c.l.b16 %v2860
    %v3156 = vunpack.c.l.b16 %v2861
    %v3157 = vunpack.c.l.b16 %v2862
    %v3158 = vunpack.c.l.b16 %v2863
    %v3159 = vunpack.c.l.b16 %v2864
    %v3160 = vunpack.c.l.b16 %v2865
    %v3161 = vunpack.c.l.b16 %v2866
    %v3162 = vunpack.c.l.b16 %v2867
    %v3163 = vunpack.c.l.b16 %v2868
    %v3164 = vunpack.c.l.b16 %v2869
    %v3165 = vunpack.c.l.b16 %v2870
    %v3166 = vunpack.c.l.b16 %v2871
    %v3167 = vunpack.c.l.b16 %v2872
    %v3168 = vunpack.c.l.b16 %v2873
    %v3169 = vunpack.c.l.b16 %v2874
    %v3170 = vunpack.c.l.b16 %v2875
    %v3171 = vunpack.c.l.b16 %v2876
    %v3172 = vunpack.c.l.b16 %v2877
    %v3173 = vunpack.c.l.b16 %v2878
    %v3174 = vunpack.c.l.b16 %v2879
    %v3175 = vunpack.c.l.b16 %v2880
    %v3176 = vunpack.c.l.b16 %v2881
    %v3177 = vunpack.c.l.b16 %v2882
    %v3178 = vunpack.c.l.b16 %v2883
    %v3179 = vunpack.c.l.b16 %v2884
    %v3180 = vunpack.c.l.b16 %v2885
    %v3181 = vunpack.c.l.b16 %v2886
    %v3182 = vunpack.c.l.b16 %v2887
    %v3183 = vunpack.c.l.b16 %v2888
    %v3184 = vunpack.c.l.b16 %v2889
    %v3185 = vunpack.c.l.b16 %v2890
    %v3186 = vunpack.c.l.b16 %v2891
    %v3187 = vunpack.c.l.b16 %v2892
    %v3188 = vunpack.c.l.b16 %v2893
    %v3189 = vunpack.c.l.b16 %v2894
    %v3190 = vunpack.c.l.b16 %v2895
    %v3191 = vunpack.c.l.b16 %v2896
    %v3192 = vunpack.c.l.b16 %v2897
    %v3193 = vunpack.c.l.b16 %v2898
    %v3194 = vunpack.c.l.b16 %v2899
    %v3195 = vunpack.c.l.b16 %v2900
    %v3196 = vunpack.c.l.b16 %v2901
    %v3197 = vunpack.c.l.b16 %v2902
    %v3198 = vunpack.c.l.b16 %v2903
    %v3199 = vunpack.c.l.b16 %v2904
    %v3200 = vunpack.c.l.b16 %v2905
    %v3201 = vunpack.c.l.b16 %v2906
    %v3202 = vunpack.c.l.b16 %v2907
    %v3203 = vunpack.c.l.b16 %v2908
    %v3204 = vunpack.c.l.b16 %v2909
    %v3205 = vunpack.c.l.b16 %v2910
    %v3206 = vunpack.c.l.b16 %v2911
    %v3207 = vunpack.c.l.b16 %v2912
    %v3208 = vunpack.c.l.b16 %v2913
    %v3209 = vunpack.c.l.b16 %v2914
    %v3210 = vunpack.c.l.b16 %v2915
    %v3211 = vunpack.c.l.b16 %v2916
    %v3212 = vunpack.c.l.b16 %v2917
    %v3213 = vunpack.c.l.b16 %v2918
    %v3214 = vunpack.c.l.b16 %v2919
    %v3215 = vunpack.c.l.b16 %v2920
    %v3216 = vunpack.c.l.b16 %v2921
    %v3217 = vunpack.c.l.b16 %v2922
    %v3218 = vunpack.c.l.b16 %v2923
    %v3219 = vunpack.c.l.b16 %v2924
    %v3220 = vunpack.c.l.b16 %v2925
    %v3221 = vunpack.c.l.b16 %v2926
    %v3222 = vunpack.c.l.b16 %v2927
    %v3223 = vunpack.c.l.b16 %v2928
    %v3224 = vunpack.c.l.b16 %v2929
    %v3225 = vunpack.c.l.b16 %v2930
    %v3226 = vunpack.c.l.b16 %v2931
    %v3227 = vunpack.c.l.b16 %v2932
    %v3228 = vunpack.c.l.b16 %v2933
    %v3229 = vunpack.c.l.b16 %v2934
    %v3230 = vunpack.c.l.b16 %v2935
    %v3231 = vunpack.c.l.b16 %v2936
    %v3232 = vunpack.c.l.b16 %v2937
    %v3233 = vunpack.c.l.b16 %v2938
    %v3234 = vunpack.c.l.b16 %v2939
    %v3235 = vunpack.c.l.b16 %v2940
    %v3236 = vunpack.c.l.b16 %v2941
    %v3237 = vunpack.c.l.b16 %v2942
    %v3238 = vunpack.c.l.b16 %v2943
    %v3239 = vunpack.c.l.b16 %v2944
    %v3240 = vunpack.c.l.b16 %v2945
    %v3241 = vunpack.c.l.b16 %v2946
    %v3242 = vunpack.c.l.b16 %v2947
    %v3243 = vunpack.c.l.b16 %v2948
    %v3244 = vunpack.c.l.b16 %v2949
    %v3245 = vunpack.c.l.b16 %v2950
    %v3246 = vunpack.c.l.b16 %v2951
    %v3247 = vunpack.c.l.b16 %v2952
    %v3248 = vunpack.c.l.b16 %v2953
    %v3249 = vunpack.c.l.b16 %v2954
    %v3250 = vunpack.c.l.b16 %v2955
    %v3251 = vunpack.c.l.b16 %v2956
    %v3252 = vunpack.c.l.b16 %v2957
    %v3253 = vunpack.c.l.b16 %v2958
    %v3254 = vunpack.c.l.b16 %v2959
    %v3255 = vunpack.c.l.b16 %v2960
    %v3256 = vunpack.c.l.b16 %v2961
    %v3257 = vunpack.c.l.b16 %v2962
    %v3258 = vunpack.c.l.b16 %v2963
    %v3259 = vunpack.c.l.b16 %v2964
    %v3260 = vunpack.c.l.b16 %v2965
    %v3261 = vunpack.c.l.b16 %v2966
    %v3262 = vunpack.c.l.b16 %v2967
    %v3263 = vunpack.c.l.b16 %v2968
    %v3264 = vunpack.c.l.b16 %v2969
    %v3265 = vunpack.c.l.b16 %v2970
    %v3266 = vunpack.c.l.b16 %v2971
    %v3267 = vunpack.c.l.b16 %v2972
    %v3268 = vunpack.c.l.b16 %v2973
    %v3269 = vunpack.c.l.b16 %v2974
    %v3270 = vunpack.c.l.b16 %v2975
    %v3271 = vunpack.c.l.b16 %v2976
    %v3272 = vunpack.c.l.b16 %v2977
    %v3273 = vunpack.c.l.b16 %v2978
    %v3274 = vunpack.c.l.b16 %v2979
    %v3275 = vunpack.c.l.b16 %v2980
    %v3276 = vunpack.c.l.b16 %v2981
    %v3277 = vunpack.c.l.b16 %v2982
    %v3278 = vunpack.c.l.b16 %v2983
    %v3279 = vunpack.c.l.b16 %v2984
    %v3280 = vunpack.c.l.b16 %v2985
    %v3281 = vunpack.c.l.b16 %v2986
    %v3282 = vunpack.c.l.b16 %v2987
    %v3283 = vunpack.c.l.b16 %v2988
    %v3284 = vunpack.c.l.b16 %v2989
    %v3285 = vunpack.c.l.b16 %v2990
    %v3286 = vunpack.c.l.b16 %v2991
    %v3287 = vunpack.c.l.b16 %v2992
    %v3288 = vunpack.c.l.b16 %v2993
    %v3289 = vunpack.c.l.b16 %v2994
    %v3290 = vunpack.c.l.b16 %v2995
    %v3291 = vunpack.c.l.b16 %v2996
    %v3292 = vunpack.c.l.b16 %v2997
    %v3293 = vpack.c.b16 %v3150, %v3149
    %v3294 = vpack.c.b16 %v3152, %v3151
    %v3295 = vpack.c.b16 %v3154, %v3153
    %v3296 = vpack.c.b16 %v3156, %v3155
    %v3297 = vpack.c.b16 %v3158, %v3157
    %v3298 = vpack.c.b16 %v3160, %v3159
    %v3299 = vpack.c.b16 %v3162, %v3161
    %v3300 = vpack.c.b16 %v3164, %v3163
    %v3301 = vpack.c.b16 %v3166, %v3165
    %v3302 = vpack.c.b16 %v3168, %v3167
    %v3303 = vpack.c.b16 %v3170, %v3169
    %v3304 = vpack.c.b16 %v3172, %v3171
    %v3305 = vpack.c.b16 %v3174, %v3173
    %v3306 = vpack.c.b16 %v3176, %v3175
    %v3307 = vpack.c.b16 %v3178, %v3177
    %v3308 = vpack.c.b16 %v3180, %v3179
    %v3309 = vpack.c.b16 %v3182, %v3181
    %v3310 = vpack.c.b16 %v3184, %v3183
    %v3311 = vpack.c.b16 %v3186, %v3185
    %v3312 = vpack.c.b16 %v3188, %v3187
    %v3313 = vpack.c.b16 %v3190, %v3189
    %v3314 = vpack.c.b16 %v3192, %v3191
    %v3315 = vpack.c.b16 %v3194, %v3193
    %v3316 = vpack.c.b16 %v3196, %v3195
    %v3317 = vpack.c.b16 %v3198, %v3197
    %v3318 = vpack.c.b16 %v3200, %v3199
    %v3319 = vpack.c.b16 %v3202, %v3201
    %v3320 = vpack.c.b16 %v3204, %v3203
    %v3321 = vpack.c.b16 %v3206, %v3205
    %v3322 = vpack.c.b16 %v3208, %v3207
    %v3323 = vpack.c.b16 %v3210, %v3209
    %v3324 = vpack.c.b16 %v3212, %v3211
    %v3325 = vpack.c.b16 %v3214, %v3213
    %v3326 = vpack.c.b16 %v3216, %v3215
    %v3327 = vpack.c.b16 %v3218, %v3217
    %v3328 = vpack.c.b16 %v3220, %v3219
    %v3329 = vpack.c.b16 %v3222, %v3221
    %v3330 = vpack.c.b16 %v3224, %v3223
    %v3331 = vpack.c.b16 %v3226, %v3225
    %v3332 = vpack.c.b16 %v3228, %v3227
    %v3333 = vpack.c.b16 %v3230, %v3229
    %v3334 = vpack.c.b16 %v3232, %v3231
    %v3335 = vpack.c.b16 %v3234, %v3233
    %v3336 = vpack.c.b16 %v3236, %v3235
    %v3337 = vpack.c.b16 %v3238, %v3237
    %v3338 = vpack.c.b16 %v3240, %v3239
    %v3339 = vpack.c.b16 %v3242, %v3241
    %v3340 = vpack.c.b16 %v3244, %v3243
    %v3341 = vpack.c.b16 %v3246, %v3245
    %v3342 = vpack.c.b16 %v3248, %v3247
    %v3343 = vpack.c.b16 %v3250, %v3249
    %v3344 = vpack.c.b16 %v3252, %v3251
    %v3345 = vpack.c.b16 %v3254, %v3253
    %v3346 = vpack.c.b16 %v3256, %v3255
    %v3347 = vpack.c.b16 %v3258, %v3257
    %v3348 = vpack.c.b16 %v3260, %v3259
    %v3349 = vpack.c.b16 %v3262, %v3261
    %v3350 = vpack.c.b16 %v3264, %v3263
    %v3351 = vpack.c.b16 %v3266, %v3265
    %v3352 = vpack.c.b16 %v3268, %v3267
    %v3353 = vpack.c.b16 %v3270, %v3269
    %v3354 = vpack.c.b16 %v3272, %v3271
    %v3355 = vpack.c.b16 %v3274, %v3273
    %v3356 = vpack.c.b16 %v3276, %v3275
    %v3357 = vpack.c.b16 %v3278, %v3277
    %v3358 = vpack.c.b16 %v3280, %v3279
    %v3359 = vpack.c.b16 %v3282, %v3281
    %v3360 = vpack.c.b16 %v3284, %v3283
    %v3361 = vpack.c.b16 %v3286, %v3285
    %v3362 = vpack.c.b16 %v3288, %v3287
    %v3363 = vpack.c.b16 %v3290, %v3289
    %v3364 = vpack.c.b16 %v3292, %v3291
    %3437 = vmatprep.subr.bf16.mxu0 0
    %3438 = vmatpush1.bf16.msra.mxu0 %v3300
    %3439 = vmatprep.subr.bf16.mxu0 0
    %3440 = vmatpush1.bf16.msra.mxu0 %v3299
    %3441 = vmatprep.subr.bf16.mxu0 0
    %3442 = vmatpush1.bf16.msra.mxu0 %v3298
    %3443 = vmatprep.subr.bf16.mxu0 0
    %3444 = vmatpush1.bf16.msra.mxu0 %v3297
    %3445 = vmatprep.subr.bf16.mxu0 0
    %3446 = vmatpush1.bf16.msra.mxu0 %v3296
    %3447 = vmatprep.subr.bf16.mxu0 0
    %3448 = vmatpush1.bf16.msra.mxu0 %v3295
    %3449 = vmatprep.subr.bf16.mxu0 0
    %3450 = vmatpush1.bf16.msra.mxu0 %v3294
    %3451 = vmatprep.subr.bf16.mxu0 0
    %3452 = vmatpush1.bf16.msra.mxu0 %v3293
    %3453 = vmatprep.subr.bf16.mxu0 0
    %3454 = vmatpush2.bf16.msra.mxu0 %v3308
    %3455 = vmatprep.subr.bf16.mxu0 0
    %3456 = vmatpush2.bf16.msra.mxu0 %v3307
    %3457 = vmatprep.subr.bf16.mxu0 0
    %3458 = vmatpush2.bf16.msra.mxu0 %v3306
    %3459 = vmatprep.subr.bf16.mxu0 0
    %3460 = vmatpush2.bf16.msra.mxu0 %v3305
    %3461 = vmatprep.subr.bf16.mxu0 0
    %3462 = vmatpush2.bf16.msra.mxu0 %v3304
    %3463 = vmatprep.subr.bf16.mxu0 0
    %3464 = vmatpush2.bf16.msra.mxu0 %v3303
    %3465 = vmatprep.subr.bf16.mxu0 0
    %3466 = vmatpush2.bf16.msra.mxu0 %v3302
    %3467 = vmatprep.subr.bf16.mxu0 0
    %3468 = vmatpush2.bf16.msra.mxu0 %v3301
    %3469 = vmatprep.mubr.bf16.mxu0 %v2790
    %3470 = vmatmul.mubr.bf16.gmra.mxu0 %v2776
    %v3471 = vpop.f32.mrf.mxu0
    %v3472 = vadd.f32 %v3003, %v3471
    %v3473 = vpop.f32.mrf.mxu0
    %v3474 = vpop.f32.mrf.mxu0
    %v3475 = vadd.f32 %v3003, %v3474
    %v3476 = vpop.f32.mrf.mxu0
    %3477 = vmatprep.mubr.bf16.mxu0 %v2791
    %3478 = vmatmul.mubr.bf16.gmra.mxu0 %v2777
    %v3479 = vpop.f32.mrf.mxu0
    %v3480 = vadd.f32 %v3003, %v3479
    %v3481 = vpop.f32.mrf.mxu0
    %v3482 = vpop.f32.mrf.mxu0
    %v3483 = vadd.f32 %v3003, %v3482
    %v3484 = vpop.f32.mrf.mxu0
    %3485 = vdwg.mxu0
    %3486 = vmatprep.subr.bf16.mxu0 0
    %3487 = vmatpush1.bf16.msra.mxu0 %v3316
    %3488 = vmatprep.subr.bf16.mxu0 0
    %3489 = vmatpush1.bf16.msra.mxu0 %v3315
    %3490 = vmatprep.subr.bf16.mxu0 0
    %3491 = vmatpush1.bf16.msra.mxu0 %v3314
    %3492 = vmatprep.subr.bf16.mxu0 0
    %3493 = vmatpush1.bf16.msra.mxu0 %v3313
    %3494 = vmatprep.subr.bf16.mxu0 0
    %3495 = vmatpush1.bf16.msra.mxu0 %v3312
    %3496 = vmatprep.subr.bf16.mxu0 0
    %3497 = vmatpush1.bf16.msra.mxu0 %v3311
    %3498 = vmatprep.subr.bf16.mxu0 0
    %3499 = vmatpush1.bf16.msra.mxu0 %v3310
    %3500 = vmatprep.subr.bf16.mxu0 0
    %3501 = vmatpush1.bf16.msra.mxu0 %v3309
    %3502 = vmatprep.subr.bf16.mxu0 0
    %3503 = vmatpush2.bf16.msra.mxu0 %v3324
    %3504 = vmatprep.subr.bf16.mxu0 0
    %3505 = vmatpush2.bf16.msra.mxu0 %v3323
    %3506 = vmatprep.subr.bf16.mxu0 0
    %3507 = vmatpush2.bf16.msra.mxu0 %v3322
    %3508 = vmatprep.subr.bf16.mxu0 0
    %3509 = vmatpush2.bf16.msra.mxu0 %v3321
    %3510 = vmatprep.subr.bf16.mxu0 0
    %3511 = vmatpush2.bf16.msra.mxu0 %v3320
    %3512 = vmatprep.subr.bf16.mxu0 0
    %3513 = vmatpush2.bf16.msra.mxu0 %v3319
    %3514 = vmatprep.subr.bf16.mxu0 0
    %3515 = vmatpush2.bf16.msra.mxu0 %v3318
    %3516 = vmatprep.subr.bf16.mxu0 0
    %3517 = vmatpush2.bf16.msra.mxu0 %v3317
    %3518 = vmatprep.mubr.bf16.mxu0 %v2818
    %3519 = vmatmul.mubr.bf16.gmra.mxu0 %v2804
    %v3520 = vpop.f32.mrf.mxu0
    %v3521 = vadd.f32 %v3472, %v3520
    %v3522 = vpop.f32.mrf.mxu0
    %v3523 = vpop.f32.mrf.mxu0
    %v3524 = vadd.f32 %v3475, %v3523
    %v3525 = vpop.f32.mrf.mxu0
    %3526 = vmatprep.mubr.bf16.mxu0 %v2819
    %3527 = vmatmul.mubr.bf16.gmra.mxu0 %v2805
    %v3528 = vpop.f32.mrf.mxu0
    %v3529 = vadd.f32 %v3480, %v3528
    %v3530 = vpop.f32.mrf.mxu0
    %v3531 = vpop.f32.mrf.mxu0
    %v3532 = vadd.f32 %v3483, %v3531
    %v3533 = vpop.f32.mrf.mxu0
    %3534 = vdwg.mxu0
    %3535 = vmatprep.subr.bf16.mxu0 0
    %3536 = vmatpush1.bf16.msra.mxu0 %v3332
    %3537 = vmatprep.subr.bf16.mxu0 0
    %3538 = vmatpush1.bf16.msra.mxu0 %v3331
    %3539 = vmatprep.subr.bf16.mxu0 0
    %3540 = vmatpush1.bf16.msra.mxu0 %v3330
    %3541 = vmatprep.subr.bf16.mxu0 0
    %3542 = vmatpush1.bf16.msra.mxu0 %v3329
    %3543 = vmatprep.subr.bf16.mxu0 0
    %3544 = vmatpush1.bf16.msra.mxu0 %v3328
    %3545 = vmatprep.subr.bf16.mxu0 0
    %3546 = vmatpush1.bf16.msra.mxu0 %v3327
    %3547 = vmatprep.subr.bf16.mxu0 0
    %3548 = vmatpush1.bf16.msra.mxu0 %v3326
    %3549 = vmatprep.subr.bf16.mxu0 0
    %3550 = vmatpush1.bf16.msra.mxu0 %v3325
    %3551 = vmatprep.subr.bf16.mxu0 0
    %3552 = vmatpush2.bf16.msra.mxu0 %v3340
    %3553 = vmatprep.subr.bf16.mxu0 0
    %3554 = vmatpush2.bf16.msra.mxu0 %v3339
    %3555 = vmatprep.subr.bf16.mxu0 0
    %3556 = vmatpush2.bf16.msra.mxu0 %v3338
    %3557 = vmatprep.subr.bf16.mxu0 0
    %3558 = vmatpush2.bf16.msra.mxu0 %v3337
    %3559 = vmatprep.subr.bf16.mxu0 0
    %3560 = vmatpush2.bf16.msra.mxu0 %v3336
    %3561 = vmatprep.subr.bf16.mxu0 0
    %3562 = vmatpush2.bf16.msra.mxu0 %v3335
    %3563 = vmatprep.subr.bf16.mxu0 0
    %3564 = vmatpush2.bf16.msra.mxu0 %v3334
    %3565 = vmatprep.subr.bf16.mxu0 0
    %3566 = vmatpush2.bf16.msra.mxu0 %v3333
    %3567 = vmatprep.mubr.bf16.mxu0 %v2834
    %3568 = vmatmul.mubr.bf16.gmra.mxu0 %v2820
    %v3569 = vpop.f32.mrf.mxu0
    %v3570 = vadd.f32 %v3521, %v3569
    %v3571 = vpop.f32.mrf.mxu0
    %v3572 = vpop.f32.mrf.mxu0
    %v3573 = vadd.f32 %v3524, %v3572
    %v3574 = vpop.f32.mrf.mxu0
    %3575 = vmatprep.mubr.bf16.mxu0 %v2835
    %3576 = vmatmul.mubr.bf16.gmra.mxu0 %v2821
    %v3577 = vpop.f32.mrf.mxu0
    %v3578 = vadd.f32 %v3529, %v3577
    %v3579 = vpop.f32.mrf.mxu0
    %v3580 = vpop.f32.mrf.mxu0
    %v3581 = vadd.f32 %v3532, %v3580
    %v3582 = vpop.f32.mrf.mxu0
    %3583 = vdwg.mxu0
    %3584 = vmatprep.subr.bf16.mxu0 0
    %3585 = vmatpush1.bf16.msra.mxu0 %v3348
    %3586 = vmatprep.subr.bf16.mxu0 0
    %3587 = vmatpush1.bf16.msra.mxu0 %v3347
    %3588 = vmatprep.subr.bf16.mxu0 0
    %3589 = vmatpush1.bf16.msra.mxu0 %v3346
    %3590 = vmatprep.subr.bf16.mxu0 0
    %3591 = vmatpush1.bf16.msra.mxu0 %v3345
    %3592 = vmatprep.subr.bf16.mxu0 0
    %3593 = vmatpush1.bf16.msra.mxu0 %v3344
    %3594 = vmatprep.subr.bf16.mxu0 0
    %3595 = vmatpush1.bf16.msra.mxu0 %v3343
    %3596 = vmatprep.subr.bf16.mxu0 0
    %3597 = vmatpush1.bf16.msra.mxu0 %v3342
    %3598 = vmatprep.subr.bf16.mxu0 0
    %3599 = vmatpush1.bf16.msra.mxu0 %v3341
    %3600 = vmatprep.subr.bf16.mxu0 0
    %3601 = vmatpush2.bf16.msra.mxu0 %v3356
    %3602 = vmatprep.subr.bf16.mxu0 0
    %3603 = vmatpush2.bf16.msra.mxu0 %v3355
    %3604 = vmatprep.subr.bf16.mxu0 0
    %3605 = vmatpush2.bf16.msra.mxu0 %v3354
    %3606 = vmatprep.subr.bf16.mxu0 0
    %3607 = vmatpush2.bf16.msra.mxu0 %v3353
    %3608 = vmatprep.subr.bf16.mxu0 0
    %3609 = vmatpush2.bf16.msra.mxu0 %v3352
    %3610 = vmatprep.subr.bf16.mxu0 0
    %3611 = vmatpush2.bf16.msra.mxu0 %v3351
    %3612 = vmatprep.subr.bf16.mxu0 0
    %3613 = vmatpush2.bf16.msra.mxu0 %v3350
    %3614 = vmatprep.subr.bf16.mxu0 0
    %3615 = vmatpush2.bf16.msra.mxu0 %v3349
    %3616 = vmatprep.mubr.bf16.mxu0 %v2846
    %3617 = vmatmul.mubr.bf16.gmra.mxu0 %v2840
    %v3618 = vpop.f32.mrf.mxu0
    %v3619 = vadd.f32 %v3570, %v3618
    %v3620 = vpop.f32.mrf.mxu0
    %v3621 = vpop.f32.mrf.mxu0
    %v3622 = vadd.f32 %v3573, %v3621
    %v3623 = vpop.f32.mrf.mxu0
    %3624 = vmatprep.mubr.bf16.mxu0 %v2847
    %3625 = vmatmul.mubr.bf16.gmra.mxu0 %v2841
    %v3626 = vpop.f32.mrf.mxu0
    %v3627 = vadd.f32 %v3578, %v3626
    %v3628 = vpop.f32.mrf.mxu0
    %v3629 = vpop.f32.mrf.mxu0
    %v3630 = vadd.f32 %v3581, %v3629
    %v3631 = vpop.f32.mrf.mxu0
    %3632 = vdwg.mxu0
    %3633 = vmatprep.subr.bf16.mxu0 0
    %3634 = vmatpush1.bf16.msra.mxu0 %v3364
    %3635 = vmatprep.subr.bf16.mxu0 0
    %3636 = vmatpush1.bf16.msra.mxu0 %v3363
    %3637 = vmatprep.subr.bf16.mxu0 0
    %3638 = vmatpush1.bf16.msra.mxu0 %v3362
    %3639 = vmatprep.subr.bf16.mxu0 0
    %3640 = vmatpush1.bf16.msra.mxu0 %v3361
    %3641 = vmatprep.subr.bf16.mxu0 0
    %3642 = vmatpush1.bf16.msra.mxu0 %v3360
    %3643 = vmatprep.subr.bf16.mxu0 0
    %3644 = vmatpush1.bf16.msra.mxu0 %v3359
    %3645 = vmatprep.subr.bf16.mxu0 0
    %3646 = vmatpush1.bf16.msra.mxu0 %v3358
    %3647 = vmatprep.subr.bf16.mxu0 0
    %3648 = vmatpush1.bf16.msra.mxu0 %v3357
    %3649 = vmatprep.subr.bf16.mxu0 0
    %3650 = vmatpush2.bf16.msra.mxu0 0
    %3651 = vmatprep.subr.bf16.mxu0 0
    %3652 = vmatpush2.bf16.msra.mxu0 0
    %3653 = vmatprep.subr.bf16.mxu0 0
    %3654 = vmatpush2.bf16.msra.mxu0 0
    %3655 = vmatprep.subr.bf16.mxu0 0
    %3656 = vmatpush2.bf16.msra.mxu0 0
    %3657 = vmatprep.subr.bf16.mxu0 0
    %3658 = vmatpush2.bf16.msra.mxu0 0
    %3659 = vmatprep.subr.bf16.mxu0 0
    %3660 = vmatpush2.bf16.msra.mxu0 0
    %3661 = vmatprep.subr.bf16.mxu0 0
    %3662 = vmatpush2.bf16.msra.mxu0 0
    %3663 = vmatprep.subr.bf16.mxu0 0
    %3664 = vmatpush2.bf16.msra.mxu0 0
    %3665 = vmatprep.mubr.bf16.mxu0 0
    %3666 = vmatmul.mubr.bf16.gmra.mxu0 %v2852
    %v3667 = vpop.f32.mrf.mxu0
    %v3668 = vadd.f32 %v3619, %v3667
    %v3669 = vpop.f32.mrf.mxu0
    %v3670 = vpop.f32.mrf.mxu0
    %v3671 = vadd.f32 %v3622, %v3670
    %v3672 = vpop.f32.mrf.mxu0
    %3673 = vmatprep.mubr.bf16.mxu0 0
    %3674 = vmatmul.mubr.bf16.gmra.mxu0 %v2853
    %v3675 = vpop.f32.mrf.mxu0
    %v3676 = vadd.f32 %v3627, %v3675
    %v3677 = vpop.f32.mrf.mxu0
    %v3678 = vpop.f32.mrf.mxu0
    %v3679 = vadd.f32 %v3630, %v3678
    %v3680 = vpop.f32.mrf.mxu0
    %3681 = vdwg.mxu0
    %v3682 = vmax.f32 %v3668, 0.0
    %v3683 = vmax.f32 %v3671, 0.0
    %v3684 = vmax.f32 %v3676, 0.0
    %v3685 = vmax.f32 %v3679, 0.0
    %v3686 = vpack.c.bf16 %v3683, %v3682
    %v3687 = vpack.c.bf16 %v3685, %v3684
    %v3688 = vld [vmem:[%s11] sm:$0xf]
    %v3689 = vld [vmem:[%s11 + $0x4] sm:$0xf]
    %v3690 = vld [vmem:[%s11 + $0x8] sm:$0xf]
    %v3691 = vld [vmem:[%s11 + $0xc] sm:$0xf]
    %v3692 = vld [vmem:[%s11 + $0x10] sm:$0xf]
    %v3693 = vld [vmem:[%s11 + $0x14] sm:$0xf]
    %v3694 = vld [vmem:[%s11 + $0x18] sm:$0xf]
    %v3695 = vld [vmem:[%s11 + $0x1c] sm:$0xf]
    %v3696 = vld [vmem:[%s11 + $0x20] sm:$0xf]
    %v3697 = vld [vmem:[%s11 + $0x24] sm:$0xf]
    %v3698 = vld [vmem:[%s11 + $0x28] sm:$0xf]
    %v3699 = vld [vmem:[%s11 + $0x2c] sm:$0xf]
    %v3700 = vld [vmem:[%s11 + $0x30] sm:$0xf]
    %v3701 = vld [vmem:[%s11 + $0x34] sm:$0xf]
    %v3702 = vld [vmem:[%s11 + $0x38] sm:$0xf]
    %v3703 = vld [vmem:[%s11 + $0x3c] sm:$0xf]
    %v3704 = vld [vmem:[#allocation11] sm:$0x1]
    %v3706 = vlaneseq
    %v3707 = vshrl.u32 %v3706, 7
    %v3708 = vsub.s32 0, %v3707
    %v3709 = vrot.slane %v3704, %v3708
    %v3727 = vunpack.c.l.b16 %v3688
    %v3728 = vunpack.c.l.b16 %v3689
    %v3729 = vunpack.c.l.b16 %v3690
    %v3730 = vunpack.c.l.b16 %v3691
    %v3731 = vunpack.c.l.b16 %v3692
    %v3732 = vunpack.c.l.b16 %v3693
    %v3733 = vunpack.c.l.b16 %v3694
    %v3734 = vunpack.c.l.b16 %v3695
    %v3735 = vunpack.c.l.b16 %v3696
    %v3736 = vunpack.c.l.b16 %v3697
    %v3737 = vunpack.c.l.b16 %v3698
    %v3738 = vunpack.c.l.b16 %v3699
    %v3739 = vunpack.c.l.b16 %v3700
    %v3740 = vunpack.c.l.b16 %v3701
    %v3741 = vunpack.c.l.b16 %v3702
    %v3742 = vunpack.c.l.b16 %v3703
    %v3743 = vpack.c.b16 %v3728, %v3727
    %v3744 = vpack.c.b16 %v3730, %v3729
    %v3745 = vpack.c.b16 %v3732, %v3731
    %v3746 = vpack.c.b16 %v3734, %v3733
    %v3747 = vpack.c.b16 %v3736, %v3735
    %v3748 = vpack.c.b16 %v3738, %v3737
    %v3749 = vpack.c.b16 %v3740, %v3739
    %v3750 = vpack.c.b16 %v3742, %v3741
    %3759 = vmatprep.subr.bf16.mxu0 0
    %3760 = vmatpush1.bf16.msra.mxu0 %v3750
    %3761 = vmatprep.subr.bf16.mxu0 0
    %3762 = vmatpush1.bf16.msra.mxu0 %v3749
    %3763 = vmatprep.subr.bf16.mxu0 0
    %3764 = vmatpush1.bf16.msra.mxu0 %v3748
    %3765 = vmatprep.subr.bf16.mxu0 0
    %3766 = vmatpush1.bf16.msra.mxu0 %v3747
    %3767 = vmatprep.subr.bf16.mxu0 0
    %3768 = vmatpush1.bf16.msra.mxu0 %v3746
    %3769 = vmatprep.subr.bf16.mxu0 0
    %3770 = vmatpush1.bf16.msra.mxu0 %v3745
    %3771 = vmatprep.subr.bf16.mxu0 0
    %3772 = vmatpush1.bf16.msra.mxu0 %v3744
    %3773 = vmatprep.subr.bf16.mxu0 0
    %3774 = vmatpush1.bf16.msra.mxu0 %v3743
    %3775 = vmatprep.subr.bf16.mxu0 0
    %3776 = vmatpush2.bf16.msra.mxu0 0
    %3777 = vmatprep.subr.bf16.mxu0 0
    %3778 = vmatpush2.bf16.msra.mxu0 0
    %3779 = vmatprep.subr.bf16.mxu0 0
    %3780 = vmatpush2.bf16.msra.mxu0 0
    %3781 = vmatprep.subr.bf16.mxu0 0
    %3782 = vmatpush2.bf16.msra.mxu0 0
    %3783 = vmatprep.subr.bf16.mxu0 0
    %3784 = vmatpush2.bf16.msra.mxu0 0
    %3785 = vmatprep.subr.bf16.mxu0 0
    %3786 = vmatpush2.bf16.msra.mxu0 0
    %3787 = vmatprep.subr.bf16.mxu0 0
    %3788 = vmatpush2.bf16.msra.mxu0 0
    %3789 = vmatprep.subr.bf16.mxu0 0
    %3790 = vmatpush2.bf16.msra.mxu0 0
    %3791 = vmatprep.mubr.bf16.mxu0 0
    %3792 = vmatmul.mubr.bf16.gmra.mxu0 %v3686
    %v3793 = vpop.f32.mrf.mxu0
    %v3794 = vadd.f32 %v3709, %v3793
    %v3795 = vpop.f32.mrf.mxu0
    %v3796 = vpop.f32.mrf.mxu0
    %v3797 = vadd.f32 %v3709, %v3796
    %v3798 = vpop.f32.mrf.mxu0
    %3799 = vmatprep.mubr.bf16.mxu0 0
    %3800 = vmatmul.mubr.bf16.gmra.mxu0 %v3687
    %v3801 = vpop.f32.mrf.mxu0
    %v3802 = vadd.f32 %v3709, %v3801
    %v3803 = vpop.f32.mrf.mxu0
    %v3804 = vpop.f32.mrf.mxu0
    %v3805 = vadd.f32 %v3709, %v3804
    %v3806 = vpop.f32.mrf.mxu0
    %3807 = vdwg.mxu0
    %v3808 = vmax.f32 %v3794, 0.0
    %v3809 = vmax.f32 %v3797, 0.0
    %v3810 = vmax.f32 %v3802, 0.0
    %v3811 = vmax.f32 %v3805, 0.0
    %v3812 = vpack.c.bf16 %v3809, %v3808
    %v3813 = vpack.c.bf16 %v3811, %v3810
    %v3814 = vld [vmem:[#allocation14] sm:$0xff]
    %v3815 = vld [vmem:[#allocation14 + $0x8] sm:$0xff]
    %v3816 = vld [vmem:[#allocation14 + $0x10] sm:$0xff]
    %v3817 = vld [vmem:[#allocation14 + $0x18] sm:$0xff]
    %3819 = vset.pattern.permute.xlu0 2
    %3820 = vperm.xlu0 %3819, %v3812
    %v3821 = vpop.permute.xlu0 %3820
    %3824 = vset.pattern.permute.xlu0 2
    %3825 = vperm.xlu0 %3824, %v3813
    %v3826 = vpop.permute.xlu0 %3825
    %v3832 = vunpack.c.l.b16 %v3814
    %v3833 = vunpack.c.h.b16 %v3814
    %v3834 = vunpack.c.l.b16 %v3815
    %v3835 = vunpack.c.h.b16 %v3815
    %v3836 = vunpack.c.l.b16 %v3816
    %v3837 = vunpack.c.h.b16 %v3816
    %v3838 = vunpack.c.l.b16 %v3817
    %v3839 = vunpack.c.h.b16 %v3817
    %v3840 = vpack.c.b16 %v3834, %v3832
    %v3841 = vpack.c.b16 %v3835, %v3833
    %v3842 = vpack.c.b16 %v3838, %v3836
    %v3843 = vpack.c.b16 %v3839, %v3837
    %v3848 = vmul.bf16 %v3821, %v3840
    %v3849 = vmul.bf16 %v3821, %v3841
    %v3850 = vmul.bf16 %v3826, %v3842
    %v3851 = vmul.bf16 %v3826, %v3843
    %v3852 = vld [vmem:[%s13] sm:$0xf]
    %v3853 = vld [vmem:[%s13 + $0x4] sm:$0xf]
    %v3854 = vld [vmem:[%s13 + $0x8] sm:$0xf]
    %v3855 = vld [vmem:[%s13 + $0xc] sm:$0xf]
    %3856 = vset.pattern.permute.xlu0 0
    %3857 = vperm.xlu0 %3856, %v3812
    %v3858 = vpop.permute.xlu0 %3857
    %3860 = vset.pattern.permute.xlu0 0
    %3861 = vperm.xlu0 %3860, %v3813
    %v3862 = vpop.permute.xlu0 %3861
    %v3868 = vunpack.c.l.b16 %v3852
    %v3869 = vunpack.c.l.b16 %v3853
    %v3870 = vunpack.c.l.b16 %v3854
    %v3871 = vunpack.c.l.b16 %v3855
    %v3872 = vpack.c.b16 %v3869, %v3868
    %v3873 = vpack.c.b16 %v3871, %v3870
    %v3876 = vmul.bf16 %v3858, %v3872
    %v3877 = vmul.bf16 %v3862, %v3873
    %s3878 = scalar_lea.vmem %s13, 16
    %v3879 = vld [vmem:[%s3878] sm:$0xf]
    %v3880 = vld [vmem:[%s3878 + $0x4] sm:$0xf]
    %v3881 = vld [vmem:[%s3878 + $0x8] sm:$0xf]
    %v3882 = vld [vmem:[%s3878 + $0xc] sm:$0xf]
    %3883 = vset.pattern.permute.xlu0 1
    %3884 = vperm.xlu0 %3883, %v3812
    %v3885 = vpop.permute.xlu0 %3884
    %3887 = vset.pattern.permute.xlu0 1
    %3888 = vperm.xlu0 %3887, %v3813
    %v3889 = vpop.permute.xlu0 %3888
    %v3895 = vunpack.c.l.b16 %v3879
    %v3896 = vunpack.c.l.b16 %v3880
    %v3897 = vunpack.c.l.b16 %v3881
    %v3898 = vunpack.c.l.b16 %v3882
    %v3899 = vpack.c.b16 %v3896, %v3895
    %v3900 = vpack.c.b16 %v3898, %v3897
    %v3903 = vmul.bf16 %v3885, %v3899
    %v3904 = vmul.bf16 %v3889, %v3900
    %v3905 = vadd.bf16 %v3876, %v3903
    %v3906 = vadd.bf16 %v3877, %v3904
    %v3907 = vld [vmem:[%s2] sm:$0x1]
    %v3909 = vsel %vm1169, %v3907, 0
    %3911 = vmatprep.subr.bf16.mxu0 0
    %3912 = vmatpush1.bf16.msra.mxu0 0
    %3913 = vmatprep.subr.bf16.mxu0 0
    %3914 = vmatpush1.bf16.msra.mxu0 0
    %3915 = vmatprep.subr.bf16.mxu0 0
    %3916 = vmatpush1.bf16.msra.mxu0 0
    %3917 = vmatprep.subr.bf16.mxu0 0
    %3918 = vmatpush1.bf16.msra.mxu0 0
    %3919 = vmatprep.subr.bf16.mxu0 0
    %3920 = vmatpush1.bf16.msra.mxu0 0
    %3921 = vmatprep.subr.bf16.mxu0 0
    %3922 = vmatpush1.bf16.msra.mxu0 0
    %3923 = vmatprep.subr.bf16.mxu0 %v3851
    %3924 = vmatpush1.bf16.msra.mxu0 %v3850
    %3925 = vmatprep.subr.bf16.mxu0 %v3849
    %3926 = vmatpush1.bf16.msra.mxu0 %v3848
    %3927 = vmatprep.subr.bf16.mxu0 0
    %3928 = vmatpush2.bf16.msra.mxu0 0
    %3929 = vmatprep.subr.bf16.mxu0 0
    %3930 = vmatpush2.bf16.msra.mxu0 0
    %3931 = vmatprep.subr.bf16.mxu0 0
    %3932 = vmatpush2.bf16.msra.mxu0 0
    %3933 = vmatprep.subr.bf16.mxu0 0
    %3934 = vmatpush2.bf16.msra.mxu0 0
    %3935 = vmatprep.subr.bf16.mxu0 0
    %3936 = vmatpush2.bf16.msra.mxu0 0
    %3937 = vmatprep.subr.bf16.mxu0 0
    %3938 = vmatpush2.bf16.msra.mxu0 0
    %3939 = vmatprep.subr.bf16.mxu0 0
    %3940 = vmatpush2.bf16.msra.mxu0 0
    %3941 = vmatprep.subr.bf16.mxu0 0
    %3942 = vmatpush2.bf16.msra.mxu0 0
    %3943 = vmatprep.mubr.bf16.mxu0 0
    %3944 = vmatmul.mubr.bf16.gmra.mxu0 %v3909
    %v3945 = vpop.f32.mrf.mxu0
    %v3946 = vadd.f32 0.0, %v3945
    %v3947 = vpop.f32.mrf.mxu0
    %v3948 = vadd.f32 0.0, %v3947
    %v3949 = vpop.f32.mrf.mxu0
    %v3950 = vpop.f32.mrf.mxu0
    %3951 = vdwg.mxu0
    %3952 = vmatprep.subr.bf16.mxu0 0
    %3953 = vmatpush1.bf16.msra.mxu0 0
    %3954 = vmatprep.subr.bf16.mxu0 0
    %3955 = vmatpush1.bf16.msra.mxu0 0
    %3956 = vmatprep.subr.bf16.mxu0 0
    %3957 = vmatpush1.bf16.msra.mxu0 0
    %3958 = vmatprep.subr.bf16.mxu0 0
    %3959 = vmatpush1.bf16.msra.mxu0 0
    %3960 = vmatprep.subr.bf16.mxu0 0
    %3961 = vmatpush1.bf16.msra.mxu0 0
    %3962 = vmatprep.subr.bf16.mxu0 0
    %3963 = vmatpush1.bf16.msra.mxu0 0
    %3964 = vmatprep.subr.bf16.mxu0 0
    %3965 = vmatpush1.bf16.msra.mxu0 %v3906
    %3966 = vmatprep.subr.bf16.mxu0 0
    %3967 = vmatpush1.bf16.msra.mxu0 %v3905
    %3968 = vmatprep.subr.bf16.mxu0 0
    %3969 = vmatpush2.bf16.msra.mxu0 0
    %3970 = vmatprep.subr.bf16.mxu0 0
    %3971 = vmatpush2.bf16.msra.mxu0 0
    %3972 = vmatprep.subr.bf16.mxu0 0
    %3973 = vmatpush2.bf16.msra.mxu0 0
    %3974 = vmatprep.subr.bf16.mxu0 0
    %3975 = vmatpush2.bf16.msra.mxu0 0
    %3976 = vmatprep.subr.bf16.mxu0 0
    %3977 = vmatpush2.bf16.msra.mxu0 0
    %3978 = vmatprep.subr.bf16.mxu0 0
    %3979 = vmatpush2.bf16.msra.mxu0 0
    %3980 = vmatprep.subr.bf16.mxu0 0
    %3981 = vmatpush2.bf16.msra.mxu0 0
    %3982 = vmatprep.subr.bf16.mxu0 0
    %3983 = vmatpush2.bf16.msra.mxu0 0
    %3984 = vmatprep.mubr.bf16.mxu0 0
    %3985 = vmatmul.mubr.bf16.gmra.mxu0 %v3909
    %v3986 = vpop.f32.mrf.mxu0
    %v3987 = vadd.f32 0.0, %v3986
    %v3988 = vpop.f32.mrf.mxu0
    %v3989 = vpop.f32.mrf.mxu0
    %v3990 = vpop.f32.mrf.mxu0
    %3991 = vdwg.mxu0
    %v3992 = vld [vmem:[%s16] sm:$0x3]
    %v3994 = vlaneseq
    %v3995 = vshrl.u32 %v3994, 7
    %v3996 = vsub.s32 0, %v3995
    %v3997 = vrot.slane %v3992, %v3996
    %v3998 = vlaneseq
    %v3999 = vshrl.u32 %v3998, 7
    %v4000 = vsub.s32 1, %v3999
    %v4001 = vrot.slane %v3992, %v4000
    %v4004 = vadd.f32 %v3946, %v3997
    %v4005 = vadd.f32 %v3948, %v4001
    %v4006 = vmax.f32 %v4004, 0.0
    %v4007 = vmax.f32 %v4005, 0.0
    %v4008 = vld [vmem:[%s17] sm:$0xff]
    %v4009 = vld [vmem:[%s17 + $0x8] sm:$0xff]
    %v4010 = vld [vmem:[%s17 + $0x10] sm:$0xff]
    %v4011 = vld [vmem:[%s17 + $0x18] sm:$0xff]
    %v4012 = vld [vmem:[%s17 + $0x20] sm:$0xff]
    %v4013 = vld [vmem:[%s17 + $0x28] sm:$0xff]
    %v4014 = vld [vmem:[%s17 + $0x30] sm:$0xff]
    %v4015 = vld [vmem:[%s17 + $0x38] sm:$0xff]
    %v4016 = vld [vmem:[%s17 + $0x40] sm:$0xff]
    %v4017 = vld [vmem:[%s17 + $0x48] sm:$0xff]
    %v4018 = vld [vmem:[%s17 + $0x50] sm:$0xff]
    %v4019 = vld [vmem:[%s17 + $0x58] sm:$0xff]
    %v4020 = vld [vmem:[%s17 + $0x60] sm:$0xff]
    %v4021 = vld [vmem:[%s17 + $0x68] sm:$0xff]
    %v4022 = vld [vmem:[%s17 + $0x70] sm:$0xff]
    %v4023 = vld [vmem:[%s17 + $0x78] sm:$0xff]
    %v4024 = vld [vmem:[%s17 + $0x80] sm:$0xff]
    %v4025 = vld [vmem:[%s17 + $0x88] sm:$0xff]
    %v4026 = vld [vmem:[%s17 + $0x90] sm:$0xff]
    %v4027 = vld [vmem:[%s17 + $0x98] sm:$0xff]
    %v4028 = vld [vmem:[%s17 + $0xa0] sm:$0xff]
    %v4029 = vld [vmem:[%s17 + $0xa8] sm:$0xff]
    %v4030 = vld [vmem:[%s17 + $0xb0] sm:$0xff]
    %v4031 = vld [vmem:[%s17 + $0xb8] sm:$0xff]
    %v4032 = vld [vmem:[%s17 + $0xc0] sm:$0xff]
    %v4033 = vld [vmem:[%s17 + $0xc8] sm:$0xff]
    %v4034 = vld [vmem:[%s17 + $0xd0] sm:$0xff]
    %v4035 = vld [vmem:[%s17 + $0xd8] sm:$0xff]
    %v4036 = vld [vmem:[%s17 + $0xe0] sm:$0xff]
    %v4037 = vld [vmem:[%s17 + $0xe8] sm:$0xff]
    %v4038 = vld [vmem:[%s17 + $0xf0] sm:$0xff]
    %v4039 = vld [vmem:[%s17 + $0xf8] sm:$0xff]
    %v4040 = vld [vmem:[#allocation2] sm:$0x1]
    %v4042 = vlaneseq
    %v4043 = vshrl.u32 %v4042, 7
    %v4044 = vsub.s32 0, %v4043
    %v4045 = vrot.slane %v4040, %v4044
    %4047 = vmatprep.subr.mxu0 0.0
    %4048 = vmatpush1.msra.mxu0 %v4023
    %4049 = vmatprep.subr.mxu0 0.0
    %4050 = vmatpush1.msra.mxu0 %v4022
    %4051 = vmatprep.subr.mxu0 0.0
    %4052 = vmatpush1.msra.mxu0 %v4021
    %4053 = vmatprep.subr.mxu0 0.0
    %4054 = vmatpush1.msra.mxu0 %v4020
    %4055 = vmatprep.subr.mxu0 0.0
    %4056 = vmatpush1.msra.mxu0 %v4019
    %4057 = vmatprep.subr.mxu0 0.0
    %4058 = vmatpush1.msra.mxu0 %v4018
    %4059 = vmatprep.subr.mxu0 0.0
    %4060 = vmatpush1.msra.mxu0 %v4017
    %4061 = vmatprep.subr.mxu0 0.0
    %4062 = vmatpush1.msra.mxu0 %v4016
    %4063 = vmatprep.subr.mxu0 0.0
    %4064 = vmatpush1.msra.mxu0 %v4015
    %4065 = vmatprep.subr.mxu0 0.0
    %4066 = vmatpush1.msra.mxu0 %v4014
    %4067 = vmatprep.subr.mxu0 0.0
    %4068 = vmatpush1.msra.mxu0 %v4013
    %4069 = vmatprep.subr.mxu0 0.0
    %4070 = vmatpush1.msra.mxu0 %v4012
    %4071 = vmatprep.subr.mxu0 0.0
    %4072 = vmatpush1.msra.mxu0 %v4011
    %4073 = vmatprep.subr.mxu0 0.0
    %4074 = vmatpush1.msra.mxu0 %v4010
    %4075 = vmatprep.subr.mxu0 0.0
    %4076 = vmatpush1.msra.mxu0 %v4009
    %4077 = vmatprep.subr.mxu0 0.0
    %4078 = vmatpush1.msra.mxu0 %v4008
    %4079 = vmatprep.subr.mxu0 0.0
    %4080 = vmatpush2.msra.mxu0 %v4039
    %4081 = vmatprep.subr.mxu0 0.0
    %4082 = vmatpush2.msra.mxu0 %v4038
    %4083 = vmatprep.subr.mxu0 0.0
    %4084 = vmatpush2.msra.mxu0 %v4037
    %4085 = vmatprep.subr.mxu0 0.0
    %4086 = vmatpush2.msra.mxu0 %v4036
    %4087 = vmatprep.subr.mxu0 0.0
    %4088 = vmatpush2.msra.mxu0 %v4035
    %4089 = vmatprep.subr.mxu0 0.0
    %4090 = vmatpush2.msra.mxu0 %v4034
    %4091 = vmatprep.subr.mxu0 0.0
    %4092 = vmatpush2.msra.mxu0 %v4033
    %4093 = vmatprep.subr.mxu0 0.0
    %4094 = vmatpush2.msra.mxu0 %v4032
    %4095 = vmatprep.subr.mxu0 0.0
    %4096 = vmatpush2.msra.mxu0 %v4031
    %4097 = vmatprep.subr.mxu0 0.0
    %4098 = vmatpush2.msra.mxu0 %v4030
    %4099 = vmatprep.subr.mxu0 0.0
    %4100 = vmatpush2.msra.mxu0 %v4029
    %4101 = vmatprep.subr.mxu0 0.0
    %4102 = vmatpush2.msra.mxu0 %v4028
    %4103 = vmatprep.subr.mxu0 0.0
    %4104 = vmatpush2.msra.mxu0 %v4027
    %4105 = vmatprep.subr.mxu0 0.0
    %4106 = vmatpush2.msra.mxu0 %v4026
    %4107 = vmatprep.subr.mxu0 0.0
    %4108 = vmatpush2.msra.mxu0 %v4025
    %4109 = vmatprep.subr.mxu0 0.0
    %4110 = vmatpush2.msra.mxu0 %v4024
    %4111 = vmatprep.mubr.f32.mxu0 %v4007
    %4112 = vmatmul.mubr.f32.gmra.mxu0 %v4006
    %v4113 = vpop.f32.mrf.mxu0
    %v4114 = vadd.f32 %v4045, %v4113
    %v4115 = vpop.f32.mrf.mxu0
    %4116 = vdwg.mxu0
    %v4117 = vld [vmem:[#allocation13] sm:$0x1]
    %v4119 = vlaneseq
    %v4120 = vshrl.u32 %v4119, 7
    %v4121 = vsub.s32 0, %v4120
    %v4122 = vrot.slane %v4117, %v4121
    %v4124 = vadd.f32 %v3987, %v4122
    %vm4125 = vcmask 58368
    %v4126 = vsel %vm4125, %v4124, -inf
    %4127 = vmax.xlane.f32.xlu0 %v4126
    %v4128 = vpop.xlane.xlu0 %4127
    %v4129 = vsub.f32 %v4124, %v4128
    %v4130 = vmul.f32 %v4129, 1.442695
    %v4131 = vpow.pop %v4130
    %v4132 = vsel %vm4125, %v4131, 0.0
    %4133 = vadd.xlane.f32.xlu0 %v4132
    %v4134 = vpop.xlane.xlu0 %4133
    %v4135 = vrcp.pop %v4134
    %v4136 = vmul.f32 %v4131, %v4135
    %4138 = vrot.lane.b32.xlu0 %v4114, 8
    %v4139 = vpop.permute.xlu0 %4138
    %vm4141 = vcmask 64512
    %v4142 = vsel %vm4141, %v4136, %v4139
    %vm4143 = vcmask 72704
    %v4144 = vsel %vm4143, %v4142, 0.0
    %4145 = vst [vmem:[%s19] sm:$0x3] %v4144
    // Predicated region
    $region110: #{network_forward.1} parent=1 // pred_check
      _
    $region111: #{network_forward.1} parent=1 // pred_check_branch
      %4147 = sbr.rel (0) target = $region113
    $region112: #{network_forward.1} parent=1 // pred_region
      _
    $region113: #{network_forward.1} parent=1 // pred_fallthru
      _
    // Predicated region
    $region114: #{network_forward.1} parent=1 // pred_check
      _
    $region115: #{network_forward.1} parent=1 // pred_check_branch
      %4149 = sbr.rel (0) target = $region117
    $region116: #{network_forward.1} parent=1 // pred_region
      _
    $region117: #{network_forward.1} parent=1 // pred_fallthru
      _
    %4150 = vsyncpa [#allocation4], 1
    %4151 = vsyncpa [#allocation6], 1
    %4152 = vsyncpa [#allocation9], 1
    %4153 = vsyncpa [#allocation12], 1
    %4154 = vsyncpa [#allocation15], 1

</llo_original>
